<compile_context>
chip_gen: v7x
topology: tpu7x:2x2x1
jax: 0.10.0
libtpu: 0.0.40
codegen_flags: <defaults>
</compile_context>

<pallas_src>
import jax
import jax.numpy as jnp
from jax import lax
from jax.experimental import pallas as pl
from jax.experimental.pallas import tpu as pltpu


# ----------------------------------------------------------------------------
# Kernel
# ----------------------------------------------------------------------------
def _softmax_xent_kernel(x_ref, w_ref, b_ref, cl_ref, lab_ref, out_ref,
                         m_sc, l_sc, g_sc):
    # x_ref:   [TB, D]        (f32 or bf16)   resident across class tiles
    # w_ref:   [D,  TC]       (f32 or bf16)   streamed, [in, out] layout
    # b_ref:   [1,  TC]       f32
    # cl_ref:  [TB, 1]        f32   true-class logit (precomputed in wrapper)
    # lab_ref: [TB, 1]        i32   labels
    # out_ref: [1, TB, 128]   f32   packed per-row partials (m, l, greater)
    # m_sc/l_sc/g_sc: [TB,1]  f32   running max / sum-exp / greater-count
    s = pl.program_id(0)          # class-split index (megacore class sharding)
    j = pl.program_id(2)          # class-tile index within the split
    nc = pl.num_programs(2)

    @pl.when(j == 0)
    def _():
        m_sc[...] = jnp.full_like(m_sc, -jnp.inf)
        l_sc[...] = jnp.zeros_like(l_sc)
        g_sc[...] = jnp.zeros_like(g_sc)

    # logits[b, c] = sum_d x[b, d] * w[d, c] + bias[c]   (MXU, f32 accumulate)
    logits = jnp.dot(x_ref[...], w_ref[...], preferred_element_type=jnp.float32)
    logits = logits + b_ref[...]                               # [TB, TC]

    cl = cl_ref[...]                                           # [TB, 1]
    lab = lab_ref[...]                                         # [TB, 1] i32

    # ---- online log-sum-exp over class tiles ----
    # TODO(synk): for small D on v6e/v7x the single EUP slot (exp) can bind;
    # casting (logits - m_new) to bf16 before exp would ~halve that cost.
    m_prev = m_sc[...]
    m_new = jnp.maximum(m_prev, jnp.max(logits, axis=-1, keepdims=True))
    alpha = jnp.exp(m_prev - m_new)
    l_sc[...] = alpha * l_sc[...] + jnp.sum(jnp.exp(logits - m_new),
                                            axis=-1, keepdims=True)
    m_sc[...] = m_new

    # ---- rank accumulation: #(other-class logits strictly > true logit) ----
    tb, tc = logits.shape
    base = (s * nc + j) * tc
    cls_ids = base + lax.broadcasted_iota(jnp.int32, (tb, tc), 1)
    greater = jnp.logical_and(logits > cl, cls_ids != lab)
    g_sc[...] += jnp.sum(greater.astype(jnp.float32), axis=-1, keepdims=True)

    # ---- last class tile of this split: lane-dense packed per-row output ----
    # (Output block index is constant across j, so the block is resident and
    #  this full overwrite happens before writeback.)
    @pl.when(j == nc - 1)
    def _():
        lane = lax.broadcasted_iota(jnp.int32, (tb, 128), 1)
        out_ref[0] = jnp.where(lane == 0, m_sc[...],
                     jnp.where(lane == 1, l_sc[...],
                     jnp.where(lane == 2, g_sc[...], 0.0)))


# ----------------------------------------------------------------------------
# Helpers
# ----------------------------------------------------------------------------
def _round_up(n, m):
    return -(-n // m) * m


def _vmem_budget():
    """Per-generation VMEM budget (bytes) with headroom for the compiler."""
    cap = 64 * 1024 * 1024
    try:
        info = pltpu.get_tpu_info()
        cap = int(getattr(info, "vmem_capacity_bytes", cap) or cap)
    except Exception:
        pass
    # 128 MiB chips (v5e/v6e) -> 96 MiB; v7x (64 MiB physical) -> 48 MiB.
    return min(cap * 3 // 4, 100 * 1024 * 1024)


def _choose_tiles(B, C, D, x_bytes, w_bytes, tile_b, tile_c, budget):
    """Pick (tb, tc): tc a multiple of 128 with modest class padding, tb the
    largest multiple of 8 that fits the VMEM budget (one batch tile preferred,
    since each batch tile re-streams the whole weight)."""
    tile_b = max(8, tile_b)
    tile_c = max(128, tile_c)

    tc = 128
    for cand in (256, 512, 1024):
        if cand > tile_c:
            break
        pad = _round_up(C, cand) - C
        if pad <= max(C // 8, 128):
            tc = cand

    def per_row_bytes(tc_):
        return (2 * D * x_bytes          # x double buffer
                + 3 * tc_ * 4            # logits + exp/compare temps (rough)
                + 9 * 128 * 4)           # cl/lab/out double buffers + scratch

    def fixed_bytes(tc_):
        return 2 * tc_ * D * w_bytes + 2 * tc_ * 4 + (2 << 20)

    while tc > 128 and budget - fixed_bytes(tc) < 64 * per_row_bytes(tc):
        tc //= 2

    avail = max(0, budget - fixed_bytes(tc))
    cap_rows = max(8, avail // per_row_bytes(tc))
    tb = min(tile_b, int(cap_rows), _round_up(B, 8))
    tb = max(8, (tb // 8) * 8)
    return tb, tc


def _reference(x, weight, bias, labels):
    """Pure-JAX reference (also the small-problem fallback)."""
    logits = x @ weight.T + bias
    lse = jax.scipy.special.logsumexp(logits, axis=-1)
    correct = jnp.take_along_axis(logits, labels[:, None], axis=-1)[:, 0]
    loss = jnp.mean(lse - correct)
    rank = jnp.sum((logits > correct[:, None]).astype(jnp.int32), axis=-1)
    p1 = jnp.mean((rank < 1).astype(jnp.float32)) * 100.0
    p10 = jnp.mean((rank < 10).astype(jnp.float32)) * 100.0
    return loss, p1, p10


# ----------------------------------------------------------------------------
# Wrapper
# ----------------------------------------------------------------------------
def softmax_loss(x, weight, bias, labels, *, tile_b=1024, tile_c=512,
                 matmul_dtype=None, n_class_splits=1, use_kernel=None,
                 vmem_limit_bytes=None):
    """Fused Linear + CrossEntropy + top-1/top-10 accuracy.

    x:       [B, n_out]          float32
    weight:  [n_classes, n_out]  float32  (PyTorch Linear layout)
    bias:    [n_classes]         float32
    labels:  [B]                 int32
    Returns (nloss, [prec1, prec10]) matching the PyTorch module.

    n_class_splits=2 shards the class axis across two TensorCores (v7x).
    """
    B, D = x.shape
    C = weight.shape[0]
    assert weight.shape == (C, D)
    labels = labels.astype(jnp.int32)

    if use_kernel is None:
        # Tiny problems: kernel launch + pipeline overhead dwarfs compute.
        use_kernel = (B * C * D) >= (1 << 20)
    if not use_kernel:
        loss, p1, p10 = _reference(x, weight, bias, labels)
        return loss, [p1, p10]

    budget = int(vmem_limit_bytes) if vmem_limit_bytes else _vmem_budget()

    # ---- one-time parameter prep (cache across steps in a training loop) ----
    # Transpose to [D, C] so the kernel matmul is a standard MXU feed; the
    # optional bf16 cast makes the *resident* weight bf16 (halved HBM stream).
    w_t = weight.T
    if matmul_dtype is not None:
        w_t = w_t.astype(matmul_dtype)
        x_mm = x.astype(matmul_dtype)
    else:
        x_mm = x

    x_bytes = x_mm.dtype.itemsize
    w_bytes = w_t.dtype.itemsize
    tb, tc = _choose_tiles(B, C, D, x_bytes, w_bytes, tile_b, tile_c, budget)

    # ---- batch tiling: rebalance so padding stays < 8 rows per tile ----
    nb = -(-B // tb)
    tb = _round_up(-(-B // nb), 8)
    B_pad = nb * tb

    # ---- class tiling / optional class-axis split across cores ----
    nc_total = -(-C // tc)
    n_split = max(1, int(n_class_splits))
    if n_split > nc_total:
        n_split = 1
    nc_per = -(-nc_total // n_split)
    C_pad = tc * nc_per * n_split

    # ---- padding (padded rows discarded; padded classes get bias=-1e30) ----
    if B_pad > B:
        x_mm = jnp.pad(x_mm, ((0, B_pad - B), (0, 0)))
        labels_p = jnp.pad(labels, (0, B_pad - B))
    else:
        labels_p = labels
    if C_pad > C:
        w_t_p = jnp.pad(w_t, ((0, 0), (0, C_pad - C)))
        bias_p = jnp.concatenate(
            [bias.astype(jnp.float32),
             jnp.full((C_pad - C,), -1e30, jnp.float32)])
    else:
        w_t_p = w_t
        bias_p = bias.astype(jnp.float32)

    # True-class logit: B-row gather + row dot (negligible vs B*C*D matmul).
    # TODO(synk): with bf16 matmul operands this f32 value can differ in the
    # last bits from the in-kernel logit; exact torch.topk tie-breaking is
    # approximated by strict-greater rank counting (label excluded by id).
    w_lab = jnp.take(weight, labels, axis=0)                    # [B, D]
    correct = (jnp.sum(x.astype(jnp.float32) * w_lab.astype(jnp.float32),
                       axis=-1)
               + jnp.take(bias, labels)).astype(jnp.float32)    # [B]
    correct_p = jnp.pad(correct, (0, B_pad - B)) if B_pad > B else correct

    bias2d = bias_p.reshape(1, C_pad)
    labels2d = labels_p.reshape(B_pad, 1)
    cl2d = correct_p.reshape(B_pad, 1)

    partials = pl.pallas_call(
        _softmax_xent_kernel,
        out_shape=jax.ShapeDtypeStruct((n_split, B_pad, 128), jnp.float32),
        grid_spec=pltpu.PrefetchScalarGridSpec(
            num_scalar_prefetch=0,
            grid=(n_split, nb, nc_per),
            in_specs=[
                pl.BlockSpec((tb, D), lambda s, i, j: (i, 0)),             # x
                pl.BlockSpec((D, tc), lambda s, i, j: (0, s * nc_per + j)),  # W^T
                pl.BlockSpec((1, tc), lambda s, i, j: (0, s * nc_per + j)),  # bias
                pl.BlockSpec((tb, 1), lambda s, i, j: (i, 0)),             # correct
                pl.BlockSpec((tb, 1), lambda s, i, j: (i, 0)),             # labels
            ],
            out_specs=pl.BlockSpec((1, tb, 128), lambda s, i, j: (s, i, 0)),
            scratch_shapes=[pltpu.VMEM((tb, 1), jnp.float32)] * 3,
        ),
        compiler_params=pltpu.CompilerParams(
            dimension_semantics=("parallel", "parallel", "arbitrary"),
            vmem_limit_bytes=int(budget)),
    )(x_mm, w_t_p, bias2d, cl2d, labels2d)

    # ---- merge per-split / per-row partials (cheap, O(B)) ----
    m = partials[:, :B, 0]                                      # [S, B]
    l = partials[:, :B, 1]
    g = partials[:, :B, 2]
    m_glob = jnp.max(m, axis=0)                                 # [B]
    l_glob = jnp.sum(l * jnp.exp(m - m_glob[None, :]), axis=0)
    lse = m_glob + jnp.log(l_glob)
    rank = jnp.sum(g, axis=0)

    nloss = jnp.mean(lse - correct)
    prec1 = jnp.mean((rank < 1.0).astype(jnp.float32)) * 100.0
    prec10 = jnp.mean((rank < 10.0).astype(jnp.float32)) * 100.0
    return nloss, [prec1, prec10]


# ----------------------------------------------------------------------------
# Demo / self-test
# ----------------------------------------------------------------------------
if __name__ == "__main__":
    def _make_inputs(key, B, D, C):
        kx, kw, kb, kl = jax.random.split(key, 4)
        x = jax.random.normal(kx, (B, D), dtype=jnp.float32)
        bound = 1.0 / jnp.sqrt(jnp.float32(D))
        weight = jax.random.uniform(kw, (C, D), jnp.float32, -bound, bound)
        bias = jax.random.uniform(kb, (C,), jnp.float32, -bound, bound)
        labels = jax.random.randint(kl, (B,), 0, C, dtype=jnp.int32)
        return x, weight, bias, labels

    key = jax.random.PRNGKey(0)
    k1, k2 = jax.random.split(key)

    # Config A: aligned shapes, default (single batch tile / single class tile).
    x, w, b, lab = _make_inputs(k1, 256, 64, 512)
    nloss, prec = softmax_loss(x, w, b, lab, use_kernel=True)
    nloss = jax.block_until_ready(nloss)
    prec = [jax.block_until_ready(p) for p in prec]
    rl, r1, r10 = _reference(x, w, b, lab)
    assert jnp.allclose(nloss, rl, atol=3e-4, rtol=3e-4), (nloss, rl)
    assert jnp.allclose(prec[0], r1, atol=1e-3), (prec[0], r1)
    assert jnp.allclose(prec[1], r10, atol=1e-3), (prec[1], r10)

    # Config B: non-aligned B/C/D, small tiles, class-axis split across cores
    # (exercises batch/class padding, streaming accumulator, split merge).
    x, w, b, lab = _make_inputs(k2, 200, 48, 300)
    nloss, prec = softmax_loss(x, w, b, lab, use_kernel=True,
                               tile_b=64, tile_c=128, n_class_splits=2)
    nloss = jax.block_until_ready(nloss)
    prec = [jax.block_until_ready(p) for p in prec]
    rl, r1, r10 = _reference(x, w, b, lab)
    assert jnp.allclose(nloss, rl, atol=3e-4, rtol=3e-4), (nloss, rl)
    assert jnp.allclose(prec[0], r1, atol=1e-3), (prec[0], r1)
    assert jnp.allclose(prec[1], r10, atol=1e-3), (prec[1], r10)

    print("KERNEL_OK")
</pallas_src>

<mosaic_0001>
module attributes {stable_mosaic.version = 11 : i64} {
  func.func @_softmax_xent_kernel(%arg0: i32, %arg1: i32, %arg2: i32, %arg3: memref<256x64xf32, #tpu.memory_space<vmem>>, %arg4: memref<64x512xf32, #tpu.memory_space<vmem>>, %arg5: memref<1x512xf32, #tpu.memory_space<vmem>>, %arg6: memref<256x1xf32, #tpu.memory_space<vmem>>, %arg7: memref<256x1xi32, #tpu.memory_space<vmem>>, %arg8: memref<1x256x128xf32, #tpu.memory_space<vmem>>, %arg9: memref<256x1xf32, #tpu.memory_space<vmem>>, %arg10: memref<256x1xf32, #tpu.memory_space<vmem>>, %arg11: memref<256x1xf32, #tpu.memory_space<vmem>>) attributes {dimension_semantics = [#tpu.dimension_semantics<parallel>, #tpu.dimension_semantics<parallel>, #tpu.dimension_semantics<arbitrary>], iteration_bounds = array<i64: 1, 1, 1>, scalar_prefetch = 0 : i64, scratch_operands = 3 : i64, tpu.core_type = #tpu.core_type<tc>, window_params = [{transform_indices = @transform_0, window_bounds = array<i64: 256, 64>}, {transform_indices = @transform_1, window_bounds = array<i64: 64, 512>}, {transform_indices = @transform_2, window_bounds = array<i64: 1, 512>}, {transform_indices = @transform_3, window_bounds = array<i64: 256, 1>}, {transform_indices = @transform_4, window_bounds = array<i64: 256, 1>}, {transform_indices = @transform_5, window_bounds = array<i64: 1, 256, 128>}]} {
    %c0_i32 = arith.constant 0 : i32
    %0 = arith.cmpi eq, %arg2, %c0_i32 : i32
    %1 = arith.extui %0 : i1 to i32
    %c0_i32_0 = arith.constant 0 : i32
    %2 = arith.cmpi ne, %1, %c0_i32_0 : i32
    scf.if %2 {
      %cst_27 = arith.constant 0xFF800000 : f32
      %48 = vector.broadcast %cst_27 : f32 to vector<256x1xf32>
      %c0_28 = arith.constant 0 : index
      %c0_29 = arith.constant 0 : index
      %49 = vector.load %arg9[%c0_28, %c0_29] : memref<256x1xf32, #tpu.memory_space<vmem>>, vector<256x1xf32>
      tpu.vector_store %arg9[%c0_28, %c0_29], %48 {strides = array<i32>} : memref<256x1xf32, #tpu.memory_space<vmem>>, vector<256x1xf32>,
      %cst_30 = arith.constant 0.000000e+00 : f32
      %50 = vector.broadcast %cst_30 : f32 to vector<256x1xf32>
      %c0_31 = arith.constant 0 : index
      %c0_32 = arith.constant 0 : index
      %51 = vector.load %arg10[%c0_31, %c0_32] : memref<256x1xf32, #tpu.memory_space<vmem>>, vector<256x1xf32>
      tpu.vector_store %arg10[%c0_31, %c0_32], %50 {strides = array<i32>} : memref<256x1xf32, #tpu.memory_space<vmem>>, vector<256x1xf32>,
      %cst_33 = arith.constant 0.000000e+00 : f32
      %52 = vector.broadcast %cst_33 : f32 to vector<256x1xf32>
      %c0_34 = arith.constant 0 : index
      %c0_35 = arith.constant 0 : index
      %53 = vector.load %arg11[%c0_34, %c0_35] : memref<256x1xf32, #tpu.memory_space<vmem>>, vector<256x1xf32>
      tpu.vector_store %arg11[%c0_34, %c0_35], %52 {strides = array<i32>} : memref<256x1xf32, #tpu.memory_space<vmem>>, vector<256x1xf32>,
    } else {
    }
    %c0 = arith.constant 0 : index
    %c0_1 = arith.constant 0 : index
    %3 = vector.load %arg3[%c0, %c0_1] : memref<256x64xf32, #tpu.memory_space<vmem>>, vector<256x64xf32>
    %c0_2 = arith.constant 0 : index
    %c0_3 = arith.constant 0 : index
    %4 = vector.load %arg4[%c0_2, %c0_3] : memref<64x512xf32, #tpu.memory_space<vmem>>, vector<64x512xf32>
    %cst = arith.constant dense<0.000000e+00> : vector<256x512xf32>
    %5 = tpu.matmul %3, %4, %cst {dimension_numbers = #tpu.dot_dimension_numbers<[1], [0], [0], [1], [0, 0, 1, 1], [], []>} : vector<256x64xf32>, vector<64x512xf32>, vector<256x512xf32> -> vector<256x512xf32>
    %c0_4 = arith.constant 0 : index
    %c0_5 = arith.constant 0 : index
    %6 = vector.load %arg5[%c0_4, %c0_5] : memref<1x512xf32, #tpu.memory_space<vmem>>, vector<1x512xf32>
    %7 = vector.broadcast %6 : vector<1x512xf32> to vector<256x512xf32>
    %8 = arith.addf %5, %7 : vector<256x512xf32>
    %c0_6 = arith.constant 0 : index
    %c0_7 = arith.constant 0 : index
    %9 = vector.load %arg6[%c0_6, %c0_7] : memref<256x1xf32, #tpu.memory_space<vmem>>, vector<256x1xf32>
    %c0_8 = arith.constant 0 : index
    %c0_9 = arith.constant 0 : index
    %10 = vector.load %arg7[%c0_8, %c0_9] : memref<256x1xi32, #tpu.memory_space<vmem>>, vector<256x1xi32>
    %c0_10 = arith.constant 0 : index
    %c0_11 = arith.constant 0 : index
    %11 = vector.load %arg9[%c0_10, %c0_11] : memref<256x1xf32, #tpu.memory_space<vmem>>, vector<256x1xf32>
    %cst_12 = arith.constant dense<0xFF800000> : vector<256xf32>
    %12 = vector.multi_reduction <maximumf>, %8, %cst_12 [1] : vector<256x512xf32> to vector<256xf32>
    %13 = vector.shape_cast %12 : vector<256xf32> to vector<256x1xf32>
    %14 = arith.maximumf %11, %13 : vector<256x1xf32>
    %15 = arith.subf %11, %14 : vector<256x1xf32>
    %16 = math.exp %15 : vector<256x1xf32>
    %c0_13 = arith.constant 0 : index
    %c0_14 = arith.constant 0 : index
    %17 = vector.load %arg10[%c0_13, %c0_14] : memref<256x1xf32, #tpu.memory_space<vmem>>, vector<256x1xf32>
    %18 = arith.mulf %16, %17 : vector<256x1xf32>
    %19 = vector.broadcast %14 : vector<256x1xf32> to vector<256x512xf32>
    %20 = arith.subf %8, %19 : vector<256x512xf32>
    %21 = math.exp %20 : vector<256x512xf32>
    %cst_15 = arith.constant dense<0.000000e+00> : vector<256xf32>
    %22 = vector.multi_reduction <add>, %21, %cst_15 [1] : vector<256x512xf32> to vector<256xf32>
    %23 = vector.shape_cast %22 : vector<256xf32> to vector<256x1xf32>
    %24 = arith.addf %18, %23 : vector<256x1xf32>
    %c0_16 = arith.constant 0 : index
    %c0_17 = arith.constant 0 : index
    %25 = vector.load %arg10[%c0_16, %c0_17] : memref<256x1xf32, #tpu.memory_space<vmem>>, vector<256x1xf32>
    tpu.vector_store %arg10[%c0_16, %c0_17], %24 {strides = array<i32>} : memref<256x1xf32, #tpu.memory_space<vmem>>, vector<256x1xf32>,
    %c0_18 = arith.constant 0 : index
    %c0_19 = arith.constant 0 : index
    %26 = vector.load %arg9[%c0_18, %c0_19] : memref<256x1xf32, #tpu.memory_space<vmem>>, vector<256x1xf32>
    tpu.vector_store %arg9[%c0_18, %c0_19], %14 {strides = array<i32>} : memref<256x1xf32, #tpu.memory_space<vmem>>, vector<256x1xf32>,
    %c1_i32 = arith.constant 1 : i32
    %27 = arith.muli %arg0, %c1_i32 : i32
    %28 = arith.addi %27, %arg2 : i32
    %c512_i32 = arith.constant 512 : i32
    %29 = arith.muli %28, %c512_i32 : i32
    %30 = tpu.iota {dimensions = array<i32: 1>} : vector<256x512xi32>
    %31 = vector.broadcast %29 : i32 to vector<256x512xi32>
    %32 = arith.addi %31, %30 : vector<256x512xi32>
    %33 = vector.broadcast %9 : vector<256x1xf32> to vector<256x512xf32>
    %34 = arith.cmpf ogt, %8, %33 : vector<256x512xf32>
    %35 = vector.broadcast %10 : vector<256x1xi32> to vector<256x512xi32>
    %36 = arith.cmpi ne, %32, %35 : vector<256x512xi32>
    %37 = arith.andi %34, %36 : vector<256x512xi1>
    %c0_20 = arith.constant 0 : index
    %c0_21 = arith.constant 0 : index
    %38 = vector.load %arg11[%c0_20, %c0_21] : memref<256x1xf32, #tpu.memory_space<vmem>>, vector<256x1xf32>
    %39 = arith.extui %37 : vector<256x512xi1> to vector<256x512xi32>
    %40 = arith.sitofp %39 : vector<256x512xi32> to vector<256x512xf32>
    %cst_22 = arith.constant dense<0.000000e+00> : vector<256xf32>
    %41 = vector.multi_reduction <add>, %40, %cst_22 [1] : vector<256x512xf32> to vector<256xf32>
    %42 = vector.shape_cast %41 : vector<256xf32> to vector<256x1xf32>
    %43 = arith.addf %38, %42 : vector<256x1xf32>
    %c0_23 = arith.constant 0 : index
    %c0_24 = arith.constant 0 : index
    %44 = vector.load %arg11[%c0_23, %c0_24] : memref<256x1xf32, #tpu.memory_space<vmem>>, vector<256x1xf32>
    tpu.vector_store %arg11[%c0_23, %c0_24], %43 {strides = array<i32>} : memref<256x1xf32, #tpu.memory_space<vmem>>, vector<256x1xf32>,
    %c0_i32_25 = arith.constant 0 : i32
    %45 = arith.cmpi eq, %arg2, %c0_i32_25 : i32
    %46 = arith.extui %45 : i1 to i32
    %c0_i32_26 = arith.constant 0 : i32
    %47 = arith.cmpi ne, %46, %c0_i32_26 : i32
    scf.if %47 {
      %48 = tpu.iota {dimensions = array<i32: 1>} : vector<256x128xi32>
      %c0_i32_27 = arith.constant 0 : i32
      %49 = vector.broadcast %c0_i32_27 : i32 to vector<256x128xi32>
      %50 = arith.cmpi eq, %48, %49 : vector<256x128xi32>
      %c0_28 = arith.constant 0 : index
      %c0_29 = arith.constant 0 : index
      %51 = vector.load %arg9[%c0_28, %c0_29] : memref<256x1xf32, #tpu.memory_space<vmem>>, vector<256x1xf32>
      %c1_i32_30 = arith.constant 1 : i32
      %52 = vector.broadcast %c1_i32_30 : i32 to vector<256x128xi32>
      %53 = arith.cmpi eq, %48, %52 : vector<256x128xi32>
      %c0_31 = arith.constant 0 : index
      %c0_32 = arith.constant 0 : index
      %54 = vector.load %arg10[%c0_31, %c0_32] : memref<256x1xf32, #tpu.memory_space<vmem>>, vector<256x1xf32>
      %c2_i32 = arith.constant 2 : i32
      %55 = vector.broadcast %c2_i32 : i32 to vector<256x128xi32>
      %56 = arith.cmpi eq, %48, %55 : vector<256x128xi32>
      %c0_33 = arith.constant 0 : index
      %c0_34 = arith.constant 0 : index
      %57 = vector.load %arg11[%c0_33, %c0_34] : memref<256x1xf32, #tpu.memory_space<vmem>>, vector<256x1xf32>
      %cst_35 = arith.constant 0.000000e+00 : f32
      %58 = vector.shape_cast %57 : vector<256x1xf32> to vector<256x1xf32>
      %59 = vector.broadcast %58 : vector<256x1xf32> to vector<256x128xf32>
      %60 = vector.broadcast %cst_35 : f32 to vector<256x128xf32>
      %61 = arith.select %56, %59, %60 : vector<256x128xi1>, vector<256x128xf32>
      %62 = vector.shape_cast %54 : vector<256x1xf32> to vector<256x1xf32>
      %63 = vector.broadcast %62 : vector<256x1xf32> to vector<256x128xf32>
      %64 = arith.select %53, %63, %61 : vector<256x128xi1>, vector<256x128xf32>
      %65 = vector.shape_cast %51 : vector<256x1xf32> to vector<256x1xf32>
      %66 = vector.broadcast %65 : vector<256x1xf32> to vector<256x128xf32>
      %67 = arith.select %50, %66, %64 : vector<256x128xi1>, vector<256x128xf32>
      %c0_36 = arith.constant 0 : index
      %c0_37 = arith.constant 0 : index
      %c0_38 = arith.constant 0 : index
      %68 = vector.load %arg8[%c0_36, %c0_37, %c0_38] : memref<1x256x128xf32, #tpu.memory_space<vmem>>, vector<1x256x128xf32>
      %69 = vector.shape_cast %68 : vector<1x256x128xf32> to vector<256x128xf32>
      %70 = vector.shape_cast %67 : vector<256x128xf32> to vector<1x256x128xf32>
      tpu.vector_store %arg8[%c0_36, %c0_37, %c0_38], %70 {strides = array<i32>} : memref<1x256x128xf32, #tpu.memory_space<vmem>>, vector<1x256x128xf32>,
    } else {
    }
    return
  }
  func.func @transform_0(%arg0: i32, %arg1: i32, %arg2: i32) -> (i32, i32) {
    %c0_i32 = arith.constant 0 : i32
    %c0_i32_0 = arith.constant 0 : i32
    return %arg1, %c0_i32 : i32, i32
  }
  func.func @transform_1(%arg0: i32, %arg1: i32, %arg2: i32) -> (i32, i32) {
    %c1_i32 = arith.constant 1 : i32
    %0 = arith.muli %arg0, %c1_i32 : i32
    %1 = arith.addi %0, %arg2 : i32
    %c0_i32 = arith.constant 0 : i32
    %c0_i32_0 = arith.constant 0 : i32
    return %c0_i32, %1 : i32, i32
  }
  func.func @transform_2(%arg0: i32, %arg1: i32, %arg2: i32) -> (i32, i32) {
    %c1_i32 = arith.constant 1 : i32
    %0 = arith.muli %arg0, %c1_i32 : i32
    %1 = arith.addi %0, %arg2 : i32
    %c0_i32 = arith.constant 0 : i32
    %c0_i32_0 = arith.constant 0 : i32
    return %c0_i32, %1 : i32, i32
  }
  func.func @transform_3(%arg0: i32, %arg1: i32, %arg2: i32) -> (i32, i32) {
    %c0_i32 = arith.constant 0 : i32
    %c0_i32_0 = arith.constant 0 : i32
    return %arg1, %c0_i32 : i32, i32
  }
  func.func @transform_4(%arg0: i32, %arg1: i32, %arg2: i32) -> (i32, i32) {
    %c0_i32 = arith.constant 0 : i32
    %c0_i32_0 = arith.constant 0 : i32
    return %arg1, %c0_i32 : i32, i32
  }
  func.func @transform_5(%arg0: i32, %arg1: i32, %arg2: i32) -> (i32, i32, i32) {
    %c0_i32 = arith.constant 0 : i32
    %c0_i32_0 = arith.constant 0 : i32
    return %arg0, %arg1, %c0_i32 : i32, i32, i32
  }
}

</mosaic_0001>

<llo_original>
// kernel: tpu_custom_call.1
$region0: #{tpu_custom_call.1}
  #allocation0 [shape = 'u32[]', space=smem, size = 0x4, offset = 0x4, fixed_abs, tag = 'smem constant byte address 0x4 - core index']
  #allocation1 [shape = 'u32[144,128]{1,0:T(1,128)}', space=vmem, size = 0x12000, scoped, tag = 'internal scratch']
  #allocation2 [shape = 'f32[256,1]{1,0:T(8,128)}', space=vmem, size = 0x20000, scoped, tag = 'scratch operand']
  #allocation3 [shape = 'f32[256,1]{1,0:T(8,128)}', space=vmem, size = 0x20000, scoped, tag = 'scratch operand']
  #allocation4 [shape = 'f32[256,1]{1,0:T(8,128)}', space=vmem, size = 0x20000, scoped, tag = 'scratch operand']
  %s0 = inlined_call_operand.vmem [shape: f32[256,64], index: 0, kind: input, shape index: {}]
  %s1 = inlined_call_operand.vmem [shape: f32[64,512], index: 1, kind: input, shape index: {}]
  %s2 = inlined_call_operand.vmem [shape: f32[1,512], index: 2, kind: input, shape index: {}]
  %s3 = inlined_call_operand.vmem [shape: f32[256,1], index: 3, kind: input, shape index: {}]
  %s4 = inlined_call_operand.vmem [shape: s32[256,1], index: 4, kind: input, shape index: {}]
  %s5 = inlined_call_operand.hbm [shape: f32[1,256,128], index: 5, kind: output, shape index: {}]
  %s6 = sld [smem:[#allocation0]]
  $region38: #{tpu_custom_call.1} parent=0
    _
  %s8 = ssub.s32 1, %s6
  %s9 = scalar_select 0, %s8, %s6
  $region1: #{tpu_custom_call.1} parent=0
    #allocation5 [shape = 'u8[131072]{0}', space=vmem, size = 0x20000, scoped, tag = 'output window, operand 0, single buffered']
    #allocation6 [shape = 's32[1]{0}', space=sflag, size = 0x4, scoped, tag = 'scoped memory for tpu_custom_call.1']
    %10 = vsyncpa [#allocation6], 0
    // Predicated region
    $region2: #{tpu_custom_call.1} parent=1 // pred_check
      _
    $region3: #{tpu_custom_call.1} parent=1 // pred_check_branch
      %12 = sbr.rel (0) target = $region5
    $region4: #{tpu_custom_call.1} parent=1 // pred_region
      _
    $region5: #{tpu_custom_call.1} parent=1 // pred_fallthru
      _
    // Predicated region
    $region6: #{tpu_custom_call.1} parent=1 // pred_check
      _
    $region7: #{tpu_custom_call.1} parent=1 // pred_check_branch
      %14 = sbr.rel (0) target = $region9
    $region8: #{tpu_custom_call.1} parent=1 // pred_region
      %s15 = sadd.s32 0, 0
      %s16 = smul.u32 4, %s15
      %p17 = scmp.lt.s32.totalorder %s16, 3
      %s18 = scalar_select %p17, %s16, 3
      %s19 = smul.addr %s18, 8
      %s20 = scalar_lea.vmem %s1, %s19
      %s21 = sadd.s32 0, 0
      %s22 = smul.u32 4, %s21
    $region9: #{tpu_custom_call.1} parent=1 // pred_fallthru
      _
    // Predicated region
    $region10: #{tpu_custom_call.1} parent=1 // pred_check
      _
    $region11: #{tpu_custom_call.1} parent=1 // pred_check_branch
      %24 = sbr.rel (0) target = $region13
    $region12: #{tpu_custom_call.1} parent=1 // pred_region
      %s25 = sadd.s32 0, 0
      %s26 = smul.u32 4, %s25
      %p27 = scmp.lt.s32.totalorder %s26, 3
      %s28 = scalar_select %p27, %s26, 3
      %s29 = scalar_lea.vmem %s2, %s28
      %s30 = sadd.s32 0, 0
      %s31 = smul.u32 4, %s30
    $region13: #{tpu_custom_call.1} parent=1 // pred_fallthru
      _
    // Predicated region
    $region14: #{tpu_custom_call.1} parent=1 // pred_check
      _
    $region15: #{tpu_custom_call.1} parent=1 // pred_check_branch
      %33 = sbr.rel (0) target = $region17
    $region16: #{tpu_custom_call.1} parent=1 // pred_region
      _
    $region17: #{tpu_custom_call.1} parent=1 // pred_fallthru
      _
    // Predicated region
    $region18: #{tpu_custom_call.1} parent=1 // pred_check
      _
    $region19: #{tpu_custom_call.1} parent=1 // pred_check_branch
      %35 = sbr.rel (0) target = $region21
    $region20: #{tpu_custom_call.1} parent=1 // pred_region
      _
    $region21: #{tpu_custom_call.1} parent=1 // pred_fallthru
      _
    %s36 = sadd.s32 0, 0
    %s37 = smul.u32 4, %s36
    %p38 = scmp.lt.s32.totalorder %s37, 3
    %s39 = scalar_select %p38, %s37, 3
    %s40 = smul.addr %s39, 8
    %s41 = scalar_lea.vmem %s1, %s40
    %s42 = sadd.s32 0, 0
    %s43 = smul.u32 4, %s42
    %p44 = scmp.lt.s32.totalorder %s43, 3
    %s45 = scalar_select %p44, %s43, 3
    %s46 = scalar_lea.vmem %s2, %s45
    %s47 = sadd.s32 0, 0
    %s48 = smul.u32 4, %s47
    %p49 = scmp.lt.s32.totalorder %s48, 3
    %s50 = scalar_select %p49, %s48, 3
    %s51 = smul.addr %s50, 8
    %s52 = scalar_lea.vmem %s1, %s51
    %s53 = sadd.s32 0, 0
    %s54 = smul.u32 4, %s53
    %s55 = sadd.s32 0, 0
    %s56 = smul.u32 4, %s55
    %p57 = scmp.lt.s32.totalorder %s56, 3
    %s58 = scalar_select %p57, %s56, 3
    %s59 = scalar_lea.vmem %s2, %s58
    %s60 = sadd.s32 0, 0
    %s61 = smul.u32 4, %s60
    %p62 = scmp.eq.s32.totalorder 0, 0
    // Predicated region
    $region22: #{tpu_custom_call.1} parent=1 // pred_check
      %p63 = pneg %p62
    $region23: #{tpu_custom_call.1} parent=1 // pred_check_branch
      %65 = sbr.rel (%p63) target = $region25
    $region24: #{tpu_custom_call.1} parent=1 // pred_region
      %vm66 = vcmask 7168
      %67 = vst.msk [vmem:[#allocation2] sm:$0xff] %vm66, -inf
      %68 = vst.msk [vmem:[#allocation2 + $0x8] sm:$0xff] %vm66, -inf
      %69 = vst.msk [vmem:[#allocation2 + $0x10] sm:$0xff] %vm66, -inf
      %70 = vst.msk [vmem:[#allocation2 + $0x18] sm:$0xff] %vm66, -inf
      %71 = vst.msk [vmem:[#allocation2 + $0x20] sm:$0xff] %vm66, -inf
      %72 = vst.msk [vmem:[#allocation2 + $0x28] sm:$0xff] %vm66, -inf
      %73 = vst.msk [vmem:[#allocation2 + $0x30] sm:$0xff] %vm66, -inf
      %74 = vst.msk [vmem:[#allocation2 + $0x38] sm:$0xff] %vm66, -inf
      %75 = vst.msk [vmem:[#allocation2 + $0x40] sm:$0xff] %vm66, -inf
      %76 = vst.msk [vmem:[#allocation2 + $0x48] sm:$0xff] %vm66, -inf
      %77 = vst.msk [vmem:[#allocation2 + $0x50] sm:$0xff] %vm66, -inf
      %78 = vst.msk [vmem:[#allocation2 + $0x58] sm:$0xff] %vm66, -inf
      %79 = vst.msk [vmem:[#allocation2 + $0x60] sm:$0xff] %vm66, -inf
      %80 = vst.msk [vmem:[#allocation2 + $0x68] sm:$0xff] %vm66, -inf
      %81 = vst.msk [vmem:[#allocation2 + $0x70] sm:$0xff] %vm66, -inf
      %82 = vst.msk [vmem:[#allocation2 + $0x78] sm:$0xff] %vm66, -inf
      %83 = vst.msk [vmem:[#allocation2 + $0x80] sm:$0xff] %vm66, -inf
      %84 = vst.msk [vmem:[#allocation2 + $0x88] sm:$0xff] %vm66, -inf
      %85 = vst.msk [vmem:[#allocation2 + $0x90] sm:$0xff] %vm66, -inf
      %86 = vst.msk [vmem:[#allocation2 + $0x98] sm:$0xff] %vm66, -inf
      %87 = vst.msk [vmem:[#allocation2 + $0xa0] sm:$0xff] %vm66, -inf
      %88 = vst.msk [vmem:[#allocation2 + $0xa8] sm:$0xff] %vm66, -inf
      %89 = vst.msk [vmem:[#allocation2 + $0xb0] sm:$0xff] %vm66, -inf
      %90 = vst.msk [vmem:[#allocation2 + $0xb8] sm:$0xff] %vm66, -inf
      %91 = vst.msk [vmem:[#allocation2 + $0xc0] sm:$0xff] %vm66, -inf
      %92 = vst.msk [vmem:[#allocation2 + $0xc8] sm:$0xff] %vm66, -inf
      %93 = vst.msk [vmem:[#allocation2 + $0xd0] sm:$0xff] %vm66, -inf
      %94 = vst.msk [vmem:[#allocation2 + $0xd8] sm:$0xff] %vm66, -inf
      %95 = vst.msk [vmem:[#allocation2 + $0xe0] sm:$0xff] %vm66, -inf
      %96 = vst.msk [vmem:[#allocation2 + $0xe8] sm:$0xff] %vm66, -inf
      %97 = vst.msk [vmem:[#allocation2 + $0xf0] sm:$0xff] %vm66, -inf
      %98 = vst.msk [vmem:[#allocation2 + $0xf8] sm:$0xff] %vm66, -inf
      %99 = vst.msk [vmem:[#allocation3] sm:$0xff] %vm66, 0.0
      %100 = vst.msk [vmem:[#allocation3 + $0x8] sm:$0xff] %vm66, 0.0
      %101 = vst.msk [vmem:[#allocation3 + $0x10] sm:$0xff] %vm66, 0.0
      %102 = vst.msk [vmem:[#allocation3 + $0x18] sm:$0xff] %vm66, 0.0
      %103 = vst.msk [vmem:[#allocation3 + $0x20] sm:$0xff] %vm66, 0.0
      %104 = vst.msk [vmem:[#allocation3 + $0x28] sm:$0xff] %vm66, 0.0
      %105 = vst.msk [vmem:[#allocation3 + $0x30] sm:$0xff] %vm66, 0.0
      %106 = vst.msk [vmem:[#allocation3 + $0x38] sm:$0xff] %vm66, 0.0
      %107 = vst.msk [vmem:[#allocation3 + $0x40] sm:$0xff] %vm66, 0.0
      %108 = vst.msk [vmem:[#allocation3 + $0x48] sm:$0xff] %vm66, 0.0
      %109 = vst.msk [vmem:[#allocation3 + $0x50] sm:$0xff] %vm66, 0.0
      %110 = vst.msk [vmem:[#allocation3 + $0x58] sm:$0xff] %vm66, 0.0
      %111 = vst.msk [vmem:[#allocation3 + $0x60] sm:$0xff] %vm66, 0.0
      %112 = vst.msk [vmem:[#allocation3 + $0x68] sm:$0xff] %vm66, 0.0
      %113 = vst.msk [vmem:[#allocation3 + $0x70] sm:$0xff] %vm66, 0.0
      %114 = vst.msk [vmem:[#allocation3 + $0x78] sm:$0xff] %vm66, 0.0
      %115 = vst.msk [vmem:[#allocation3 + $0x80] sm:$0xff] %vm66, 0.0
      %116 = vst.msk [vmem:[#allocation3 + $0x88] sm:$0xff] %vm66, 0.0
      %117 = vst.msk [vmem:[#allocation3 + $0x90] sm:$0xff] %vm66, 0.0
      %118 = vst.msk [vmem:[#allocation3 + $0x98] sm:$0xff] %vm66, 0.0
      %119 = vst.msk [vmem:[#allocation3 + $0xa0] sm:$0xff] %vm66, 0.0
      %120 = vst.msk [vmem:[#allocation3 + $0xa8] sm:$0xff] %vm66, 0.0
      %121 = vst.msk [vmem:[#allocation3 + $0xb0] sm:$0xff] %vm66, 0.0
      %122 = vst.msk [vmem:[#allocation3 + $0xb8] sm:$0xff] %vm66, 0.0
      %123 = vst.msk [vmem:[#allocation3 + $0xc0] sm:$0xff] %vm66, 0.0
      %124 = vst.msk [vmem:[#allocation3 + $0xc8] sm:$0xff] %vm66, 0.0
      %125 = vst.msk [vmem:[#allocation3 + $0xd0] sm:$0xff] %vm66, 0.0
      %126 = vst.msk [vmem:[#allocation3 + $0xd8] sm:$0xff] %vm66, 0.0
      %127 = vst.msk [vmem:[#allocation3 + $0xe0] sm:$0xff] %vm66, 0.0
      %128 = vst.msk [vmem:[#allocation3 + $0xe8] sm:$0xff] %vm66, 0.0
      %129 = vst.msk [vmem:[#allocation3 + $0xf0] sm:$0xff] %vm66, 0.0
      %130 = vst.msk [vmem:[#allocation3 + $0xf8] sm:$0xff] %vm66, 0.0
      %131 = vst.msk [vmem:[#allocation4] sm:$0xff] %vm66, 0.0
      %132 = vst.msk [vmem:[#allocation4 + $0x8] sm:$0xff] %vm66, 0.0
      %133 = vst.msk [vmem:[#allocation4 + $0x10] sm:$0xff] %vm66, 0.0
      %134 = vst.msk [vmem:[#allocation4 + $0x18] sm:$0xff] %vm66, 0.0
      %135 = vst.msk [vmem:[#allocation4 + $0x20] sm:$0xff] %vm66, 0.0
      %136 = vst.msk [vmem:[#allocation4 + $0x28] sm:$0xff] %vm66, 0.0
      %137 = vst.msk [vmem:[#allocation4 + $0x30] sm:$0xff] %vm66, 0.0
      %138 = vst.msk [vmem:[#allocation4 + $0x38] sm:$0xff] %vm66, 0.0
      %139 = vst.msk [vmem:[#allocation4 + $0x40] sm:$0xff] %vm66, 0.0
      %140 = vst.msk [vmem:[#allocation4 + $0x48] sm:$0xff] %vm66, 0.0
      %141 = vst.msk [vmem:[#allocation4 + $0x50] sm:$0xff] %vm66, 0.0
      %142 = vst.msk [vmem:[#allocation4 + $0x58] sm:$0xff] %vm66, 0.0
      %143 = vst.msk [vmem:[#allocation4 + $0x60] sm:$0xff] %vm66, 0.0
      %144 = vst.msk [vmem:[#allocation4 + $0x68] sm:$0xff] %vm66, 0.0
      %145 = vst.msk [vmem:[#allocation4 + $0x70] sm:$0xff] %vm66, 0.0
      %146 = vst.msk [vmem:[#allocation4 + $0x78] sm:$0xff] %vm66, 0.0
      %147 = vst.msk [vmem:[#allocation4 + $0x80] sm:$0xff] %vm66, 0.0
      %148 = vst.msk [vmem:[#allocation4 + $0x88] sm:$0xff] %vm66, 0.0
      %149 = vst.msk [vmem:[#allocation4 + $0x90] sm:$0xff] %vm66, 0.0
      %150 = vst.msk [vmem:[#allocation4 + $0x98] sm:$0xff] %vm66, 0.0
      %151 = vst.msk [vmem:[#allocation4 + $0xa0] sm:$0xff] %vm66, 0.0
      %152 = vst.msk [vmem:[#allocation4 + $0xa8] sm:$0xff] %vm66, 0.0
      %153 = vst.msk [vmem:[#allocation4 + $0xb0] sm:$0xff] %vm66, 0.0
      %154 = vst.msk [vmem:[#allocation4 + $0xb8] sm:$0xff] %vm66, 0.0
      %155 = vst.msk [vmem:[#allocation4 + $0xc0] sm:$0xff] %vm66, 0.0
      %156 = vst.msk [vmem:[#allocation4 + $0xc8] sm:$0xff] %vm66, 0.0
      %157 = vst.msk [vmem:[#allocation4 + $0xd0] sm:$0xff] %vm66, 0.0
      %158 = vst.msk [vmem:[#allocation4 + $0xd8] sm:$0xff] %vm66, 0.0
      %159 = vst.msk [vmem:[#allocation4 + $0xe0] sm:$0xff] %vm66, 0.0
      %160 = vst.msk [vmem:[#allocation4 + $0xe8] sm:$0xff] %vm66, 0.0
      %161 = vst.msk [vmem:[#allocation4 + $0xf0] sm:$0xff] %vm66, 0.0
      %162 = vst.msk [vmem:[#allocation4 + $0xf8] sm:$0xff] %vm66, 0.0
    $region25: #{tpu_custom_call.1} parent=1 // pred_fallthru
      _
    %v163 = vld [vmem:[%s0] sm:$0xff]
    %v164 = vld [vmem:[%s0 + $0x8] sm:$0xff]
    %v165 = vld [vmem:[%s0 + $0x10] sm:$0xff]
    %v166 = vld [vmem:[%s0 + $0x18] sm:$0xff]
    %v167 = vld [vmem:[%s0 + $0x20] sm:$0xff]
    %v168 = vld [vmem:[%s0 + $0x28] sm:$0xff]
    %v169 = vld [vmem:[%s0 + $0x30] sm:$0xff]
    %v170 = vld [vmem:[%s0 + $0x38] sm:$0xff]
    %v171 = vld [vmem:[%s0 + $0x40] sm:$0xff]
    %v172 = vld [vmem:[%s0 + $0x48] sm:$0xff]
    %v173 = vld [vmem:[%s0 + $0x50] sm:$0xff]
    %v174 = vld [vmem:[%s0 + $0x58] sm:$0xff]
    %v175 = vld [vmem:[%s0 + $0x60] sm:$0xff]
    %v176 = vld [vmem:[%s0 + $0x68] sm:$0xff]
    %v177 = vld [vmem:[%s0 + $0x70] sm:$0xff]
    %v178 = vld [vmem:[%s0 + $0x78] sm:$0xff]
    %v179 = vld [vmem:[%s0 + $0x80] sm:$0xff]
    %v180 = vld [vmem:[%s0 + $0x88] sm:$0xff]
    %v181 = vld [vmem:[%s0 + $0x90] sm:$0xff]
    %v182 = vld [vmem:[%s0 + $0x98] sm:$0xff]
    %v183 = vld [vmem:[%s0 + $0xa0] sm:$0xff]
    %v184 = vld [vmem:[%s0 + $0xa8] sm:$0xff]
    %v185 = vld [vmem:[%s0 + $0xb0] sm:$0xff]
    %v186 = vld [vmem:[%s0 + $0xb8] sm:$0xff]
    %v187 = vld [vmem:[%s0 + $0xc0] sm:$0xff]
    %v188 = vld [vmem:[%s0 + $0xc8] sm:$0xff]
    %v189 = vld [vmem:[%s0 + $0xd0] sm:$0xff]
    %v190 = vld [vmem:[%s0 + $0xd8] sm:$0xff]
    %v191 = vld [vmem:[%s0 + $0xe0] sm:$0xff]
    %v192 = vld [vmem:[%s0 + $0xe8] sm:$0xff]
    %v193 = vld [vmem:[%s0 + $0xf0] sm:$0xff]
    %v194 = vld [vmem:[%s0 + $0xf8] sm:$0xff]
    %v195 = vld [vmem:[%s52] sm:$0xff]
    %v196 = vld [vmem:[%s52 + $0x8] sm:$0xff]
    %v197 = vld [vmem:[%s52 + $0x10] sm:$0xff]
    %v198 = vld [vmem:[%s52 + $0x18] sm:$0xff]
    %v199 = vld [vmem:[%s52 + $0x20] sm:$0xff]
    %v200 = vld [vmem:[%s52 + $0x28] sm:$0xff]
    %v201 = vld [vmem:[%s52 + $0x30] sm:$0xff]
    %v202 = vld [vmem:[%s52 + $0x38] sm:$0xff]
    %v203 = vld [vmem:[%s52 + $0x40] sm:$0xff]
    %v204 = vld [vmem:[%s52 + $0x48] sm:$0xff]
    %v205 = vld [vmem:[%s52 + $0x50] sm:$0xff]
    %v206 = vld [vmem:[%s52 + $0x58] sm:$0xff]
    %v207 = vld [vmem:[%s52 + $0x60] sm:$0xff]
    %v208 = vld [vmem:[%s52 + $0x68] sm:$0xff]
    %v209 = vld [vmem:[%s52 + $0x70] sm:$0xff]
    %v210 = vld [vmem:[%s52 + $0x78] sm:$0xff]
    %v211 = vld [vmem:[%s52 + $0x80] sm:$0xff]
    %v212 = vld [vmem:[%s52 + $0x88] sm:$0xff]
    %v213 = vld [vmem:[%s52 + $0x90] sm:$0xff]
    %v214 = vld [vmem:[%s52 + $0x98] sm:$0xff]
    %v215 = vld [vmem:[%s52 + $0xa0] sm:$0xff]
    %v216 = vld [vmem:[%s52 + $0xa8] sm:$0xff]
    %v217 = vld [vmem:[%s52 + $0xb0] sm:$0xff]
    %v218 = vld [vmem:[%s52 + $0xb8] sm:$0xff]
    %v219 = vld [vmem:[%s52 + $0xc0] sm:$0xff]
    %v220 = vld [vmem:[%s52 + $0xc8] sm:$0xff]
    %v221 = vld [vmem:[%s52 + $0xd0] sm:$0xff]
    %v222 = vld [vmem:[%s52 + $0xd8] sm:$0xff]
    %v223 = vld [vmem:[%s52 + $0xe0] sm:$0xff]
    %v224 = vld [vmem:[%s52 + $0xe8] sm:$0xff]
    %v225 = vld [vmem:[%s52 + $0xf0] sm:$0xff]
    %v226 = vld [vmem:[%s52 + $0xf8] sm:$0xff]
    %v227 = vld [vmem:[%s59] sm:$0xf]
    %v229 = vlaneseq
    %v230 = vshrl.u32 %v229, 7
    %v231 = vsub.s32 0, %v230
    %v232 = vrot.slane %v227, %v231
    %v233 = vlaneseq
    %v234 = vshrl.u32 %v233, 7
    %v235 = vsub.s32 1, %v234
    %v236 = vrot.slane %v227, %v235
    %v237 = vlaneseq
    %v238 = vshrl.u32 %v237, 7
    %v239 = vsub.s32 2, %v238
    %v240 = vrot.slane %v227, %v239
    %v241 = vlaneseq
    %v242 = vshrl.u32 %v241, 7
    %v243 = vsub.s32 3, %v242
    %v244 = vrot.slane %v227, %v243
    %vm249 = vcmask 523264
    %v251 = vsel %vm249, %v163, 0
    %v254 = vsel %vm249, %v164, 0
    %v257 = vsel %vm249, %v165, 0
    %v260 = vsel %vm249, %v166, 0
    %v263 = vsel %vm249, %v167, 0
    %v266 = vsel %vm249, %v168, 0
    %v269 = vsel %vm249, %v169, 0
    %v272 = vsel %vm249, %v170, 0
    %v275 = vsel %vm249, %v171, 0
    %v278 = vsel %vm249, %v172, 0
    %v281 = vsel %vm249, %v173, 0
    %v284 = vsel %vm249, %v174, 0
    %v287 = vsel %vm249, %v175, 0
    %v290 = vsel %vm249, %v176, 0
    %v293 = vsel %vm249, %v177, 0
    %v296 = vsel %vm249, %v178, 0
    %v299 = vsel %vm249, %v179, 0
    %v302 = vsel %vm249, %v180, 0
    %v305 = vsel %vm249, %v181, 0
    %v308 = vsel %vm249, %v182, 0
    %v311 = vsel %vm249, %v183, 0
    %v314 = vsel %vm249, %v184, 0
    %v317 = vsel %vm249, %v185, 0
    %v320 = vsel %vm249, %v186, 0
    %v323 = vsel %vm249, %v187, 0
    %v326 = vsel %vm249, %v188, 0
    %v329 = vsel %vm249, %v189, 0
    %v332 = vsel %vm249, %v190, 0
    %v335 = vsel %vm249, %v191, 0
    %v338 = vsel %vm249, %v192, 0
    %v341 = vsel %vm249, %v193, 0
    %v344 = vsel %vm249, %v194, 0
    %346 = vmatprep.subr.mxu0 %v196
    %347 = vmatpush1.msra.mxu0 %v195
    %348 = vmatprep.subr.mxu0 %v200
    %349 = vmatpush1.msra.mxu0 %v199
    %350 = vmatprep.subr.mxu0 %v204
    %351 = vmatpush1.msra.mxu0 %v203
    %352 = vmatprep.subr.mxu0 %v208
    %353 = vmatpush1.msra.mxu0 %v207
    %354 = vmatprep.subr.mxu0 %v212
    %355 = vmatpush1.msra.mxu0 %v211
    %356 = vmatprep.subr.mxu0 %v216
    %357 = vmatpush1.msra.mxu0 %v215
    %358 = vmatprep.subr.mxu0 %v220
    %359 = vmatpush1.msra.mxu0 %v219
    %360 = vmatprep.subr.mxu0 %v224
    %361 = vmatpush1.msra.mxu0 %v223
    %362 = vmatprep.subr.mxu0 0.0
    %363 = vmatpush1.msra.mxu0 0.0
    %364 = vmatprep.subr.mxu0 0.0
    %365 = vmatpush1.msra.mxu0 0.0
    %366 = vmatprep.subr.mxu0 0.0
    %367 = vmatpush1.msra.mxu0 0.0
    %368 = vmatprep.subr.mxu0 0.0
    %369 = vmatpush1.msra.mxu0 0.0
    %370 = vmatprep.subr.mxu0 0.0
    %371 = vmatpush1.msra.mxu0 0.0
    %372 = vmatprep.subr.mxu0 0.0
    %373 = vmatpush1.msra.mxu0 0.0
    %374 = vmatprep.subr.mxu0 0.0
    %375 = vmatpush1.msra.mxu0 0.0
    %376 = vmatprep.subr.mxu0 0.0
    %377 = vmatpush1.msra.mxu0 0.0
    %378 = vmatprep.subr.mxu0 0.0
    %379 = vmatpush1.msra.mxu0 0.0
    %380 = vmatprep.subr.mxu0 0.0
    %381 = vmatpush1.msra.mxu0 0.0
    %382 = vmatprep.subr.mxu0 0.0
    %383 = vmatpush1.msra.mxu0 0.0
    %384 = vmatprep.subr.mxu0 0.0
    %385 = vmatpush1.msra.mxu0 0.0
    %386 = vmatprep.subr.mxu0 0.0
    %387 = vmatpush1.msra.mxu0 0.0
    %388 = vmatprep.subr.mxu0 0.0
    %389 = vmatpush1.msra.mxu0 0.0
    %390 = vmatprep.subr.mxu0 0.0
    %391 = vmatpush1.msra.mxu0 0.0
    %392 = vmatprep.subr.mxu0 0.0
    %393 = vmatpush1.msra.mxu0 0.0
    %394 = vmatprep.subr.mxu0 0.0
    %395 = vmatpush1.msra.mxu0 0.0
    %396 = vmatprep.subr.mxu0 0.0
    %397 = vmatpush1.msra.mxu0 0.0
    %398 = vmatprep.subr.mxu0 0.0
    %399 = vmatpush1.msra.mxu0 0.0
    %400 = vmatprep.subr.mxu0 0.0
    %401 = vmatpush1.msra.mxu0 0.0
    %402 = vmatprep.subr.mxu0 0.0
    %403 = vmatpush1.msra.mxu0 0.0
    %404 = vmatprep.subr.mxu0 0.0
    %405 = vmatpush1.msra.mxu0 0.0
    %406 = vmatprep.subr.mxu0 0.0
    %407 = vmatpush1.msra.mxu0 0.0
    %408 = vmatprep.subr.mxu0 0.0
    %409 = vmatpush1.msra.mxu0 0.0
    %410 = vmatprep.mubr.f32.mxu0 0.0
    %411 = vmatmul.mubr.f32.gmra.mrb[0].mxu0 %v251
    %v412 = vpop.f32.mrb[0].mxu0
    %v413 = vadd.f32 %v232, %v412
    %v414 = vpop.f32.mrb[0].mxu0
    %v415 = vadd.f32 %v236, %v414
    %416 = vmatprep.mubr.f32.mxu0 0.0
    %417 = vmatmul.mubr.f32.gmra.mrb[0].mxu0 %v254
    %v418 = vpop.f32.mrb[0].mxu0
    %v419 = vadd.f32 %v232, %v418
    %v420 = vpop.f32.mrb[0].mxu0
    %v421 = vadd.f32 %v236, %v420
    %422 = vmatprep.mubr.f32.mxu0 0.0
    %423 = vmatmul.mubr.f32.gmra.mrb[0].mxu0 %v257
    %v424 = vpop.f32.mrb[0].mxu0
    %v425 = vadd.f32 %v232, %v424
    %v426 = vpop.f32.mrb[0].mxu0
    %v427 = vadd.f32 %v236, %v426
    %428 = vmatprep.mubr.f32.mxu0 0.0
    %429 = vmatmul.mubr.f32.gmra.mrb[0].mxu0 %v260
    %v430 = vpop.f32.mrb[0].mxu0
    %v431 = vadd.f32 %v232, %v430
    %v432 = vpop.f32.mrb[0].mxu0
    %v433 = vadd.f32 %v236, %v432
    %434 = vmatprep.mubr.f32.mxu0 0.0
    %435 = vmatmul.mubr.f32.gmra.mrb[0].mxu0 %v263
    %v436 = vpop.f32.mrb[0].mxu0
    %v437 = vadd.f32 %v232, %v436
    %v438 = vpop.f32.mrb[0].mxu0
    %v439 = vadd.f32 %v236, %v438
    %440 = vmatprep.mubr.f32.mxu0 0.0
    %441 = vmatmul.mubr.f32.gmra.mrb[0].mxu0 %v266
    %v442 = vpop.f32.mrb[0].mxu0
    %v443 = vadd.f32 %v232, %v442
    %v444 = vpop.f32.mrb[0].mxu0
    %v445 = vadd.f32 %v236, %v444
    %446 = vmatprep.mubr.f32.mxu0 0.0
    %447 = vmatmul.mubr.f32.gmra.mrb[0].mxu0 %v269
    %v448 = vpop.f32.mrb[0].mxu0
    %v449 = vadd.f32 %v232, %v448
    %v450 = vpop.f32.mrb[0].mxu0
    %v451 = vadd.f32 %v236, %v450
    %452 = vmatprep.mubr.f32.mxu0 0.0
    %453 = vmatmul.mubr.f32.gmra.mrb[0].mxu0 %v272
    %v454 = vpop.f32.mrb[0].mxu0
    %v455 = vadd.f32 %v232, %v454
    %v456 = vpop.f32.mrb[0].mxu0
    %v457 = vadd.f32 %v236, %v456
    %458 = vmatprep.mubr.f32.mxu0 0.0
    %459 = vmatmul.mubr.f32.gmra.mrb[0].mxu0 %v275
    %v460 = vpop.f32.mrb[0].mxu0
    %v461 = vadd.f32 %v232, %v460
    %v462 = vpop.f32.mrb[0].mxu0
    %v463 = vadd.f32 %v236, %v462
    %464 = vmatprep.mubr.f32.mxu0 0.0
    %465 = vmatmul.mubr.f32.gmra.mrb[0].mxu0 %v278
    %v466 = vpop.f32.mrb[0].mxu0
    %v467 = vadd.f32 %v232, %v466
    %v468 = vpop.f32.mrb[0].mxu0
    %v469 = vadd.f32 %v236, %v468
    %470 = vmatprep.mubr.f32.mxu0 0.0
    %471 = vmatmul.mubr.f32.gmra.mrb[0].mxu0 %v281
    %v472 = vpop.f32.mrb[0].mxu0
    %v473 = vadd.f32 %v232, %v472
    %v474 = vpop.f32.mrb[0].mxu0
    %v475 = vadd.f32 %v236, %v474
    %476 = vmatprep.mubr.f32.mxu0 0.0
    %477 = vmatmul.mubr.f32.gmra.mrb[0].mxu0 %v284
    %v478 = vpop.f32.mrb[0].mxu0
    %v479 = vadd.f32 %v232, %v478
    %v480 = vpop.f32.mrb[0].mxu0
    %v481 = vadd.f32 %v236, %v480
    %482 = vmatprep.mubr.f32.mxu0 0.0
    %483 = vmatmul.mubr.f32.gmra.mrb[0].mxu0 %v287
    %v484 = vpop.f32.mrb[0].mxu0
    %v485 = vadd.f32 %v232, %v484
    %v486 = vpop.f32.mrb[0].mxu0
    %v487 = vadd.f32 %v236, %v486
    %488 = vmatprep.mubr.f32.mxu0 0.0
    %489 = vmatmul.mubr.f32.gmra.mrb[0].mxu0 %v290
    %v490 = vpop.f32.mrb[0].mxu0
    %v491 = vadd.f32 %v232, %v490
    %v492 = vpop.f32.mrb[0].mxu0
    %v493 = vadd.f32 %v236, %v492
    %494 = vmatprep.mubr.f32.mxu0 0.0
    %495 = vmatmul.mubr.f32.gmra.mrb[0].mxu0 %v293
    %v496 = vpop.f32.mrb[0].mxu0
    %v497 = vadd.f32 %v232, %v496
    %v498 = vpop.f32.mrb[0].mxu0
    %v499 = vadd.f32 %v236, %v498
    %500 = vmatprep.mubr.f32.mxu0 0.0
    %501 = vmatmul.mubr.f32.gmra.mrb[0].mxu0 %v296
    %v502 = vpop.f32.mrb[0].mxu0
    %v503 = vadd.f32 %v232, %v502
    %v504 = vpop.f32.mrb[0].mxu0
    %v505 = vadd.f32 %v236, %v504
    %506 = vmatprep.mubr.f32.mxu0 0.0
    %507 = vmatmul.mubr.f32.gmra.mrb[0].mxu0 %v299
    %v508 = vpop.f32.mrb[0].mxu0
    %v509 = vadd.f32 %v232, %v508
    %v510 = vpop.f32.mrb[0].mxu0
    %v511 = vadd.f32 %v236, %v510
    %512 = vmatprep.mubr.f32.mxu0 0.0
    %513 = vmatmul.mubr.f32.gmra.mrb[0].mxu0 %v302
    %v514 = vpop.f32.mrb[0].mxu0
    %v515 = vadd.f32 %v232, %v514
    %v516 = vpop.f32.mrb[0].mxu0
    %v517 = vadd.f32 %v236, %v516
    %518 = vmatprep.mubr.f32.mxu0 0.0
    %519 = vmatmul.mubr.f32.gmra.mrb[0].mxu0 %v305
    %v520 = vpop.f32.mrb[0].mxu0
    %v521 = vadd.f32 %v232, %v520
    %v522 = vpop.f32.mrb[0].mxu0
    %v523 = vadd.f32 %v236, %v522
    %524 = vmatprep.mubr.f32.mxu0 0.0
    %525 = vmatmul.mubr.f32.gmra.mrb[0].mxu0 %v308
    %v526 = vpop.f32.mrb[0].mxu0
    %v527 = vadd.f32 %v232, %v526
    %v528 = vpop.f32.mrb[0].mxu0
    %v529 = vadd.f32 %v236, %v528
    %530 = vmatprep.mubr.f32.mxu0 0.0
    %531 = vmatmul.mubr.f32.gmra.mrb[0].mxu0 %v311
    %v532 = vpop.f32.mrb[0].mxu0
    %v533 = vadd.f32 %v232, %v532
    %v534 = vpop.f32.mrb[0].mxu0
    %v535 = vadd.f32 %v236, %v534
    %536 = vmatprep.mubr.f32.mxu0 0.0
    %537 = vmatmul.mubr.f32.gmra.mrb[0].mxu0 %v314
    %v538 = vpop.f32.mrb[0].mxu0
    %v539 = vadd.f32 %v232, %v538
    %v540 = vpop.f32.mrb[0].mxu0
    %v541 = vadd.f32 %v236, %v540
    %542 = vmatprep.mubr.f32.mxu0 0.0
    %543 = vmatmul.mubr.f32.gmra.mrb[0].mxu0 %v317
    %v544 = vpop.f32.mrb[0].mxu0
    %v545 = vadd.f32 %v232, %v544
    %v546 = vpop.f32.mrb[0].mxu0
    %v547 = vadd.f32 %v236, %v546
    %548 = vmatprep.mubr.f32.mxu0 0.0
    %549 = vmatmul.mubr.f32.gmra.mrb[0].mxu0 %v320
    %v550 = vpop.f32.mrb[0].mxu0
    %v551 = vadd.f32 %v232, %v550
    %v552 = vpop.f32.mrb[0].mxu0
    %v553 = vadd.f32 %v236, %v552
    %554 = vmatprep.mubr.f32.mxu0 0.0
    %555 = vmatmul.mubr.f32.gmra.mrb[0].mxu0 %v323
    %v556 = vpop.f32.mrb[0].mxu0
    %v557 = vadd.f32 %v232, %v556
    %v558 = vpop.f32.mrb[0].mxu0
    %v559 = vadd.f32 %v236, %v558
    %560 = vmatprep.mubr.f32.mxu0 0.0
    %561 = vmatmul.mubr.f32.gmra.mrb[0].mxu0 %v326
    %v562 = vpop.f32.mrb[0].mxu0
    %v563 = vadd.f32 %v232, %v562
    %v564 = vpop.f32.mrb[0].mxu0
    %v565 = vadd.f32 %v236, %v564
    %566 = vmatprep.mubr.f32.mxu0 0.0
    %567 = vmatmul.mubr.f32.gmra.mrb[0].mxu0 %v329
    %v568 = vpop.f32.mrb[0].mxu0
    %v569 = vadd.f32 %v232, %v568
    %v570 = vpop.f32.mrb[0].mxu0
    %v571 = vadd.f32 %v236, %v570
    %572 = vmatprep.mubr.f32.mxu0 0.0
    %573 = vmatmul.mubr.f32.gmra.mrb[0].mxu0 %v332
    %v574 = vpop.f32.mrb[0].mxu0
    %v575 = vadd.f32 %v232, %v574
    %v576 = vpop.f32.mrb[0].mxu0
    %v577 = vadd.f32 %v236, %v576
    %578 = vmatprep.mubr.f32.mxu0 0.0
    %579 = vmatmul.mubr.f32.gmra.mrb[0].mxu0 %v335
    %v580 = vpop.f32.mrb[0].mxu0
    %v581 = vadd.f32 %v232, %v580
    %v582 = vpop.f32.mrb[0].mxu0
    %v583 = vadd.f32 %v236, %v582
    %584 = vmatprep.mubr.f32.mxu0 0.0
    %585 = vmatmul.mubr.f32.gmra.mrb[0].mxu0 %v338
    %v586 = vpop.f32.mrb[0].mxu0
    %v587 = vadd.f32 %v232, %v586
    %v588 = vpop.f32.mrb[0].mxu0
    %v589 = vadd.f32 %v236, %v588
    %590 = vmatprep.mubr.f32.mxu0 0.0
    %591 = vmatmul.mubr.f32.gmra.mrb[0].mxu0 %v341
    %v592 = vpop.f32.mrb[0].mxu0
    %v593 = vadd.f32 %v232, %v592
    %v594 = vpop.f32.mrb[0].mxu0
    %v595 = vadd.f32 %v236, %v594
    %596 = vmatprep.mubr.f32.mxu0 0.0
    %597 = vmatmul.mubr.f32.gmra.mrb[0].mxu0 %v344
    %v598 = vpop.f32.mrb[0].mxu0
    %v599 = vadd.f32 %v232, %v598
    %v600 = vpop.f32.mrb[0].mxu0
    %v601 = vadd.f32 %v236, %v600
    %602 = vdwg.mxu0
    %603 = vmatprep.subr.mxu0 %v198
    %604 = vmatpush1.msra.mxu0 %v197
    %605 = vmatprep.subr.mxu0 %v202
    %606 = vmatpush1.msra.mxu0 %v201
    %607 = vmatprep.subr.mxu0 %v206
    %608 = vmatpush1.msra.mxu0 %v205
    %609 = vmatprep.subr.mxu0 %v210
    %610 = vmatpush1.msra.mxu0 %v209
    %611 = vmatprep.subr.mxu0 %v214
    %612 = vmatpush1.msra.mxu0 %v213
    %613 = vmatprep.subr.mxu0 %v218
    %614 = vmatpush1.msra.mxu0 %v217
    %615 = vmatprep.subr.mxu0 %v222
    %616 = vmatpush1.msra.mxu0 %v221
    %617 = vmatprep.subr.mxu0 %v226
    %618 = vmatpush1.msra.mxu0 %v225
    %619 = vmatprep.subr.mxu0 0.0
    %620 = vmatpush1.msra.mxu0 0.0
    %621 = vmatprep.subr.mxu0 0.0
    %622 = vmatpush1.msra.mxu0 0.0
    %623 = vmatprep.subr.mxu0 0.0
    %624 = vmatpush1.msra.mxu0 0.0
    %625 = vmatprep.subr.mxu0 0.0
    %626 = vmatpush1.msra.mxu0 0.0
    %627 = vmatprep.subr.mxu0 0.0
    %628 = vmatpush1.msra.mxu0 0.0
    %629 = vmatprep.subr.mxu0 0.0
    %630 = vmatpush1.msra.mxu0 0.0
    %631 = vmatprep.subr.mxu0 0.0
    %632 = vmatpush1.msra.mxu0 0.0
    %633 = vmatprep.subr.mxu0 0.0
    %634 = vmatpush1.msra.mxu0 0.0
    %635 = vmatprep.subr.mxu0 0.0
    %636 = vmatpush1.msra.mxu0 0.0
    %637 = vmatprep.subr.mxu0 0.0
    %638 = vmatpush1.msra.mxu0 0.0
    %639 = vmatprep.subr.mxu0 0.0
    %640 = vmatpush1.msra.mxu0 0.0
    %641 = vmatprep.subr.mxu0 0.0
    %642 = vmatpush1.msra.mxu0 0.0
    %643 = vmatprep.subr.mxu0 0.0
    %644 = vmatpush1.msra.mxu0 0.0
    %645 = vmatprep.subr.mxu0 0.0
    %646 = vmatpush1.msra.mxu0 0.0
    %647 = vmatprep.subr.mxu0 0.0
    %648 = vmatpush1.msra.mxu0 0.0
    %649 = vmatprep.subr.mxu0 0.0
    %650 = vmatpush1.msra.mxu0 0.0
    %651 = vmatprep.subr.mxu0 0.0
    %652 = vmatpush1.msra.mxu0 0.0
    %653 = vmatprep.subr.mxu0 0.0
    %654 = vmatpush1.msra.mxu0 0.0
    %655 = vmatprep.subr.mxu0 0.0
    %656 = vmatpush1.msra.mxu0 0.0
    %657 = vmatprep.subr.mxu0 0.0
    %658 = vmatpush1.msra.mxu0 0.0
    %659 = vmatprep.subr.mxu0 0.0
    %660 = vmatpush1.msra.mxu0 0.0
    %661 = vmatprep.subr.mxu0 0.0
    %662 = vmatpush1.msra.mxu0 0.0
    %663 = vmatprep.subr.mxu0 0.0
    %664 = vmatpush1.msra.mxu0 0.0
    %665 = vmatprep.subr.mxu0 0.0
    %666 = vmatpush1.msra.mxu0 0.0
    %667 = vmatprep.mubr.f32.mxu0 0.0
    %668 = vmatmul.mubr.f32.gmra.mrb[0].mxu0 %v251
    %v669 = vpop.f32.mrb[0].mxu0
    %v670 = vadd.f32 %v240, %v669
    %v671 = vpop.f32.mrb[0].mxu0
    %v672 = vadd.f32 %v244, %v671
    %673 = vmatprep.mubr.f32.mxu0 0.0
    %674 = vmatmul.mubr.f32.gmra.mrb[0].mxu0 %v254
    %v675 = vpop.f32.mrb[0].mxu0
    %v676 = vadd.f32 %v240, %v675
    %v677 = vpop.f32.mrb[0].mxu0
    %v678 = vadd.f32 %v244, %v677
    %679 = vmatprep.mubr.f32.mxu0 0.0
    %680 = vmatmul.mubr.f32.gmra.mrb[0].mxu0 %v257
    %v681 = vpop.f32.mrb[0].mxu0
    %v682 = vadd.f32 %v240, %v681
    %v683 = vpop.f32.mrb[0].mxu0
    %v684 = vadd.f32 %v244, %v683
    %685 = vmatprep.mubr.f32.mxu0 0.0
    %686 = vmatmul.mubr.f32.gmra.mrb[0].mxu0 %v260
    %v687 = vpop.f32.mrb[0].mxu0
    %v688 = vadd.f32 %v240, %v687
    %v689 = vpop.f32.mrb[0].mxu0
    %v690 = vadd.f32 %v244, %v689
    %691 = vmatprep.mubr.f32.mxu0 0.0
    %692 = vmatmul.mubr.f32.gmra.mrb[0].mxu0 %v263
    %v693 = vpop.f32.mrb[0].mxu0
    %v694 = vadd.f32 %v240, %v693
    %v695 = vpop.f32.mrb[0].mxu0
    %v696 = vadd.f32 %v244, %v695
    %697 = vmatprep.mubr.f32.mxu0 0.0
    %698 = vmatmul.mubr.f32.gmra.mrb[0].mxu0 %v266
    %v699 = vpop.f32.mrb[0].mxu0
    %v700 = vadd.f32 %v240, %v699
    %v701 = vpop.f32.mrb[0].mxu0
    %v702 = vadd.f32 %v244, %v701
    %703 = vmatprep.mubr.f32.mxu0 0.0
    %704 = vmatmul.mubr.f32.gmra.mrb[0].mxu0 %v269
    %v705 = vpop.f32.mrb[0].mxu0
    %v706 = vadd.f32 %v240, %v705
    %v707 = vpop.f32.mrb[0].mxu0
    %v708 = vadd.f32 %v244, %v707
    %709 = vmatprep.mubr.f32.mxu0 0.0
    %710 = vmatmul.mubr.f32.gmra.mrb[0].mxu0 %v272
    %v711 = vpop.f32.mrb[0].mxu0
    %v712 = vadd.f32 %v240, %v711
    %v713 = vpop.f32.mrb[0].mxu0
    %v714 = vadd.f32 %v244, %v713
    %715 = vmatprep.mubr.f32.mxu0 0.0
    %716 = vmatmul.mubr.f32.gmra.mrb[0].mxu0 %v275
    %v717 = vpop.f32.mrb[0].mxu0
    %v718 = vadd.f32 %v240, %v717
    %v719 = vpop.f32.mrb[0].mxu0
    %v720 = vadd.f32 %v244, %v719
    %721 = vmatprep.mubr.f32.mxu0 0.0
    %722 = vmatmul.mubr.f32.gmra.mrb[0].mxu0 %v278
    %v723 = vpop.f32.mrb[0].mxu0
    %v724 = vadd.f32 %v240, %v723
    %v725 = vpop.f32.mrb[0].mxu0
    %v726 = vadd.f32 %v244, %v725
    %727 = vmatprep.mubr.f32.mxu0 0.0
    %728 = vmatmul.mubr.f32.gmra.mrb[0].mxu0 %v281
    %v729 = vpop.f32.mrb[0].mxu0
    %v730 = vadd.f32 %v240, %v729
    %v731 = vpop.f32.mrb[0].mxu0
    %v732 = vadd.f32 %v244, %v731
    %733 = vmatprep.mubr.f32.mxu0 0.0
    %734 = vmatmul.mubr.f32.gmra.mrb[0].mxu0 %v284
    %v735 = vpop.f32.mrb[0].mxu0
    %v736 = vadd.f32 %v240, %v735
    %v737 = vpop.f32.mrb[0].mxu0
    %v738 = vadd.f32 %v244, %v737
    %739 = vmatprep.mubr.f32.mxu0 0.0
    %740 = vmatmul.mubr.f32.gmra.mrb[0].mxu0 %v287
    %v741 = vpop.f32.mrb[0].mxu0
    %v742 = vadd.f32 %v240, %v741
    %v743 = vpop.f32.mrb[0].mxu0
    %v744 = vadd.f32 %v244, %v743
    %745 = vmatprep.mubr.f32.mxu0 0.0
    %746 = vmatmul.mubr.f32.gmra.mrb[0].mxu0 %v290
    %v747 = vpop.f32.mrb[0].mxu0
    %v748 = vadd.f32 %v240, %v747
    %v749 = vpop.f32.mrb[0].mxu0
    %v750 = vadd.f32 %v244, %v749
    %751 = vmatprep.mubr.f32.mxu0 0.0
    %752 = vmatmul.mubr.f32.gmra.mrb[0].mxu0 %v293
    %v753 = vpop.f32.mrb[0].mxu0
    %v754 = vadd.f32 %v240, %v753
    %v755 = vpop.f32.mrb[0].mxu0
    %v756 = vadd.f32 %v244, %v755
    %757 = vmatprep.mubr.f32.mxu0 0.0
    %758 = vmatmul.mubr.f32.gmra.mrb[0].mxu0 %v296
    %v759 = vpop.f32.mrb[0].mxu0
    %v760 = vadd.f32 %v240, %v759
    %v761 = vpop.f32.mrb[0].mxu0
    %v762 = vadd.f32 %v244, %v761
    %763 = vmatprep.mubr.f32.mxu0 0.0
    %764 = vmatmul.mubr.f32.gmra.mrb[0].mxu0 %v299
    %v765 = vpop.f32.mrb[0].mxu0
    %v766 = vadd.f32 %v240, %v765
    %v767 = vpop.f32.mrb[0].mxu0
    %v768 = vadd.f32 %v244, %v767
    %769 = vmatprep.mubr.f32.mxu0 0.0
    %770 = vmatmul.mubr.f32.gmra.mrb[0].mxu0 %v302
    %v771 = vpop.f32.mrb[0].mxu0
    %v772 = vadd.f32 %v240, %v771
    %v773 = vpop.f32.mrb[0].mxu0
    %v774 = vadd.f32 %v244, %v773
    %775 = vmatprep.mubr.f32.mxu0 0.0
    %776 = vmatmul.mubr.f32.gmra.mrb[0].mxu0 %v305
    %v777 = vpop.f32.mrb[0].mxu0
    %v778 = vadd.f32 %v240, %v777
    %v779 = vpop.f32.mrb[0].mxu0
    %v780 = vadd.f32 %v244, %v779
    %781 = vmatprep.mubr.f32.mxu0 0.0
    %782 = vmatmul.mubr.f32.gmra.mrb[0].mxu0 %v308
    %v783 = vpop.f32.mrb[0].mxu0
    %v784 = vadd.f32 %v240, %v783
    %v785 = vpop.f32.mrb[0].mxu0
    %v786 = vadd.f32 %v244, %v785
    %787 = vmatprep.mubr.f32.mxu0 0.0
    %788 = vmatmul.mubr.f32.gmra.mrb[0].mxu0 %v311
    %v789 = vpop.f32.mrb[0].mxu0
    %v790 = vadd.f32 %v240, %v789
    %v791 = vpop.f32.mrb[0].mxu0
    %v792 = vadd.f32 %v244, %v791
    %793 = vmatprep.mubr.f32.mxu0 0.0
    %794 = vmatmul.mubr.f32.gmra.mrb[0].mxu0 %v314
    %v795 = vpop.f32.mrb[0].mxu0
    %v796 = vadd.f32 %v240, %v795
    %v797 = vpop.f32.mrb[0].mxu0
    %v798 = vadd.f32 %v244, %v797
    %799 = vmatprep.mubr.f32.mxu0 0.0
    %800 = vmatmul.mubr.f32.gmra.mrb[0].mxu0 %v317
    %v801 = vpop.f32.mrb[0].mxu0
    %v802 = vadd.f32 %v240, %v801
    %v803 = vpop.f32.mrb[0].mxu0
    %v804 = vadd.f32 %v244, %v803
    %805 = vmatprep.mubr.f32.mxu0 0.0
    %806 = vmatmul.mubr.f32.gmra.mrb[0].mxu0 %v320
    %v807 = vpop.f32.mrb[0].mxu0
    %v808 = vadd.f32 %v240, %v807
    %v809 = vpop.f32.mrb[0].mxu0
    %v810 = vadd.f32 %v244, %v809
    %811 = vmatprep.mubr.f32.mxu0 0.0
    %812 = vmatmul.mubr.f32.gmra.mrb[0].mxu0 %v323
    %v813 = vpop.f32.mrb[0].mxu0
    %v814 = vadd.f32 %v240, %v813
    %v815 = vpop.f32.mrb[0].mxu0
    %v816 = vadd.f32 %v244, %v815
    %817 = vmatprep.mubr.f32.mxu0 0.0
    %818 = vmatmul.mubr.f32.gmra.mrb[0].mxu0 %v326
    %v819 = vpop.f32.mrb[0].mxu0
    %v820 = vadd.f32 %v240, %v819
    %v821 = vpop.f32.mrb[0].mxu0
    %v822 = vadd.f32 %v244, %v821
    %823 = vmatprep.mubr.f32.mxu0 0.0
    %824 = vmatmul.mubr.f32.gmra.mrb[0].mxu0 %v329
    %v825 = vpop.f32.mrb[0].mxu0
    %v826 = vadd.f32 %v240, %v825
    %v827 = vpop.f32.mrb[0].mxu0
    %v828 = vadd.f32 %v244, %v827
    %829 = vmatprep.mubr.f32.mxu0 0.0
    %830 = vmatmul.mubr.f32.gmra.mrb[0].mxu0 %v332
    %v831 = vpop.f32.mrb[0].mxu0
    %v832 = vadd.f32 %v240, %v831
    %v833 = vpop.f32.mrb[0].mxu0
    %v834 = vadd.f32 %v244, %v833
    %835 = vmatprep.mubr.f32.mxu0 0.0
    %836 = vmatmul.mubr.f32.gmra.mrb[0].mxu0 %v335
    %v837 = vpop.f32.mrb[0].mxu0
    %v838 = vadd.f32 %v240, %v837
    %v839 = vpop.f32.mrb[0].mxu0
    %v840 = vadd.f32 %v244, %v839
    %841 = vmatprep.mubr.f32.mxu0 0.0
    %842 = vmatmul.mubr.f32.gmra.mrb[0].mxu0 %v338
    %v843 = vpop.f32.mrb[0].mxu0
    %v844 = vadd.f32 %v240, %v843
    %v845 = vpop.f32.mrb[0].mxu0
    %v846 = vadd.f32 %v244, %v845
    %847 = vmatprep.mubr.f32.mxu0 0.0
    %848 = vmatmul.mubr.f32.gmra.mrb[0].mxu0 %v341
    %v849 = vpop.f32.mrb[0].mxu0
    %v850 = vadd.f32 %v240, %v849
    %v851 = vpop.f32.mrb[0].mxu0
    %v852 = vadd.f32 %v244, %v851
    %853 = vmatprep.mubr.f32.mxu0 0.0
    %854 = vmatmul.mubr.f32.gmra.mrb[0].mxu0 %v344
    %v855 = vpop.f32.mrb[0].mxu0
    %v856 = vadd.f32 %v240, %v855
    %v857 = vpop.f32.mrb[0].mxu0
    %v858 = vadd.f32 %v244, %v857
    %859 = vdwg.mxu0
    %v860 = vld [vmem:[%s3] sm:$0xff]
    %v861 = vld [vmem:[%s3 + $0x8] sm:$0xff]
    %v862 = vld [vmem:[%s3 + $0x10] sm:$0xff]
    %v863 = vld [vmem:[%s3 + $0x18] sm:$0xff]
    %v864 = vld [vmem:[%s3 + $0x20] sm:$0xff]
    %v865 = vld [vmem:[%s3 + $0x28] sm:$0xff]
    %v866 = vld [vmem:[%s3 + $0x30] sm:$0xff]
    %v867 = vld [vmem:[%s3 + $0x38] sm:$0xff]
    %v868 = vld [vmem:[%s3 + $0x40] sm:$0xff]
    %v869 = vld [vmem:[%s3 + $0x48] sm:$0xff]
    %v870 = vld [vmem:[%s3 + $0x50] sm:$0xff]
    %v871 = vld [vmem:[%s3 + $0x58] sm:$0xff]
    %v872 = vld [vmem:[%s3 + $0x60] sm:$0xff]
    %v873 = vld [vmem:[%s3 + $0x68] sm:$0xff]
    %v874 = vld [vmem:[%s3 + $0x70] sm:$0xff]
    %v875 = vld [vmem:[%s3 + $0x78] sm:$0xff]
    %v876 = vld [vmem:[%s3 + $0x80] sm:$0xff]
    %v877 = vld [vmem:[%s3 + $0x88] sm:$0xff]
    %v878 = vld [vmem:[%s3 + $0x90] sm:$0xff]
    %v879 = vld [vmem:[%s3 + $0x98] sm:$0xff]
    %v880 = vld [vmem:[%s3 + $0xa0] sm:$0xff]
    %v881 = vld [vmem:[%s3 + $0xa8] sm:$0xff]
    %v882 = vld [vmem:[%s3 + $0xb0] sm:$0xff]
    %v883 = vld [vmem:[%s3 + $0xb8] sm:$0xff]
    %v884 = vld [vmem:[%s3 + $0xc0] sm:$0xff]
    %v885 = vld [vmem:[%s3 + $0xc8] sm:$0xff]
    %v886 = vld [vmem:[%s3 + $0xd0] sm:$0xff]
    %v887 = vld [vmem:[%s3 + $0xd8] sm:$0xff]
    %v888 = vld [vmem:[%s3 + $0xe0] sm:$0xff]
    %v889 = vld [vmem:[%s3 + $0xe8] sm:$0xff]
    %v890 = vld [vmem:[%s3 + $0xf0] sm:$0xff]
    %v891 = vld [vmem:[%s3 + $0xf8] sm:$0xff]
    %v892 = vld [vmem:[%s4] sm:$0xff]
    %v893 = vld [vmem:[%s4 + $0x8] sm:$0xff]
    %v894 = vld [vmem:[%s4 + $0x10] sm:$0xff]
    %v895 = vld [vmem:[%s4 + $0x18] sm:$0xff]
    %v896 = vld [vmem:[%s4 + $0x20] sm:$0xff]
    %v897 = vld [vmem:[%s4 + $0x28] sm:$0xff]
    %v898 = vld [vmem:[%s4 + $0x30] sm:$0xff]
    %v899 = vld [vmem:[%s4 + $0x38] sm:$0xff]
    %v900 = vld [vmem:[%s4 + $0x40] sm:$0xff]
    %v901 = vld [vmem:[%s4 + $0x48] sm:$0xff]
    %v902 = vld [vmem:[%s4 + $0x50] sm:$0xff]
    %v903 = vld [vmem:[%s4 + $0x58] sm:$0xff]
    %v904 = vld [vmem:[%s4 + $0x60] sm:$0xff]
    %v905 = vld [vmem:[%s4 + $0x68] sm:$0xff]
    %v906 = vld [vmem:[%s4 + $0x70] sm:$0xff]
    %v907 = vld [vmem:[%s4 + $0x78] sm:$0xff]
    %v908 = vld [vmem:[%s4 + $0x80] sm:$0xff]
    %v909 = vld [vmem:[%s4 + $0x88] sm:$0xff]
    %v910 = vld [vmem:[%s4 + $0x90] sm:$0xff]
    %v911 = vld [vmem:[%s4 + $0x98] sm:$0xff]
    %v912 = vld [vmem:[%s4 + $0xa0] sm:$0xff]
    %v913 = vld [vmem:[%s4 + $0xa8] sm:$0xff]
    %v914 = vld [vmem:[%s4 + $0xb0] sm:$0xff]
    %v915 = vld [vmem:[%s4 + $0xb8] sm:$0xff]
    %v916 = vld [vmem:[%s4 + $0xc0] sm:$0xff]
    %v917 = vld [vmem:[%s4 + $0xc8] sm:$0xff]
    %v918 = vld [vmem:[%s4 + $0xd0] sm:$0xff]
    %v919 = vld [vmem:[%s4 + $0xd8] sm:$0xff]
    %v920 = vld [vmem:[%s4 + $0xe0] sm:$0xff]
    %v921 = vld [vmem:[%s4 + $0xe8] sm:$0xff]
    %v922 = vld [vmem:[%s4 + $0xf0] sm:$0xff]
    %v923 = vld [vmem:[%s4 + $0xf8] sm:$0xff]
    %v924 = vld [vmem:[#allocation2] sm:$0xff]
    %v925 = vld [vmem:[#allocation2 + $0x8] sm:$0xff]
    %v926 = vld [vmem:[#allocation2 + $0x10] sm:$0xff]
    %v927 = vld [vmem:[#allocation2 + $0x18] sm:$0xff]
    %v928 = vld [vmem:[#allocation2 + $0x20] sm:$0xff]
    %v929 = vld [vmem:[#allocation2 + $0x28] sm:$0xff]
    %v930 = vld [vmem:[#allocation2 + $0x30] sm:$0xff]
    %v931 = vld [vmem:[#allocation2 + $0x38] sm:$0xff]
    %v932 = vld [vmem:[#allocation2 + $0x40] sm:$0xff]
    %v933 = vld [vmem:[#allocation2 + $0x48] sm:$0xff]
    %v934 = vld [vmem:[#allocation2 + $0x50] sm:$0xff]
    %v935 = vld [vmem:[#allocation2 + $0x58] sm:$0xff]
    %v936 = vld [vmem:[#allocation2 + $0x60] sm:$0xff]
    %v937 = vld [vmem:[#allocation2 + $0x68] sm:$0xff]
    %v938 = vld [vmem:[#allocation2 + $0x70] sm:$0xff]
    %v939 = vld [vmem:[#allocation2 + $0x78] sm:$0xff]
    %v940 = vld [vmem:[#allocation2 + $0x80] sm:$0xff]
    %v941 = vld [vmem:[#allocation2 + $0x88] sm:$0xff]
    %v942 = vld [vmem:[#allocation2 + $0x90] sm:$0xff]
    %v943 = vld [vmem:[#allocation2 + $0x98] sm:$0xff]
    %v944 = vld [vmem:[#allocation2 + $0xa0] sm:$0xff]
    %v945 = vld [vmem:[#allocation2 + $0xa8] sm:$0xff]
    %v946 = vld [vmem:[#allocation2 + $0xb0] sm:$0xff]
    %v947 = vld [vmem:[#allocation2 + $0xb8] sm:$0xff]
    %v948 = vld [vmem:[#allocation2 + $0xc0] sm:$0xff]
    %v949 = vld [vmem:[#allocation2 + $0xc8] sm:$0xff]
    %v950 = vld [vmem:[#allocation2 + $0xd0] sm:$0xff]
    %v951 = vld [vmem:[#allocation2 + $0xd8] sm:$0xff]
    %v952 = vld [vmem:[#allocation2 + $0xe0] sm:$0xff]
    %v953 = vld [vmem:[#allocation2 + $0xe8] sm:$0xff]
    %v954 = vld [vmem:[#allocation2 + $0xf0] sm:$0xff]
    %v955 = vld [vmem:[#allocation2 + $0xf8] sm:$0xff]
    %v956 = vmax.f32 %v413, %v415
    %v957 = vmax.f32 %v956, %v670
    %v958 = vmax.f32 %v957, %v672
    %959 = vmax.xlane.f32.xlu0 %v958
    %v960 = vpop.xlane.xlu0 %959
    %v961 = vmax.f32 %v419, %v421
    %v962 = vmax.f32 %v961, %v676
    %v963 = vmax.f32 %v962, %v678
    %964 = vmax.xlane.f32.xlu0 %v963
    %v965 = vpop.xlane.xlu0 %964
    %v966 = vmax.f32 %v425, %v427
    %v967 = vmax.f32 %v966, %v682
    %v968 = vmax.f32 %v967, %v684
    %969 = vmax.xlane.f32.xlu0 %v968
    %v970 = vpop.xlane.xlu0 %969
    %v971 = vmax.f32 %v431, %v433
    %v972 = vmax.f32 %v971, %v688
    %v973 = vmax.f32 %v972, %v690
    %974 = vmax.xlane.f32.xlu0 %v973
    %v975 = vpop.xlane.xlu0 %974
    %v976 = vmax.f32 %v437, %v439
    %v977 = vmax.f32 %v976, %v694
    %v978 = vmax.f32 %v977, %v696
    %979 = vmax.xlane.f32.xlu0 %v978
    %v980 = vpop.xlane.xlu0 %979
    %v981 = vmax.f32 %v443, %v445
    %v982 = vmax.f32 %v981, %v700
    %v983 = vmax.f32 %v982, %v702
    %984 = vmax.xlane.f32.xlu0 %v983
    %v985 = vpop.xlane.xlu0 %984
    %v986 = vmax.f32 %v449, %v451
    %v987 = vmax.f32 %v986, %v706
    %v988 = vmax.f32 %v987, %v708
    %989 = vmax.xlane.f32.xlu0 %v988
    %v990 = vpop.xlane.xlu0 %989
    %v991 = vmax.f32 %v455, %v457
    %v992 = vmax.f32 %v991, %v712
    %v993 = vmax.f32 %v992, %v714
    %994 = vmax.xlane.f32.xlu0 %v993
    %v995 = vpop.xlane.xlu0 %994
    %v996 = vmax.f32 %v461, %v463
    %v997 = vmax.f32 %v996, %v718
    %v998 = vmax.f32 %v997, %v720
    %999 = vmax.xlane.f32.xlu0 %v998
    %v1000 = vpop.xlane.xlu0 %999
    %v1001 = vmax.f32 %v467, %v469
    %v1002 = vmax.f32 %v1001, %v724
    %v1003 = vmax.f32 %v1002, %v726
    %1004 = vmax.xlane.f32.xlu0 %v1003
    %v1005 = vpop.xlane.xlu0 %1004
    %v1006 = vmax.f32 %v473, %v475
    %v1007 = vmax.f32 %v1006, %v730
    %v1008 = vmax.f32 %v1007, %v732
    %1009 = vmax.xlane.f32.xlu0 %v1008
    %v1010 = vpop.xlane.xlu0 %1009
    %v1011 = vmax.f32 %v479, %v481
    %v1012 = vmax.f32 %v1011, %v736
    %v1013 = vmax.f32 %v1012, %v738
    %1014 = vmax.xlane.f32.xlu0 %v1013
    %v1015 = vpop.xlane.xlu0 %1014
    %v1016 = vmax.f32 %v485, %v487
    %v1017 = vmax.f32 %v1016, %v742
    %v1018 = vmax.f32 %v1017, %v744
    %1019 = vmax.xlane.f32.xlu0 %v1018
    %v1020 = vpop.xlane.xlu0 %1019
    %v1021 = vmax.f32 %v491, %v493
    %v1022 = vmax.f32 %v1021, %v748
    %v1023 = vmax.f32 %v1022, %v750
    %1024 = vmax.xlane.f32.xlu0 %v1023
    %v1025 = vpop.xlane.xlu0 %1024
    %v1026 = vmax.f32 %v497, %v499
    %v1027 = vmax.f32 %v1026, %v754
    %v1028 = vmax.f32 %v1027, %v756
    %1029 = vmax.xlane.f32.xlu0 %v1028
    %v1030 = vpop.xlane.xlu0 %1029
    %v1031 = vmax.f32 %v503, %v505
    %v1032 = vmax.f32 %v1031, %v760
    %v1033 = vmax.f32 %v1032, %v762
    %1034 = vmax.xlane.f32.xlu0 %v1033
    %v1035 = vpop.xlane.xlu0 %1034
    %v1036 = vmax.f32 %v509, %v511
    %v1037 = vmax.f32 %v1036, %v766
    %v1038 = vmax.f32 %v1037, %v768
    %1039 = vmax.xlane.f32.xlu0 %v1038
    %v1040 = vpop.xlane.xlu0 %1039
    %v1041 = vmax.f32 %v515, %v517
    %v1042 = vmax.f32 %v1041, %v772
    %v1043 = vmax.f32 %v1042, %v774
    %1044 = vmax.xlane.f32.xlu0 %v1043
    %v1045 = vpop.xlane.xlu0 %1044
    %v1046 = vmax.f32 %v521, %v523
    %v1047 = vmax.f32 %v1046, %v778
    %v1048 = vmax.f32 %v1047, %v780
    %1049 = vmax.xlane.f32.xlu0 %v1048
    %v1050 = vpop.xlane.xlu0 %1049
    %v1051 = vmax.f32 %v527, %v529
    %v1052 = vmax.f32 %v1051, %v784
    %v1053 = vmax.f32 %v1052, %v786
    %1054 = vmax.xlane.f32.xlu0 %v1053
    %v1055 = vpop.xlane.xlu0 %1054
    %v1056 = vmax.f32 %v533, %v535
    %v1057 = vmax.f32 %v1056, %v790
    %v1058 = vmax.f32 %v1057, %v792
    %1059 = vmax.xlane.f32.xlu0 %v1058
    %v1060 = vpop.xlane.xlu0 %1059
    %v1061 = vmax.f32 %v539, %v541
    %v1062 = vmax.f32 %v1061, %v796
    %v1063 = vmax.f32 %v1062, %v798
    %1064 = vmax.xlane.f32.xlu0 %v1063
    %v1065 = vpop.xlane.xlu0 %1064
    %v1066 = vmax.f32 %v545, %v547
    %v1067 = vmax.f32 %v1066, %v802
    %v1068 = vmax.f32 %v1067, %v804
    %1069 = vmax.xlane.f32.xlu0 %v1068
    %v1070 = vpop.xlane.xlu0 %1069
    %v1071 = vmax.f32 %v551, %v553
    %v1072 = vmax.f32 %v1071, %v808
    %v1073 = vmax.f32 %v1072, %v810
    %1074 = vmax.xlane.f32.xlu0 %v1073
    %v1075 = vpop.xlane.xlu0 %1074
    %v1076 = vmax.f32 %v557, %v559
    %v1077 = vmax.f32 %v1076, %v814
    %v1078 = vmax.f32 %v1077, %v816
    %1079 = vmax.xlane.f32.xlu0 %v1078
    %v1080 = vpop.xlane.xlu0 %1079
    %v1081 = vmax.f32 %v563, %v565
    %v1082 = vmax.f32 %v1081, %v820
    %v1083 = vmax.f32 %v1082, %v822
    %1084 = vmax.xlane.f32.xlu0 %v1083
    %v1085 = vpop.xlane.xlu0 %1084
    %v1086 = vmax.f32 %v569, %v571
    %v1087 = vmax.f32 %v1086, %v826
    %v1088 = vmax.f32 %v1087, %v828
    %1089 = vmax.xlane.f32.xlu0 %v1088
    %v1090 = vpop.xlane.xlu0 %1089
    %v1091 = vmax.f32 %v575, %v577
    %v1092 = vmax.f32 %v1091, %v832
    %v1093 = vmax.f32 %v1092, %v834
    %1094 = vmax.xlane.f32.xlu0 %v1093
    %v1095 = vpop.xlane.xlu0 %1094
    %v1096 = vmax.f32 %v581, %v583
    %v1097 = vmax.f32 %v1096, %v838
    %v1098 = vmax.f32 %v1097, %v840
    %1099 = vmax.xlane.f32.xlu0 %v1098
    %v1100 = vpop.xlane.xlu0 %1099
    %v1101 = vmax.f32 %v587, %v589
    %v1102 = vmax.f32 %v1101, %v844
    %v1103 = vmax.f32 %v1102, %v846
    %1104 = vmax.xlane.f32.xlu0 %v1103
    %v1105 = vpop.xlane.xlu0 %1104
    %v1106 = vmax.f32 %v593, %v595
    %v1107 = vmax.f32 %v1106, %v850
    %v1108 = vmax.f32 %v1107, %v852
    %1109 = vmax.xlane.f32.xlu0 %v1108
    %v1110 = vpop.xlane.xlu0 %1109
    %v1111 = vmax.f32 %v599, %v601
    %v1112 = vmax.f32 %v1111, %v856
    %v1113 = vmax.f32 %v1112, %v858
    %1114 = vmax.xlane.f32.xlu0 %v1113
    %v1115 = vpop.xlane.xlu0 %1114
    %v1116 = vmax.f32 %v924, %v960
    %v1117 = vmax.f32 %v925, %v965
    %v1118 = vmax.f32 %v926, %v970
    %v1119 = vmax.f32 %v927, %v975
    %v1120 = vmax.f32 %v928, %v980
    %v1121 = vmax.f32 %v929, %v985
    %v1122 = vmax.f32 %v930, %v990
    %v1123 = vmax.f32 %v931, %v995
    %v1124 = vmax.f32 %v932, %v1000
    %v1125 = vmax.f32 %v933, %v1005
    %v1126 = vmax.f32 %v934, %v1010
    %v1127 = vmax.f32 %v935, %v1015
    %v1128 = vmax.f32 %v936, %v1020
    %v1129 = vmax.f32 %v937, %v1025
    %v1130 = vmax.f32 %v938, %v1030
    %v1131 = vmax.f32 %v939, %v1035
    %v1132 = vmax.f32 %v940, %v1040
    %v1133 = vmax.f32 %v941, %v1045
    %v1134 = vmax.f32 %v942, %v1050
    %v1135 = vmax.f32 %v943, %v1055
    %v1136 = vmax.f32 %v944, %v1060
    %v1137 = vmax.f32 %v945, %v1065
    %v1138 = vmax.f32 %v946, %v1070
    %v1139 = vmax.f32 %v947, %v1075
    %v1140 = vmax.f32 %v948, %v1080
    %v1141 = vmax.f32 %v949, %v1085
    %v1142 = vmax.f32 %v950, %v1090
    %v1143 = vmax.f32 %v951, %v1095
    %v1144 = vmax.f32 %v952, %v1100
    %v1145 = vmax.f32 %v953, %v1105
    %v1146 = vmax.f32 %v954, %v1110
    %v1147 = vmax.f32 %v955, %v1115
    %v1148 = vsub.f32 %v924, %v1116
    %v1149 = vsub.f32 %v925, %v1117
    %v1150 = vsub.f32 %v926, %v1118
    %v1151 = vsub.f32 %v927, %v1119
    %v1152 = vsub.f32 %v928, %v1120
    %v1153 = vsub.f32 %v929, %v1121
    %v1154 = vsub.f32 %v930, %v1122
    %v1155 = vsub.f32 %v931, %v1123
    %v1156 = vsub.f32 %v932, %v1124
    %v1157 = vsub.f32 %v933, %v1125
    %v1158 = vsub.f32 %v934, %v1126
    %v1159 = vsub.f32 %v935, %v1127
    %v1160 = vsub.f32 %v936, %v1128
    %v1161 = vsub.f32 %v937, %v1129
    %v1162 = vsub.f32 %v938, %v1130
    %v1163 = vsub.f32 %v939, %v1131
    %v1164 = vsub.f32 %v940, %v1132
    %v1165 = vsub.f32 %v941, %v1133
    %v1166 = vsub.f32 %v942, %v1134
    %v1167 = vsub.f32 %v943, %v1135
    %v1168 = vsub.f32 %v944, %v1136
    %v1169 = vsub.f32 %v945, %v1137
    %v1170 = vsub.f32 %v946, %v1138
    %v1171 = vsub.f32 %v947, %v1139
    %v1172 = vsub.f32 %v948, %v1140
    %v1173 = vsub.f32 %v949, %v1141
    %v1174 = vsub.f32 %v950, %v1142
    %v1175 = vsub.f32 %v951, %v1143
    %v1176 = vsub.f32 %v952, %v1144
    %v1177 = vsub.f32 %v953, %v1145
    %v1178 = vsub.f32 %v954, %v1146
    %v1179 = vsub.f32 %v955, %v1147
    %v1180 = vmul.f32 %v1148, 1.442695
    %v1181 = vpow.pop %v1180
    %v1182 = vmul.f32 %v1149, 1.442695
    %v1183 = vpow.pop %v1182
    %v1184 = vmul.f32 %v1150, 1.442695
    %v1185 = vpow.pop %v1184
    %v1186 = vmul.f32 %v1151, 1.442695
    %v1187 = vpow.pop %v1186
    %v1188 = vmul.f32 %v1152, 1.442695
    %v1189 = vpow.pop %v1188
    %v1190 = vmul.f32 %v1153, 1.442695
    %v1191 = vpow.pop %v1190
    %v1192 = vmul.f32 %v1154, 1.442695
    %v1193 = vpow.pop %v1192
    %v1194 = vmul.f32 %v1155, 1.442695
    %v1195 = vpow.pop %v1194
    %v1196 = vmul.f32 %v1156, 1.442695
    %v1197 = vpow.pop %v1196
    %v1198 = vmul.f32 %v1157, 1.442695
    %v1199 = vpow.pop %v1198
    %v1200 = vmul.f32 %v1158, 1.442695
    %v1201 = vpow.pop %v1200
    %v1202 = vmul.f32 %v1159, 1.442695
    %v1203 = vpow.pop %v1202
    %v1204 = vmul.f32 %v1160, 1.442695
    %v1205 = vpow.pop %v1204
    %v1206 = vmul.f32 %v1161, 1.442695
    %v1207 = vpow.pop %v1206
    %v1208 = vmul.f32 %v1162, 1.442695
    %v1209 = vpow.pop %v1208
    %v1210 = vmul.f32 %v1163, 1.442695
    %v1211 = vpow.pop %v1210
    %v1212 = vmul.f32 %v1164, 1.442695
    %v1213 = vpow.pop %v1212
    %v1214 = vmul.f32 %v1165, 1.442695
    %v1215 = vpow.pop %v1214
    %v1216 = vmul.f32 %v1166, 1.442695
    %v1217 = vpow.pop %v1216
    %v1218 = vmul.f32 %v1167, 1.442695
    %v1219 = vpow.pop %v1218
    %v1220 = vmul.f32 %v1168, 1.442695
    %v1221 = vpow.pop %v1220
    %v1222 = vmul.f32 %v1169, 1.442695
    %v1223 = vpow.pop %v1222
    %v1224 = vmul.f32 %v1170, 1.442695
    %v1225 = vpow.pop %v1224
    %v1226 = vmul.f32 %v1171, 1.442695
    %v1227 = vpow.pop %v1226
    %v1228 = vmul.f32 %v1172, 1.442695
    %v1229 = vpow.pop %v1228
    %v1230 = vmul.f32 %v1173, 1.442695
    %v1231 = vpow.pop %v1230
    %v1232 = vmul.f32 %v1174, 1.442695
    %v1233 = vpow.pop %v1232
    %v1234 = vmul.f32 %v1175, 1.442695
    %v1235 = vpow.pop %v1234
    %v1236 = vmul.f32 %v1176, 1.442695
    %v1237 = vpow.pop %v1236
    %v1238 = vmul.f32 %v1177, 1.442695
    %v1239 = vpow.pop %v1238
    %v1240 = vmul.f32 %v1178, 1.442695
    %v1241 = vpow.pop %v1240
    %v1242 = vmul.f32 %v1179, 1.442695
    %v1243 = vpow.pop %v1242
    %v1244 = vld [vmem:[#allocation3] sm:$0xff]
    %v1245 = vld [vmem:[#allocation3 + $0x8] sm:$0xff]
    %v1246 = vld [vmem:[#allocation3 + $0x10] sm:$0xff]
    %v1247 = vld [vmem:[#allocation3 + $0x18] sm:$0xff]
    %v1248 = vld [vmem:[#allocation3 + $0x20] sm:$0xff]
    %v1249 = vld [vmem:[#allocation3 + $0x28] sm:$0xff]
    %v1250 = vld [vmem:[#allocation3 + $0x30] sm:$0xff]
    %v1251 = vld [vmem:[#allocation3 + $0x38] sm:$0xff]
    %v1252 = vld [vmem:[#allocation3 + $0x40] sm:$0xff]
    %v1253 = vld [vmem:[#allocation3 + $0x48] sm:$0xff]
    %v1254 = vld [vmem:[#allocation3 + $0x50] sm:$0xff]
    %v1255 = vld [vmem:[#allocation3 + $0x58] sm:$0xff]
    %v1256 = vld [vmem:[#allocation3 + $0x60] sm:$0xff]
    %v1257 = vld [vmem:[#allocation3 + $0x68] sm:$0xff]
    %v1258 = vld [vmem:[#allocation3 + $0x70] sm:$0xff]
    %v1259 = vld [vmem:[#allocation3 + $0x78] sm:$0xff]
    %v1260 = vld [vmem:[#allocation3 + $0x80] sm:$0xff]
    %v1261 = vld [vmem:[#allocation3 + $0x88] sm:$0xff]
    %v1262 = vld [vmem:[#allocation3 + $0x90] sm:$0xff]
    %v1263 = vld [vmem:[#allocation3 + $0x98] sm:$0xff]
    %v1264 = vld [vmem:[#allocation3 + $0xa0] sm:$0xff]
    %v1265 = vld [vmem:[#allocation3 + $0xa8] sm:$0xff]
    %v1266 = vld [vmem:[#allocation3 + $0xb0] sm:$0xff]
    %v1267 = vld [vmem:[#allocation3 + $0xb8] sm:$0xff]
    %v1268 = vld [vmem:[#allocation3 + $0xc0] sm:$0xff]
    %v1269 = vld [vmem:[#allocation3 + $0xc8] sm:$0xff]
    %v1270 = vld [vmem:[#allocation3 + $0xd0] sm:$0xff]
    %v1271 = vld [vmem:[#allocation3 + $0xd8] sm:$0xff]
    %v1272 = vld [vmem:[#allocation3 + $0xe0] sm:$0xff]
    %v1273 = vld [vmem:[#allocation3 + $0xe8] sm:$0xff]
    %v1274 = vld [vmem:[#allocation3 + $0xf0] sm:$0xff]
    %v1275 = vld [vmem:[#allocation3 + $0xf8] sm:$0xff]
    %v1276 = vmul.f32 %v1181, %v1244
    %v1277 = vmul.f32 %v1183, %v1245
    %v1278 = vmul.f32 %v1185, %v1246
    %v1279 = vmul.f32 %v1187, %v1247
    %v1280 = vmul.f32 %v1189, %v1248
    %v1281 = vmul.f32 %v1191, %v1249
    %v1282 = vmul.f32 %v1193, %v1250
    %v1283 = vmul.f32 %v1195, %v1251
    %v1284 = vmul.f32 %v1197, %v1252
    %v1285 = vmul.f32 %v1199, %v1253
    %v1286 = vmul.f32 %v1201, %v1254
    %v1287 = vmul.f32 %v1203, %v1255
    %v1288 = vmul.f32 %v1205, %v1256
    %v1289 = vmul.f32 %v1207, %v1257
    %v1290 = vmul.f32 %v1209, %v1258
    %v1291 = vmul.f32 %v1211, %v1259
    %v1292 = vmul.f32 %v1213, %v1260
    %v1293 = vmul.f32 %v1215, %v1261
    %v1294 = vmul.f32 %v1217, %v1262
    %v1295 = vmul.f32 %v1219, %v1263
    %v1296 = vmul.f32 %v1221, %v1264
    %v1297 = vmul.f32 %v1223, %v1265
    %v1298 = vmul.f32 %v1225, %v1266
    %v1299 = vmul.f32 %v1227, %v1267
    %v1300 = vmul.f32 %v1229, %v1268
    %v1301 = vmul.f32 %v1231, %v1269
    %v1302 = vmul.f32 %v1233, %v1270
    %v1303 = vmul.f32 %v1235, %v1271
    %v1304 = vmul.f32 %v1237, %v1272
    %v1305 = vmul.f32 %v1239, %v1273
    %v1306 = vmul.f32 %v1241, %v1274
    %v1307 = vmul.f32 %v1243, %v1275
    %1309 = vset.pattern.permute.xlu0 0
    %1310 = vperm.xlu0 %1309, %v1116
    %v1311 = vpop.permute.xlu0 %1310
    %1314 = vset.pattern.permute.xlu0 0
    %1315 = vperm.xlu0 %1314, %v1117
    %v1316 = vpop.permute.xlu0 %1315
    %1319 = vset.pattern.permute.xlu0 0
    %1320 = vperm.xlu0 %1319, %v1118
    %v1321 = vpop.permute.xlu0 %1320
    %1324 = vset.pattern.permute.xlu0 0
    %1325 = vperm.xlu0 %1324, %v1119
    %v1326 = vpop.permute.xlu0 %1325
    %1329 = vset.pattern.permute.xlu0 0
    %1330 = vperm.xlu0 %1329, %v1120
    %v1331 = vpop.permute.xlu0 %1330
    %1334 = vset.pattern.permute.xlu0 0
    %1335 = vperm.xlu0 %1334, %v1121
    %v1336 = vpop.permute.xlu0 %1335
    %1339 = vset.pattern.permute.xlu0 0
    %1340 = vperm.xlu0 %1339, %v1122
    %v1341 = vpop.permute.xlu0 %1340
    %1344 = vset.pattern.permute.xlu0 0
    %1345 = vperm.xlu0 %1344, %v1123
    %v1346 = vpop.permute.xlu0 %1345
    %1349 = vset.pattern.permute.xlu0 0
    %1350 = vperm.xlu0 %1349, %v1124
    %v1351 = vpop.permute.xlu0 %1350
    %1354 = vset.pattern.permute.xlu0 0
    %1355 = vperm.xlu0 %1354, %v1125
    %v1356 = vpop.permute.xlu0 %1355
    %1359 = vset.pattern.permute.xlu0 0
    %1360 = vperm.xlu0 %1359, %v1126
    %v1361 = vpop.permute.xlu0 %1360
    %1364 = vset.pattern.permute.xlu0 0
    %1365 = vperm.xlu0 %1364, %v1127
    %v1366 = vpop.permute.xlu0 %1365
    %1369 = vset.pattern.permute.xlu0 0
    %1370 = vperm.xlu0 %1369, %v1128
    %v1371 = vpop.permute.xlu0 %1370
    %1374 = vset.pattern.permute.xlu0 0
    %1375 = vperm.xlu0 %1374, %v1129
    %v1376 = vpop.permute.xlu0 %1375
    %1379 = vset.pattern.permute.xlu0 0
    %1380 = vperm.xlu0 %1379, %v1130
    %v1381 = vpop.permute.xlu0 %1380
    %1384 = vset.pattern.permute.xlu0 0
    %1385 = vperm.xlu0 %1384, %v1131
    %v1386 = vpop.permute.xlu0 %1385
    %1389 = vset.pattern.permute.xlu0 0
    %1390 = vperm.xlu0 %1389, %v1132
    %v1391 = vpop.permute.xlu0 %1390
    %1394 = vset.pattern.permute.xlu0 0
    %1395 = vperm.xlu0 %1394, %v1133
    %v1396 = vpop.permute.xlu0 %1395
    %1399 = vset.pattern.permute.xlu0 0
    %1400 = vperm.xlu0 %1399, %v1134
    %v1401 = vpop.permute.xlu0 %1400
    %1404 = vset.pattern.permute.xlu0 0
    %1405 = vperm.xlu0 %1404, %v1135
    %v1406 = vpop.permute.xlu0 %1405
    %1409 = vset.pattern.permute.xlu0 0
    %1410 = vperm.xlu0 %1409, %v1136
    %v1411 = vpop.permute.xlu0 %1410
    %1414 = vset.pattern.permute.xlu0 0
    %1415 = vperm.xlu0 %1414, %v1137
    %v1416 = vpop.permute.xlu0 %1415
    %1419 = vset.pattern.permute.xlu0 0
    %1420 = vperm.xlu0 %1419, %v1138
    %v1421 = vpop.permute.xlu0 %1420
    %1424 = vset.pattern.permute.xlu0 0
    %1425 = vperm.xlu0 %1424, %v1139
    %v1426 = vpop.permute.xlu0 %1425
    %1429 = vset.pattern.permute.xlu0 0
    %1430 = vperm.xlu0 %1429, %v1140
    %v1431 = vpop.permute.xlu0 %1430
    %1434 = vset.pattern.permute.xlu0 0
    %1435 = vperm.xlu0 %1434, %v1141
    %v1436 = vpop.permute.xlu0 %1435
    %1439 = vset.pattern.permute.xlu0 0
    %1440 = vperm.xlu0 %1439, %v1142
    %v1441 = vpop.permute.xlu0 %1440
    %1444 = vset.pattern.permute.xlu0 0
    %1445 = vperm.xlu0 %1444, %v1143
    %v1446 = vpop.permute.xlu0 %1445
    %1449 = vset.pattern.permute.xlu0 0
    %1450 = vperm.xlu0 %1449, %v1144
    %v1451 = vpop.permute.xlu0 %1450
    %1454 = vset.pattern.permute.xlu0 0
    %1455 = vperm.xlu0 %1454, %v1145
    %v1456 = vpop.permute.xlu0 %1455
    %1459 = vset.pattern.permute.xlu0 0
    %1460 = vperm.xlu0 %1459, %v1146
    %v1461 = vpop.permute.xlu0 %1460
    %1464 = vset.pattern.permute.xlu0 0
    %1465 = vperm.xlu0 %1464, %v1147
    %v1466 = vpop.permute.xlu0 %1465
    %v1468 = vsub.f32 %v413, %v1311
    %v1469 = vsub.f32 %v415, %v1311
    %v1470 = vsub.f32 %v670, %v1311
    %v1471 = vsub.f32 %v672, %v1311
    %v1472 = vsub.f32 %v419, %v1316
    %v1473 = vsub.f32 %v421, %v1316
    %v1474 = vsub.f32 %v676, %v1316
    %v1475 = vsub.f32 %v678, %v1316
    %v1476 = vsub.f32 %v425, %v1321
    %v1477 = vsub.f32 %v427, %v1321
    %v1478 = vsub.f32 %v682, %v1321
    %v1479 = vsub.f32 %v684, %v1321
    %v1480 = vsub.f32 %v431, %v1326
    %v1481 = vsub.f32 %v433, %v1326
    %v1482 = vsub.f32 %v688, %v1326
    %v1483 = vsub.f32 %v690, %v1326
    %v1484 = vsub.f32 %v437, %v1331
    %v1485 = vsub.f32 %v439, %v1331
    %v1486 = vsub.f32 %v694, %v1331
    %v1487 = vsub.f32 %v696, %v1331
    %v1488 = vsub.f32 %v443, %v1336
    %v1489 = vsub.f32 %v445, %v1336
    %v1490 = vsub.f32 %v700, %v1336
    %v1491 = vsub.f32 %v702, %v1336
    %v1492 = vsub.f32 %v449, %v1341
    %v1493 = vsub.f32 %v451, %v1341
    %v1494 = vsub.f32 %v706, %v1341
    %v1495 = vsub.f32 %v708, %v1341
    %v1496 = vsub.f32 %v455, %v1346
    %v1497 = vsub.f32 %v457, %v1346
    %v1498 = vsub.f32 %v712, %v1346
    %v1499 = vsub.f32 %v714, %v1346
    %v1500 = vsub.f32 %v461, %v1351
    %v1501 = vsub.f32 %v463, %v1351
    %v1502 = vsub.f32 %v718, %v1351
    %v1503 = vsub.f32 %v720, %v1351
    %v1504 = vsub.f32 %v467, %v1356
    %v1505 = vsub.f32 %v469, %v1356
    %v1506 = vsub.f32 %v724, %v1356
    %v1507 = vsub.f32 %v726, %v1356
    %v1508 = vsub.f32 %v473, %v1361
    %v1509 = vsub.f32 %v475, %v1361
    %v1510 = vsub.f32 %v730, %v1361
    %v1511 = vsub.f32 %v732, %v1361
    %v1512 = vsub.f32 %v479, %v1366
    %v1513 = vsub.f32 %v481, %v1366
    %v1514 = vsub.f32 %v736, %v1366
    %v1515 = vsub.f32 %v738, %v1366
    %v1516 = vsub.f32 %v485, %v1371
    %v1517 = vsub.f32 %v487, %v1371
    %v1518 = vsub.f32 %v742, %v1371
    %v1519 = vsub.f32 %v744, %v1371
    %v1520 = vsub.f32 %v491, %v1376
    %v1521 = vsub.f32 %v493, %v1376
    %v1522 = vsub.f32 %v748, %v1376
    %v1523 = vsub.f32 %v750, %v1376
    %v1524 = vsub.f32 %v497, %v1381
    %v1525 = vsub.f32 %v499, %v1381
    %v1526 = vsub.f32 %v754, %v1381
    %v1527 = vsub.f32 %v756, %v1381
    %v1528 = vsub.f32 %v503, %v1386
    %v1529 = vsub.f32 %v505, %v1386
    %v1530 = vsub.f32 %v760, %v1386
    %v1531 = vsub.f32 %v762, %v1386
    %v1532 = vsub.f32 %v509, %v1391
    %v1533 = vsub.f32 %v511, %v1391
    %v1534 = vsub.f32 %v766, %v1391
    %v1535 = vsub.f32 %v768, %v1391
    %v1536 = vsub.f32 %v515, %v1396
    %v1537 = vsub.f32 %v517, %v1396
    %v1538 = vsub.f32 %v772, %v1396
    %v1539 = vsub.f32 %v774, %v1396
    %v1540 = vsub.f32 %v521, %v1401
    %v1541 = vsub.f32 %v523, %v1401
    %v1542 = vsub.f32 %v778, %v1401
    %v1543 = vsub.f32 %v780, %v1401
    %v1544 = vsub.f32 %v527, %v1406
    %v1545 = vsub.f32 %v529, %v1406
    %v1546 = vsub.f32 %v784, %v1406
    %v1547 = vsub.f32 %v786, %v1406
    %v1548 = vsub.f32 %v533, %v1411
    %v1549 = vsub.f32 %v535, %v1411
    %v1550 = vsub.f32 %v790, %v1411
    %v1551 = vsub.f32 %v792, %v1411
    %v1552 = vsub.f32 %v539, %v1416
    %v1553 = vsub.f32 %v541, %v1416
    %v1554 = vsub.f32 %v796, %v1416
    %v1555 = vsub.f32 %v798, %v1416
    %v1556 = vsub.f32 %v545, %v1421
    %v1557 = vsub.f32 %v547, %v1421
    %v1558 = vsub.f32 %v802, %v1421
    %v1559 = vsub.f32 %v804, %v1421
    %v1560 = vsub.f32 %v551, %v1426
    %v1561 = vsub.f32 %v553, %v1426
    %v1562 = vsub.f32 %v808, %v1426
    %v1563 = vsub.f32 %v810, %v1426
    %v1564 = vsub.f32 %v557, %v1431
    %v1565 = vsub.f32 %v559, %v1431
    %v1566 = vsub.f32 %v814, %v1431
    %v1567 = vsub.f32 %v816, %v1431
    %v1568 = vsub.f32 %v563, %v1436
    %v1569 = vsub.f32 %v565, %v1436
    %v1570 = vsub.f32 %v820, %v1436
    %v1571 = vsub.f32 %v822, %v1436
    %v1572 = vsub.f32 %v569, %v1441
    %v1573 = vsub.f32 %v571, %v1441
    %v1574 = vsub.f32 %v826, %v1441
    %v1575 = vsub.f32 %v828, %v1441
    %v1576 = vsub.f32 %v575, %v1446
    %v1577 = vsub.f32 %v577, %v1446
    %v1578 = vsub.f32 %v832, %v1446
    %v1579 = vsub.f32 %v834, %v1446
    %v1580 = vsub.f32 %v581, %v1451
    %v1581 = vsub.f32 %v583, %v1451
    %v1582 = vsub.f32 %v838, %v1451
    %v1583 = vsub.f32 %v840, %v1451
    %v1584 = vsub.f32 %v587, %v1456
    %v1585 = vsub.f32 %v589, %v1456
    %v1586 = vsub.f32 %v844, %v1456
    %v1587 = vsub.f32 %v846, %v1456
    %v1588 = vsub.f32 %v593, %v1461
    %v1589 = vsub.f32 %v595, %v1461
    %v1590 = vsub.f32 %v850, %v1461
    %v1591 = vsub.f32 %v852, %v1461
    %v1592 = vsub.f32 %v599, %v1466
    %v1593 = vsub.f32 %v601, %v1466
    %v1594 = vsub.f32 %v856, %v1466
    %v1595 = vsub.f32 %v858, %v1466
    %v1596 = vmul.f32 %v1468, 1.442695
    %v1597 = vpow.pop %v1596
    %v1598 = vmul.f32 %v1469, 1.442695
    %v1599 = vpow.pop %v1598
    %v1600 = vmul.f32 %v1470, 1.442695
    %v1601 = vpow.pop %v1600
    %v1602 = vmul.f32 %v1471, 1.442695
    %v1603 = vpow.pop %v1602
    %v1604 = vmul.f32 %v1472, 1.442695
    %v1605 = vpow.pop %v1604
    %v1606 = vmul.f32 %v1473, 1.442695
    %v1607 = vpow.pop %v1606
    %v1608 = vmul.f32 %v1474, 1.442695
    %v1609 = vpow.pop %v1608
    %v1610 = vmul.f32 %v1475, 1.442695
    %v1611 = vpow.pop %v1610
    %v1612 = vmul.f32 %v1476, 1.442695
    %v1613 = vpow.pop %v1612
    %v1614 = vmul.f32 %v1477, 1.442695
    %v1615 = vpow.pop %v1614
    %v1616 = vmul.f32 %v1478, 1.442695
    %v1617 = vpow.pop %v1616
    %v1618 = vmul.f32 %v1479, 1.442695
    %v1619 = vpow.pop %v1618
    %v1620 = vmul.f32 %v1480, 1.442695
    %v1621 = vpow.pop %v1620
    %v1622 = vmul.f32 %v1481, 1.442695
    %v1623 = vpow.pop %v1622
    %v1624 = vmul.f32 %v1482, 1.442695
    %v1625 = vpow.pop %v1624
    %v1626 = vmul.f32 %v1483, 1.442695
    %v1627 = vpow.pop %v1626
    %v1628 = vmul.f32 %v1484, 1.442695
    %v1629 = vpow.pop %v1628
    %v1630 = vmul.f32 %v1485, 1.442695
    %v1631 = vpow.pop %v1630
    %v1632 = vmul.f32 %v1486, 1.442695
    %v1633 = vpow.pop %v1632
    %v1634 = vmul.f32 %v1487, 1.442695
    %v1635 = vpow.pop %v1634
    %v1636 = vmul.f32 %v1488, 1.442695
    %v1637 = vpow.pop %v1636
    %v1638 = vmul.f32 %v1489, 1.442695
    %v1639 = vpow.pop %v1638
    %v1640 = vmul.f32 %v1490, 1.442695
    %v1641 = vpow.pop %v1640
    %v1642 = vmul.f32 %v1491, 1.442695
    %v1643 = vpow.pop %v1642
    %v1644 = vmul.f32 %v1492, 1.442695
    %v1645 = vpow.pop %v1644
    %v1646 = vmul.f32 %v1493, 1.442695
    %v1647 = vpow.pop %v1646
    %v1648 = vmul.f32 %v1494, 1.442695
    %v1649 = vpow.pop %v1648
    %v1650 = vmul.f32 %v1495, 1.442695
    %v1651 = vpow.pop %v1650
    %v1652 = vmul.f32 %v1496, 1.442695
    %v1653 = vpow.pop %v1652
    %v1654 = vmul.f32 %v1497, 1.442695
    %v1655 = vpow.pop %v1654
    %v1656 = vmul.f32 %v1498, 1.442695
    %v1657 = vpow.pop %v1656
    %v1658 = vmul.f32 %v1499, 1.442695
    %v1659 = vpow.pop %v1658
    %v1660 = vmul.f32 %v1500, 1.442695
    %v1661 = vpow.pop %v1660
    %v1662 = vmul.f32 %v1501, 1.442695
    %v1663 = vpow.pop %v1662
    %v1664 = vmul.f32 %v1502, 1.442695
    %v1665 = vpow.pop %v1664
    %v1666 = vmul.f32 %v1503, 1.442695
    %v1667 = vpow.pop %v1666
    %v1668 = vmul.f32 %v1504, 1.442695
    %v1669 = vpow.pop %v1668
    %v1670 = vmul.f32 %v1505, 1.442695
    %v1671 = vpow.pop %v1670
    %v1672 = vmul.f32 %v1506, 1.442695
    %v1673 = vpow.pop %v1672
    %v1674 = vmul.f32 %v1507, 1.442695
    %v1675 = vpow.pop %v1674
    %v1676 = vmul.f32 %v1508, 1.442695
    %v1677 = vpow.pop %v1676
    %v1678 = vmul.f32 %v1509, 1.442695
    %v1679 = vpow.pop %v1678
    %v1680 = vmul.f32 %v1510, 1.442695
    %v1681 = vpow.pop %v1680
    %v1682 = vmul.f32 %v1511, 1.442695
    %v1683 = vpow.pop %v1682
    %v1684 = vmul.f32 %v1512, 1.442695
    %v1685 = vpow.pop %v1684
    %v1686 = vmul.f32 %v1513, 1.442695
    %v1687 = vpow.pop %v1686
    %v1688 = vmul.f32 %v1514, 1.442695
    %v1689 = vpow.pop %v1688
    %v1690 = vmul.f32 %v1515, 1.442695
    %v1691 = vpow.pop %v1690
    %v1692 = vmul.f32 %v1516, 1.442695
    %v1693 = vpow.pop %v1692
    %v1694 = vmul.f32 %v1517, 1.442695
    %v1695 = vpow.pop %v1694
    %v1696 = vmul.f32 %v1518, 1.442695
    %v1697 = vpow.pop %v1696
    %v1698 = vmul.f32 %v1519, 1.442695
    %v1699 = vpow.pop %v1698
    %v1700 = vmul.f32 %v1520, 1.442695
    %v1701 = vpow.pop %v1700
    %v1702 = vmul.f32 %v1521, 1.442695
    %v1703 = vpow.pop %v1702
    %v1704 = vmul.f32 %v1522, 1.442695
    %v1705 = vpow.pop %v1704
    %v1706 = vmul.f32 %v1523, 1.442695
    %v1707 = vpow.pop %v1706
    %v1708 = vmul.f32 %v1524, 1.442695
    %v1709 = vpow.pop %v1708
    %v1710 = vmul.f32 %v1525, 1.442695
    %v1711 = vpow.pop %v1710
    %v1712 = vmul.f32 %v1526, 1.442695
    %v1713 = vpow.pop %v1712
    %v1714 = vmul.f32 %v1527, 1.442695
    %v1715 = vpow.pop %v1714
    %v1716 = vmul.f32 %v1528, 1.442695
    %v1717 = vpow.pop %v1716
    %v1718 = vmul.f32 %v1529, 1.442695
    %v1719 = vpow.pop %v1718
    %v1720 = vmul.f32 %v1530, 1.442695
    %v1721 = vpow.pop %v1720
    %v1722 = vmul.f32 %v1531, 1.442695
    %v1723 = vpow.pop %v1722
    %v1724 = vmul.f32 %v1532, 1.442695
    %v1725 = vpow.pop %v1724
    %v1726 = vmul.f32 %v1533, 1.442695
    %v1727 = vpow.pop %v1726
    %v1728 = vmul.f32 %v1534, 1.442695
    %v1729 = vpow.pop %v1728
    %v1730 = vmul.f32 %v1535, 1.442695
    %v1731 = vpow.pop %v1730
    %v1732 = vmul.f32 %v1536, 1.442695
    %v1733 = vpow.pop %v1732
    %v1734 = vmul.f32 %v1537, 1.442695
    %v1735 = vpow.pop %v1734
    %v1736 = vmul.f32 %v1538, 1.442695
    %v1737 = vpow.pop %v1736
    %v1738 = vmul.f32 %v1539, 1.442695
    %v1739 = vpow.pop %v1738
    %v1740 = vmul.f32 %v1540, 1.442695
    %v1741 = vpow.pop %v1740
    %v1742 = vmul.f32 %v1541, 1.442695
    %v1743 = vpow.pop %v1742
    %v1744 = vmul.f32 %v1542, 1.442695
    %v1745 = vpow.pop %v1744
    %v1746 = vmul.f32 %v1543, 1.442695
    %v1747 = vpow.pop %v1746
    %v1748 = vmul.f32 %v1544, 1.442695
    %v1749 = vpow.pop %v1748
    %v1750 = vmul.f32 %v1545, 1.442695
    %v1751 = vpow.pop %v1750
    %v1752 = vmul.f32 %v1546, 1.442695
    %v1753 = vpow.pop %v1752
    %v1754 = vmul.f32 %v1547, 1.442695
    %v1755 = vpow.pop %v1754
    %v1756 = vmul.f32 %v1548, 1.442695
    %v1757 = vpow.pop %v1756
    %v1758 = vmul.f32 %v1549, 1.442695
    %v1759 = vpow.pop %v1758
    %v1760 = vmul.f32 %v1550, 1.442695
    %v1761 = vpow.pop %v1760
    %v1762 = vmul.f32 %v1551, 1.442695
    %v1763 = vpow.pop %v1762
    %v1764 = vmul.f32 %v1552, 1.442695
    %v1765 = vpow.pop %v1764
    %v1766 = vmul.f32 %v1553, 1.442695
    %v1767 = vpow.pop %v1766
    %v1768 = vmul.f32 %v1554, 1.442695
    %v1769 = vpow.pop %v1768
    %v1770 = vmul.f32 %v1555, 1.442695
    %v1771 = vpow.pop %v1770
    %v1772 = vmul.f32 %v1556, 1.442695
    %v1773 = vpow.pop %v1772
    %v1774 = vmul.f32 %v1557, 1.442695
    %v1775 = vpow.pop %v1774
    %v1776 = vmul.f32 %v1558, 1.442695
    %v1777 = vpow.pop %v1776
    %v1778 = vmul.f32 %v1559, 1.442695
    %v1779 = vpow.pop %v1778
    %v1780 = vmul.f32 %v1560, 1.442695
    %v1781 = vpow.pop %v1780
    %v1782 = vmul.f32 %v1561, 1.442695
    %v1783 = vpow.pop %v1782
    %v1784 = vmul.f32 %v1562, 1.442695
    %v1785 = vpow.pop %v1784
    %v1786 = vmul.f32 %v1563, 1.442695
    %v1787 = vpow.pop %v1786
    %v1788 = vmul.f32 %v1564, 1.442695
    %v1789 = vpow.pop %v1788
    %v1790 = vmul.f32 %v1565, 1.442695
    %v1791 = vpow.pop %v1790
    %v1792 = vmul.f32 %v1566, 1.442695
    %v1793 = vpow.pop %v1792
    %v1794 = vmul.f32 %v1567, 1.442695
    %v1795 = vpow.pop %v1794
    %v1796 = vmul.f32 %v1568, 1.442695
    %v1797 = vpow.pop %v1796
    %v1798 = vmul.f32 %v1569, 1.442695
    %v1799 = vpow.pop %v1798
    %v1800 = vmul.f32 %v1570, 1.442695
    %v1801 = vpow.pop %v1800
    %v1802 = vmul.f32 %v1571, 1.442695
    %v1803 = vpow.pop %v1802
    %v1804 = vmul.f32 %v1572, 1.442695
    %v1805 = vpow.pop %v1804
    %v1806 = vmul.f32 %v1573, 1.442695
    %v1807 = vpow.pop %v1806
    %v1808 = vmul.f32 %v1574, 1.442695
    %v1809 = vpow.pop %v1808
    %v1810 = vmul.f32 %v1575, 1.442695
    %v1811 = vpow.pop %v1810
    %v1812 = vmul.f32 %v1576, 1.442695
    %v1813 = vpow.pop %v1812
    %v1814 = vmul.f32 %v1577, 1.442695
    %v1815 = vpow.pop %v1814
    %v1816 = vmul.f32 %v1578, 1.442695
    %v1817 = vpow.pop %v1816
    %v1818 = vmul.f32 %v1579, 1.442695
    %v1819 = vpow.pop %v1818
    %v1820 = vmul.f32 %v1580, 1.442695
    %v1821 = vpow.pop %v1820
    %v1822 = vmul.f32 %v1581, 1.442695
    %v1823 = vpow.pop %v1822
    %v1824 = vmul.f32 %v1582, 1.442695
    %v1825 = vpow.pop %v1824
    %v1826 = vmul.f32 %v1583, 1.442695
    %v1827 = vpow.pop %v1826
    %v1828 = vmul.f32 %v1584, 1.442695
    %v1829 = vpow.pop %v1828
    %v1830 = vmul.f32 %v1585, 1.442695
    %v1831 = vpow.pop %v1830
    %v1832 = vmul.f32 %v1586, 1.442695
    %v1833 = vpow.pop %v1832
    %v1834 = vmul.f32 %v1587, 1.442695
    %v1835 = vpow.pop %v1834
    %v1836 = vmul.f32 %v1588, 1.442695
    %v1837 = vpow.pop %v1836
    %v1838 = vmul.f32 %v1589, 1.442695
    %v1839 = vpow.pop %v1838
    %v1840 = vmul.f32 %v1590, 1.442695
    %v1841 = vpow.pop %v1840
    %v1842 = vmul.f32 %v1591, 1.442695
    %v1843 = vpow.pop %v1842
    %v1844 = vmul.f32 %v1592, 1.442695
    %v1845 = vpow.pop %v1844
    %v1846 = vmul.f32 %v1593, 1.442695
    %v1847 = vpow.pop %v1846
    %v1848 = vmul.f32 %v1594, 1.442695
    %v1849 = vpow.pop %v1848
    %v1850 = vmul.f32 %v1595, 1.442695
    %v1851 = vpow.pop %v1850
    %v1852 = vadd.f32 %v1597, %v1599
    %v1853 = vadd.f32 %v1852, %v1601
    %v1854 = vadd.f32 %v1853, %v1603
    %1855 = vadd.xlane.f32.xlu0 %v1854
    %v1856 = vpop.xlane.xlu0 %1855
    %v1857 = vadd.f32 %v1605, %v1607
    %v1858 = vadd.f32 %v1857, %v1609
    %v1859 = vadd.f32 %v1858, %v1611
    %1860 = vadd.xlane.f32.xlu0 %v1859
    %v1861 = vpop.xlane.xlu0 %1860
    %v1862 = vadd.f32 %v1613, %v1615
    %v1863 = vadd.f32 %v1862, %v1617
    %v1864 = vadd.f32 %v1863, %v1619
    %1865 = vadd.xlane.f32.xlu0 %v1864
    %v1866 = vpop.xlane.xlu0 %1865
    %v1867 = vadd.f32 %v1621, %v1623
    %v1868 = vadd.f32 %v1867, %v1625
    %v1869 = vadd.f32 %v1868, %v1627
    %1870 = vadd.xlane.f32.xlu0 %v1869
    %v1871 = vpop.xlane.xlu0 %1870
    %v1872 = vadd.f32 %v1629, %v1631
    %v1873 = vadd.f32 %v1872, %v1633
    %v1874 = vadd.f32 %v1873, %v1635
    %1875 = vadd.xlane.f32.xlu0 %v1874
    %v1876 = vpop.xlane.xlu0 %1875
    %v1877 = vadd.f32 %v1637, %v1639
    %v1878 = vadd.f32 %v1877, %v1641
    %v1879 = vadd.f32 %v1878, %v1643
    %1880 = vadd.xlane.f32.xlu0 %v1879
    %v1881 = vpop.xlane.xlu0 %1880
    %v1882 = vadd.f32 %v1645, %v1647
    %v1883 = vadd.f32 %v1882, %v1649
    %v1884 = vadd.f32 %v1883, %v1651
    %1885 = vadd.xlane.f32.xlu0 %v1884
    %v1886 = vpop.xlane.xlu0 %1885
    %v1887 = vadd.f32 %v1653, %v1655
    %v1888 = vadd.f32 %v1887, %v1657
    %v1889 = vadd.f32 %v1888, %v1659
    %1890 = vadd.xlane.f32.xlu0 %v1889
    %v1891 = vpop.xlane.xlu0 %1890
    %v1892 = vadd.f32 %v1661, %v1663
    %v1893 = vadd.f32 %v1892, %v1665
    %v1894 = vadd.f32 %v1893, %v1667
    %1895 = vadd.xlane.f32.xlu0 %v1894
    %v1896 = vpop.xlane.xlu0 %1895
    %v1897 = vadd.f32 %v1669, %v1671
    %v1898 = vadd.f32 %v1897, %v1673
    %v1899 = vadd.f32 %v1898, %v1675
    %1900 = vadd.xlane.f32.xlu0 %v1899
    %v1901 = vpop.xlane.xlu0 %1900
    %v1902 = vadd.f32 %v1677, %v1679
    %v1903 = vadd.f32 %v1902, %v1681
    %v1904 = vadd.f32 %v1903, %v1683
    %1905 = vadd.xlane.f32.xlu0 %v1904
    %v1906 = vpop.xlane.xlu0 %1905
    %v1907 = vadd.f32 %v1685, %v1687
    %v1908 = vadd.f32 %v1907, %v1689
    %v1909 = vadd.f32 %v1908, %v1691
    %1910 = vadd.xlane.f32.xlu0 %v1909
    %v1911 = vpop.xlane.xlu0 %1910
    %v1912 = vadd.f32 %v1693, %v1695
    %v1913 = vadd.f32 %v1912, %v1697
    %v1914 = vadd.f32 %v1913, %v1699
    %1915 = vadd.xlane.f32.xlu0 %v1914
    %v1916 = vpop.xlane.xlu0 %1915
    %v1917 = vadd.f32 %v1701, %v1703
    %v1918 = vadd.f32 %v1917, %v1705
    %v1919 = vadd.f32 %v1918, %v1707
    %1920 = vadd.xlane.f32.xlu0 %v1919
    %v1921 = vpop.xlane.xlu0 %1920
    %v1922 = vadd.f32 %v1709, %v1711
    %v1923 = vadd.f32 %v1922, %v1713
    %v1924 = vadd.f32 %v1923, %v1715
    %1925 = vadd.xlane.f32.xlu0 %v1924
    %v1926 = vpop.xlane.xlu0 %1925
    %v1927 = vadd.f32 %v1717, %v1719
    %v1928 = vadd.f32 %v1927, %v1721
    %v1929 = vadd.f32 %v1928, %v1723
    %1930 = vadd.xlane.f32.xlu0 %v1929
    %v1931 = vpop.xlane.xlu0 %1930
    %v1932 = vadd.f32 %v1725, %v1727
    %v1933 = vadd.f32 %v1932, %v1729
    %v1934 = vadd.f32 %v1933, %v1731
    %1935 = vadd.xlane.f32.xlu0 %v1934
    %v1936 = vpop.xlane.xlu0 %1935
    %v1937 = vadd.f32 %v1733, %v1735
    %v1938 = vadd.f32 %v1937, %v1737
    %v1939 = vadd.f32 %v1938, %v1739
    %1940 = vadd.xlane.f32.xlu0 %v1939
    %v1941 = vpop.xlane.xlu0 %1940
    %v1942 = vadd.f32 %v1741, %v1743
    %v1943 = vadd.f32 %v1942, %v1745
    %v1944 = vadd.f32 %v1943, %v1747
    %1945 = vadd.xlane.f32.xlu0 %v1944
    %v1946 = vpop.xlane.xlu0 %1945
    %v1947 = vadd.f32 %v1749, %v1751
    %v1948 = vadd.f32 %v1947, %v1753
    %v1949 = vadd.f32 %v1948, %v1755
    %1950 = vadd.xlane.f32.xlu0 %v1949
    %v1951 = vpop.xlane.xlu0 %1950
    %v1952 = vadd.f32 %v1757, %v1759
    %v1953 = vadd.f32 %v1952, %v1761
    %v1954 = vadd.f32 %v1953, %v1763
    %1955 = vadd.xlane.f32.xlu0 %v1954
    %v1956 = vpop.xlane.xlu0 %1955
    %v1957 = vadd.f32 %v1765, %v1767
    %v1958 = vadd.f32 %v1957, %v1769
    %v1959 = vadd.f32 %v1958, %v1771
    %1960 = vadd.xlane.f32.xlu0 %v1959
    %v1961 = vpop.xlane.xlu0 %1960
    %v1962 = vadd.f32 %v1773, %v1775
    %v1963 = vadd.f32 %v1962, %v1777
    %v1964 = vadd.f32 %v1963, %v1779
    %1965 = vadd.xlane.f32.xlu0 %v1964
    %v1966 = vpop.xlane.xlu0 %1965
    %v1967 = vadd.f32 %v1781, %v1783
    %v1968 = vadd.f32 %v1967, %v1785
    %v1969 = vadd.f32 %v1968, %v1787
    %1970 = vadd.xlane.f32.xlu0 %v1969
    %v1971 = vpop.xlane.xlu0 %1970
    %v1972 = vadd.f32 %v1789, %v1791
    %v1973 = vadd.f32 %v1972, %v1793
    %v1974 = vadd.f32 %v1973, %v1795
    %1975 = vadd.xlane.f32.xlu0 %v1974
    %v1976 = vpop.xlane.xlu0 %1975
    %v1977 = vadd.f32 %v1797, %v1799
    %v1978 = vadd.f32 %v1977, %v1801
    %v1979 = vadd.f32 %v1978, %v1803
    %1980 = vadd.xlane.f32.xlu0 %v1979
    %v1981 = vpop.xlane.xlu0 %1980
    %v1982 = vadd.f32 %v1805, %v1807
    %v1983 = vadd.f32 %v1982, %v1809
    %v1984 = vadd.f32 %v1983, %v1811
    %1985 = vadd.xlane.f32.xlu0 %v1984
    %v1986 = vpop.xlane.xlu0 %1985
    %v1987 = vadd.f32 %v1813, %v1815
    %v1988 = vadd.f32 %v1987, %v1817
    %v1989 = vadd.f32 %v1988, %v1819
    %1990 = vadd.xlane.f32.xlu0 %v1989
    %v1991 = vpop.xlane.xlu0 %1990
    %v1992 = vadd.f32 %v1821, %v1823
    %v1993 = vadd.f32 %v1992, %v1825
    %v1994 = vadd.f32 %v1993, %v1827
    %1995 = vadd.xlane.f32.xlu0 %v1994
    %v1996 = vpop.xlane.xlu0 %1995
    %v1997 = vadd.f32 %v1829, %v1831
    %v1998 = vadd.f32 %v1997, %v1833
    %v1999 = vadd.f32 %v1998, %v1835
    %2000 = vadd.xlane.f32.xlu0 %v1999
    %v2001 = vpop.xlane.xlu0 %2000
    %v2002 = vadd.f32 %v1837, %v1839
    %v2003 = vadd.f32 %v2002, %v1841
    %v2004 = vadd.f32 %v2003, %v1843
    %2005 = vadd.xlane.f32.xlu0 %v2004
    %v2006 = vpop.xlane.xlu0 %2005
    %v2007 = vadd.f32 %v1845, %v1847
    %v2008 = vadd.f32 %v2007, %v1849
    %v2009 = vadd.f32 %v2008, %v1851
    %2010 = vadd.xlane.f32.xlu0 %v2009
    %v2011 = vpop.xlane.xlu0 %2010
    %v2012 = vadd.f32 %v1276, %v1856
    %v2013 = vadd.f32 %v1277, %v1861
    %v2014 = vadd.f32 %v1278, %v1866
    %v2015 = vadd.f32 %v1279, %v1871
    %v2016 = vadd.f32 %v1280, %v1876
    %v2017 = vadd.f32 %v1281, %v1881
    %v2018 = vadd.f32 %v1282, %v1886
    %v2019 = vadd.f32 %v1283, %v1891
    %v2020 = vadd.f32 %v1284, %v1896
    %v2021 = vadd.f32 %v1285, %v1901
    %v2022 = vadd.f32 %v1286, %v1906
    %v2023 = vadd.f32 %v1287, %v1911
    %v2024 = vadd.f32 %v1288, %v1916
    %v2025 = vadd.f32 %v1289, %v1921
    %v2026 = vadd.f32 %v1290, %v1926
    %v2027 = vadd.f32 %v1291, %v1931
    %v2028 = vadd.f32 %v1292, %v1936
    %v2029 = vadd.f32 %v1293, %v1941
    %v2030 = vadd.f32 %v1294, %v1946
    %v2031 = vadd.f32 %v1295, %v1951
    %v2032 = vadd.f32 %v1296, %v1956
    %v2033 = vadd.f32 %v1297, %v1961
    %v2034 = vadd.f32 %v1298, %v1966
    %v2035 = vadd.f32 %v1299, %v1971
    %v2036 = vadd.f32 %v1300, %v1976
    %v2037 = vadd.f32 %v1301, %v1981
    %v2038 = vadd.f32 %v1302, %v1986
    %v2039 = vadd.f32 %v1303, %v1991
    %v2040 = vadd.f32 %v1304, %v1996
    %v2041 = vadd.f32 %v1305, %v2001
    %v2042 = vadd.f32 %v1306, %v2006
    %v2043 = vadd.f32 %v1307, %v2011
    %vm2044 = vcmask 7168
    %2045 = vst.msk [vmem:[#allocation3] sm:$0xff] %vm2044, %v2012
    %2046 = vst.msk [vmem:[#allocation3 + $0x8] sm:$0xff] %vm2044, %v2013
    %2047 = vst.msk [vmem:[#allocation3 + $0x10] sm:$0xff] %vm2044, %v2014
    %2048 = vst.msk [vmem:[#allocation3 + $0x18] sm:$0xff] %vm2044, %v2015
    %2049 = vst.msk [vmem:[#allocation3 + $0x20] sm:$0xff] %vm2044, %v2016
    %2050 = vst.msk [vmem:[#allocation3 + $0x28] sm:$0xff] %vm2044, %v2017
    %2051 = vst.msk [vmem:[#allocation3 + $0x30] sm:$0xff] %vm2044, %v2018
    %2052 = vst.msk [vmem:[#allocation3 + $0x38] sm:$0xff] %vm2044, %v2019
    %2053 = vst.msk [vmem:[#allocation3 + $0x40] sm:$0xff] %vm2044, %v2020
    %2054 = vst.msk [vmem:[#allocation3 + $0x48] sm:$0xff] %vm2044, %v2021
    %2055 = vst.msk [vmem:[#allocation3 + $0x50] sm:$0xff] %vm2044, %v2022
    %2056 = vst.msk [vmem:[#allocation3 + $0x58] sm:$0xff] %vm2044, %v2023
    %2057 = vst.msk [vmem:[#allocation3 + $0x60] sm:$0xff] %vm2044, %v2024
    %2058 = vst.msk [vmem:[#allocation3 + $0x68] sm:$0xff] %vm2044, %v2025
    %2059 = vst.msk [vmem:[#allocation3 + $0x70] sm:$0xff] %vm2044, %v2026
    %2060 = vst.msk [vmem:[#allocation3 + $0x78] sm:$0xff] %vm2044, %v2027
    %2061 = vst.msk [vmem:[#allocation3 + $0x80] sm:$0xff] %vm2044, %v2028
    %2062 = vst.msk [vmem:[#allocation3 + $0x88] sm:$0xff] %vm2044, %v2029
    %2063 = vst.msk [vmem:[#allocation3 + $0x90] sm:$0xff] %vm2044, %v2030
    %2064 = vst.msk [vmem:[#allocation3 + $0x98] sm:$0xff] %vm2044, %v2031
    %2065 = vst.msk [vmem:[#allocation3 + $0xa0] sm:$0xff] %vm2044, %v2032
    %2066 = vst.msk [vmem:[#allocation3 + $0xa8] sm:$0xff] %vm2044, %v2033
    %2067 = vst.msk [vmem:[#allocation3 + $0xb0] sm:$0xff] %vm2044, %v2034
    %2068 = vst.msk [vmem:[#allocation3 + $0xb8] sm:$0xff] %vm2044, %v2035
    %2069 = vst.msk [vmem:[#allocation3 + $0xc0] sm:$0xff] %vm2044, %v2036
    %2070 = vst.msk [vmem:[#allocation3 + $0xc8] sm:$0xff] %vm2044, %v2037
    %2071 = vst.msk [vmem:[#allocation3 + $0xd0] sm:$0xff] %vm2044, %v2038
    %2072 = vst.msk [vmem:[#allocation3 + $0xd8] sm:$0xff] %vm2044, %v2039
    %2073 = vst.msk [vmem:[#allocation3 + $0xe0] sm:$0xff] %vm2044, %v2040
    %2074 = vst.msk [vmem:[#allocation3 + $0xe8] sm:$0xff] %vm2044, %v2041
    %2075 = vst.msk [vmem:[#allocation3 + $0xf0] sm:$0xff] %vm2044, %v2042
    %2076 = vst.msk [vmem:[#allocation3 + $0xf8] sm:$0xff] %vm2044, %v2043
    %2077 = vst.msk [vmem:[#allocation2] sm:$0xff] %vm2044, %v1116
    %2078 = vst.msk [vmem:[#allocation2 + $0x8] sm:$0xff] %vm2044, %v1117
    %2079 = vst.msk [vmem:[#allocation2 + $0x10] sm:$0xff] %vm2044, %v1118
    %2080 = vst.msk [vmem:[#allocation2 + $0x18] sm:$0xff] %vm2044, %v1119
    %2081 = vst.msk [vmem:[#allocation2 + $0x20] sm:$0xff] %vm2044, %v1120
    %2082 = vst.msk [vmem:[#allocation2 + $0x28] sm:$0xff] %vm2044, %v1121
    %2083 = vst.msk [vmem:[#allocation2 + $0x30] sm:$0xff] %vm2044, %v1122
    %2084 = vst.msk [vmem:[#allocation2 + $0x38] sm:$0xff] %vm2044, %v1123
    %2085 = vst.msk [vmem:[#allocation2 + $0x40] sm:$0xff] %vm2044, %v1124
    %2086 = vst.msk [vmem:[#allocation2 + $0x48] sm:$0xff] %vm2044, %v1125
    %2087 = vst.msk [vmem:[#allocation2 + $0x50] sm:$0xff] %vm2044, %v1126
    %2088 = vst.msk [vmem:[#allocation2 + $0x58] sm:$0xff] %vm2044, %v1127
    %2089 = vst.msk [vmem:[#allocation2 + $0x60] sm:$0xff] %vm2044, %v1128
    %2090 = vst.msk [vmem:[#allocation2 + $0x68] sm:$0xff] %vm2044, %v1129
    %2091 = vst.msk [vmem:[#allocation2 + $0x70] sm:$0xff] %vm2044, %v1130
    %2092 = vst.msk [vmem:[#allocation2 + $0x78] sm:$0xff] %vm2044, %v1131
    %2093 = vst.msk [vmem:[#allocation2 + $0x80] sm:$0xff] %vm2044, %v1132
    %2094 = vst.msk [vmem:[#allocation2 + $0x88] sm:$0xff] %vm2044, %v1133
    %2095 = vst.msk [vmem:[#allocation2 + $0x90] sm:$0xff] %vm2044, %v1134
    %2096 = vst.msk [vmem:[#allocation2 + $0x98] sm:$0xff] %vm2044, %v1135
    %2097 = vst.msk [vmem:[#allocation2 + $0xa0] sm:$0xff] %vm2044, %v1136
    %2098 = vst.msk [vmem:[#allocation2 + $0xa8] sm:$0xff] %vm2044, %v1137
    %2099 = vst.msk [vmem:[#allocation2 + $0xb0] sm:$0xff] %vm2044, %v1138
    %2100 = vst.msk [vmem:[#allocation2 + $0xb8] sm:$0xff] %vm2044, %v1139
    %2101 = vst.msk [vmem:[#allocation2 + $0xc0] sm:$0xff] %vm2044, %v1140
    %2102 = vst.msk [vmem:[#allocation2 + $0xc8] sm:$0xff] %vm2044, %v1141
    %2103 = vst.msk [vmem:[#allocation2 + $0xd0] sm:$0xff] %vm2044, %v1142
    %2104 = vst.msk [vmem:[#allocation2 + $0xd8] sm:$0xff] %vm2044, %v1143
    %2105 = vst.msk [vmem:[#allocation2 + $0xe0] sm:$0xff] %vm2044, %v1144
    %2106 = vst.msk [vmem:[#allocation2 + $0xe8] sm:$0xff] %vm2044, %v1145
    %2107 = vst.msk [vmem:[#allocation2 + $0xf0] sm:$0xff] %vm2044, %v1146
    %2108 = vst.msk [vmem:[#allocation2 + $0xf8] sm:$0xff] %vm2044, %v1147
    %s2109 = sadd.s32 0, 0
    %s2110 = smul.u32 %s2109, 512
    %v2111 = vlaneseq
    %v2112 = vand.u32 %v2111, 127
    %v2113 = vadd.s32 %v2112, 128
    %v2114 = vadd.s32 %v2112, 256
    %v2115 = vadd.s32 %v2112, 384
    %v2116 = vstv %s2110
    %v2117 = vadd.s32 %v2116, %v2112
    %v2118 = vadd.s32 %v2116, %v2113
    %v2119 = vadd.s32 %v2116, %v2114
    %v2120 = vadd.s32 %v2116, %v2115
    %2122 = vset.pattern.permute.xlu0 0
    %2123 = vperm.xlu0 %2122, %v860
    %v2124 = vpop.permute.xlu0 %2123
    %2127 = vset.pattern.permute.xlu0 0
    %2128 = vperm.xlu0 %2127, %v861
    %v2129 = vpop.permute.xlu0 %2128
    %2132 = vset.pattern.permute.xlu0 0
    %2133 = vperm.xlu0 %2132, %v862
    %v2134 = vpop.permute.xlu0 %2133
    %2137 = vset.pattern.permute.xlu0 0
    %2138 = vperm.xlu0 %2137, %v863
    %v2139 = vpop.permute.xlu0 %2138
    %2142 = vset.pattern.permute.xlu0 0
    %2143 = vperm.xlu0 %2142, %v864
    %v2144 = vpop.permute.xlu0 %2143
    %2147 = vset.pattern.permute.xlu0 0
    %2148 = vperm.xlu0 %2147, %v865
    %v2149 = vpop.permute.xlu0 %2148
    %2152 = vset.pattern.permute.xlu0 0
    %2153 = vperm.xlu0 %2152, %v866
    %v2154 = vpop.permute.xlu0 %2153
    %2157 = vset.pattern.permute.xlu0 0
    %2158 = vperm.xlu0 %2157, %v867
    %v2159 = vpop.permute.xlu0 %2158
    %2162 = vset.pattern.permute.xlu0 0
    %2163 = vperm.xlu0 %2162, %v868
    %v2164 = vpop.permute.xlu0 %2163
    %2167 = vset.pattern.permute.xlu0 0
    %2168 = vperm.xlu0 %2167, %v869
    %v2169 = vpop.permute.xlu0 %2168
    %2172 = vset.pattern.permute.xlu0 0
    %2173 = vperm.xlu0 %2172, %v870
    %v2174 = vpop.permute.xlu0 %2173
    %2177 = vset.pattern.permute.xlu0 0
    %2178 = vperm.xlu0 %2177, %v871
    %v2179 = vpop.permute.xlu0 %2178
    %2182 = vset.pattern.permute.xlu0 0
    %2183 = vperm.xlu0 %2182, %v872
    %v2184 = vpop.permute.xlu0 %2183
    %2187 = vset.pattern.permute.xlu0 0
    %2188 = vperm.xlu0 %2187, %v873
    %v2189 = vpop.permute.xlu0 %2188
    %2192 = vset.pattern.permute.xlu0 0
    %2193 = vperm.xlu0 %2192, %v874
    %v2194 = vpop.permute.xlu0 %2193
    %2197 = vset.pattern.permute.xlu0 0
    %2198 = vperm.xlu0 %2197, %v875
    %v2199 = vpop.permute.xlu0 %2198
    %2202 = vset.pattern.permute.xlu0 0
    %2203 = vperm.xlu0 %2202, %v876
    %v2204 = vpop.permute.xlu0 %2203
    %2207 = vset.pattern.permute.xlu0 0
    %2208 = vperm.xlu0 %2207, %v877
    %v2209 = vpop.permute.xlu0 %2208
    %2212 = vset.pattern.permute.xlu0 0
    %2213 = vperm.xlu0 %2212, %v878
    %v2214 = vpop.permute.xlu0 %2213
    %2217 = vset.pattern.permute.xlu0 0
    %2218 = vperm.xlu0 %2217, %v879
    %v2219 = vpop.permute.xlu0 %2218
    %2222 = vset.pattern.permute.xlu0 0
    %2223 = vperm.xlu0 %2222, %v880
    %v2224 = vpop.permute.xlu0 %2223
    %2227 = vset.pattern.permute.xlu0 0
    %2228 = vperm.xlu0 %2227, %v881
    %v2229 = vpop.permute.xlu0 %2228
    %2232 = vset.pattern.permute.xlu0 0
    %2233 = vperm.xlu0 %2232, %v882
    %v2234 = vpop.permute.xlu0 %2233
    %2237 = vset.pattern.permute.xlu0 0
    %2238 = vperm.xlu0 %2237, %v883
    %v2239 = vpop.permute.xlu0 %2238
    %2242 = vset.pattern.permute.xlu0 0
    %2243 = vperm.xlu0 %2242, %v884
    %v2244 = vpop.permute.xlu0 %2243
    %2247 = vset.pattern.permute.xlu0 0
    %2248 = vperm.xlu0 %2247, %v885
    %v2249 = vpop.permute.xlu0 %2248
    %2252 = vset.pattern.permute.xlu0 0
    %2253 = vperm.xlu0 %2252, %v886
    %v2254 = vpop.permute.xlu0 %2253
    %2257 = vset.pattern.permute.xlu0 0
    %2258 = vperm.xlu0 %2257, %v887
    %v2259 = vpop.permute.xlu0 %2258
    %2262 = vset.pattern.permute.xlu0 0
    %2263 = vperm.xlu0 %2262, %v888
    %v2264 = vpop.permute.xlu0 %2263
    %2267 = vset.pattern.permute.xlu0 0
    %2268 = vperm.xlu0 %2267, %v889
    %v2269 = vpop.permute.xlu0 %2268
    %2272 = vset.pattern.permute.xlu0 0
    %2273 = vperm.xlu0 %2272, %v890
    %v2274 = vpop.permute.xlu0 %2273
    %2277 = vset.pattern.permute.xlu0 0
    %2278 = vperm.xlu0 %2277, %v891
    %v2279 = vpop.permute.xlu0 %2278
    %vm2281 = vcmp.gt.f32.partialorder %v413, %v2124
    %vm2282 = vcmp.gt.f32.partialorder %v415, %v2124
    %vm2283 = vcmp.gt.f32.partialorder %v670, %v2124
    %vm2284 = vcmp.gt.f32.partialorder %v672, %v2124
    %vm2285 = vcmp.gt.f32.partialorder %v419, %v2129
    %vm2286 = vcmp.gt.f32.partialorder %v421, %v2129
    %vm2287 = vcmp.gt.f32.partialorder %v676, %v2129
    %vm2288 = vcmp.gt.f32.partialorder %v678, %v2129
    %vm2289 = vcmp.gt.f32.partialorder %v425, %v2134
    %vm2290 = vcmp.gt.f32.partialorder %v427, %v2134
    %vm2291 = vcmp.gt.f32.partialorder %v682, %v2134
    %vm2292 = vcmp.gt.f32.partialorder %v684, %v2134
    %vm2293 = vcmp.gt.f32.partialorder %v431, %v2139
    %vm2294 = vcmp.gt.f32.partialorder %v433, %v2139
    %vm2295 = vcmp.gt.f32.partialorder %v688, %v2139
    %vm2296 = vcmp.gt.f32.partialorder %v690, %v2139
    %vm2297 = vcmp.gt.f32.partialorder %v437, %v2144
    %vm2298 = vcmp.gt.f32.partialorder %v439, %v2144
    %vm2299 = vcmp.gt.f32.partialorder %v694, %v2144
    %vm2300 = vcmp.gt.f32.partialorder %v696, %v2144
    %vm2301 = vcmp.gt.f32.partialorder %v443, %v2149
    %vm2302 = vcmp.gt.f32.partialorder %v445, %v2149
    %vm2303 = vcmp.gt.f32.partialorder %v700, %v2149
    %vm2304 = vcmp.gt.f32.partialorder %v702, %v2149
    %vm2305 = vcmp.gt.f32.partialorder %v449, %v2154
    %vm2306 = vcmp.gt.f32.partialorder %v451, %v2154
    %vm2307 = vcmp.gt.f32.partialorder %v706, %v2154
    %vm2308 = vcmp.gt.f32.partialorder %v708, %v2154
    %vm2309 = vcmp.gt.f32.partialorder %v455, %v2159
    %vm2310 = vcmp.gt.f32.partialorder %v457, %v2159
    %vm2311 = vcmp.gt.f32.partialorder %v712, %v2159
    %vm2312 = vcmp.gt.f32.partialorder %v714, %v2159
    %vm2313 = vcmp.gt.f32.partialorder %v461, %v2164
    %vm2314 = vcmp.gt.f32.partialorder %v463, %v2164
    %vm2315 = vcmp.gt.f32.partialorder %v718, %v2164
    %vm2316 = vcmp.gt.f32.partialorder %v720, %v2164
    %vm2317 = vcmp.gt.f32.partialorder %v467, %v2169
    %vm2318 = vcmp.gt.f32.partialorder %v469, %v2169
    %vm2319 = vcmp.gt.f32.partialorder %v724, %v2169
    %vm2320 = vcmp.gt.f32.partialorder %v726, %v2169
    %vm2321 = vcmp.gt.f32.partialorder %v473, %v2174
    %vm2322 = vcmp.gt.f32.partialorder %v475, %v2174
    %vm2323 = vcmp.gt.f32.partialorder %v730, %v2174
    %vm2324 = vcmp.gt.f32.partialorder %v732, %v2174
    %vm2325 = vcmp.gt.f32.partialorder %v479, %v2179
    %vm2326 = vcmp.gt.f32.partialorder %v481, %v2179
    %vm2327 = vcmp.gt.f32.partialorder %v736, %v2179
    %vm2328 = vcmp.gt.f32.partialorder %v738, %v2179
    %vm2329 = vcmp.gt.f32.partialorder %v485, %v2184
    %vm2330 = vcmp.gt.f32.partialorder %v487, %v2184
    %vm2331 = vcmp.gt.f32.partialorder %v742, %v2184
    %vm2332 = vcmp.gt.f32.partialorder %v744, %v2184
    %vm2333 = vcmp.gt.f32.partialorder %v491, %v2189
    %vm2334 = vcmp.gt.f32.partialorder %v493, %v2189
    %vm2335 = vcmp.gt.f32.partialorder %v748, %v2189
    %vm2336 = vcmp.gt.f32.partialorder %v750, %v2189
    %vm2337 = vcmp.gt.f32.partialorder %v497, %v2194
    %vm2338 = vcmp.gt.f32.partialorder %v499, %v2194
    %vm2339 = vcmp.gt.f32.partialorder %v754, %v2194
    %vm2340 = vcmp.gt.f32.partialorder %v756, %v2194
    %vm2341 = vcmp.gt.f32.partialorder %v503, %v2199
    %vm2342 = vcmp.gt.f32.partialorder %v505, %v2199
    %vm2343 = vcmp.gt.f32.partialorder %v760, %v2199
    %vm2344 = vcmp.gt.f32.partialorder %v762, %v2199
    %vm2345 = vcmp.gt.f32.partialorder %v509, %v2204
    %vm2346 = vcmp.gt.f32.partialorder %v511, %v2204
    %vm2347 = vcmp.gt.f32.partialorder %v766, %v2204
    %vm2348 = vcmp.gt.f32.partialorder %v768, %v2204
    %vm2349 = vcmp.gt.f32.partialorder %v515, %v2209
    %vm2350 = vcmp.gt.f32.partialorder %v517, %v2209
    %vm2351 = vcmp.gt.f32.partialorder %v772, %v2209
    %vm2352 = vcmp.gt.f32.partialorder %v774, %v2209
    %vm2353 = vcmp.gt.f32.partialorder %v521, %v2214
    %vm2354 = vcmp.gt.f32.partialorder %v523, %v2214
    %vm2355 = vcmp.gt.f32.partialorder %v778, %v2214
    %vm2356 = vcmp.gt.f32.partialorder %v780, %v2214
    %vm2357 = vcmp.gt.f32.partialorder %v527, %v2219
    %vm2358 = vcmp.gt.f32.partialorder %v529, %v2219
    %vm2359 = vcmp.gt.f32.partialorder %v784, %v2219
    %vm2360 = vcmp.gt.f32.partialorder %v786, %v2219
    %vm2361 = vcmp.gt.f32.partialorder %v533, %v2224
    %vm2362 = vcmp.gt.f32.partialorder %v535, %v2224
    %vm2363 = vcmp.gt.f32.partialorder %v790, %v2224
    %vm2364 = vcmp.gt.f32.partialorder %v792, %v2224
    %vm2365 = vcmp.gt.f32.partialorder %v539, %v2229
    %vm2366 = vcmp.gt.f32.partialorder %v541, %v2229
    %vm2367 = vcmp.gt.f32.partialorder %v796, %v2229
    %vm2368 = vcmp.gt.f32.partialorder %v798, %v2229
    %vm2369 = vcmp.gt.f32.partialorder %v545, %v2234
    %vm2370 = vcmp.gt.f32.partialorder %v547, %v2234
    %vm2371 = vcmp.gt.f32.partialorder %v802, %v2234
    %vm2372 = vcmp.gt.f32.partialorder %v804, %v2234
    %vm2373 = vcmp.gt.f32.partialorder %v551, %v2239
    %vm2374 = vcmp.gt.f32.partialorder %v553, %v2239
    %vm2375 = vcmp.gt.f32.partialorder %v808, %v2239
    %vm2376 = vcmp.gt.f32.partialorder %v810, %v2239
    %vm2377 = vcmp.gt.f32.partialorder %v557, %v2244
    %vm2378 = vcmp.gt.f32.partialorder %v559, %v2244
    %vm2379 = vcmp.gt.f32.partialorder %v814, %v2244
    %vm2380 = vcmp.gt.f32.partialorder %v816, %v2244
    %vm2381 = vcmp.gt.f32.partialorder %v563, %v2249
    %vm2382 = vcmp.gt.f32.partialorder %v565, %v2249
    %vm2383 = vcmp.gt.f32.partialorder %v820, %v2249
    %vm2384 = vcmp.gt.f32.partialorder %v822, %v2249
    %vm2385 = vcmp.gt.f32.partialorder %v569, %v2254
    %vm2386 = vcmp.gt.f32.partialorder %v571, %v2254
    %vm2387 = vcmp.gt.f32.partialorder %v826, %v2254
    %vm2388 = vcmp.gt.f32.partialorder %v828, %v2254
    %vm2389 = vcmp.gt.f32.partialorder %v575, %v2259
    %vm2390 = vcmp.gt.f32.partialorder %v577, %v2259
    %vm2391 = vcmp.gt.f32.partialorder %v832, %v2259
    %vm2392 = vcmp.gt.f32.partialorder %v834, %v2259
    %vm2393 = vcmp.gt.f32.partialorder %v581, %v2264
    %vm2394 = vcmp.gt.f32.partialorder %v583, %v2264
    %vm2395 = vcmp.gt.f32.partialorder %v838, %v2264
    %vm2396 = vcmp.gt.f32.partialorder %v840, %v2264
    %vm2397 = vcmp.gt.f32.partialorder %v587, %v2269
    %vm2398 = vcmp.gt.f32.partialorder %v589, %v2269
    %vm2399 = vcmp.gt.f32.partialorder %v844, %v2269
    %vm2400 = vcmp.gt.f32.partialorder %v846, %v2269
    %vm2401 = vcmp.gt.f32.partialorder %v593, %v2274
    %vm2402 = vcmp.gt.f32.partialorder %v595, %v2274
    %vm2403 = vcmp.gt.f32.partialorder %v850, %v2274
    %vm2404 = vcmp.gt.f32.partialorder %v852, %v2274
    %vm2405 = vcmp.gt.f32.partialorder %v599, %v2279
    %vm2406 = vcmp.gt.f32.partialorder %v601, %v2279
    %vm2407 = vcmp.gt.f32.partialorder %v856, %v2279
    %vm2408 = vcmp.gt.f32.partialorder %v858, %v2279
    %2409 = vset.pattern.permute.xlu0 0
    %2410 = vperm.xlu0 %2409, %v892
    %v2411 = vpop.permute.xlu0 %2410
    %2412 = vset.pattern.permute.xlu0 0
    %2413 = vperm.xlu0 %2412, %v893
    %v2414 = vpop.permute.xlu0 %2413
    %2415 = vset.pattern.permute.xlu0 0
    %2416 = vperm.xlu0 %2415, %v894
    %v2417 = vpop.permute.xlu0 %2416
    %2418 = vset.pattern.permute.xlu0 0
    %2419 = vperm.xlu0 %2418, %v895
    %v2420 = vpop.permute.xlu0 %2419
    %2421 = vset.pattern.permute.xlu0 0
    %2422 = vperm.xlu0 %2421, %v896
    %v2423 = vpop.permute.xlu0 %2422
    %2424 = vset.pattern.permute.xlu0 0
    %2425 = vperm.xlu0 %2424, %v897
    %v2426 = vpop.permute.xlu0 %2425
    %2427 = vset.pattern.permute.xlu0 0
    %2428 = vperm.xlu0 %2427, %v898
    %v2429 = vpop.permute.xlu0 %2428
    %2430 = vset.pattern.permute.xlu0 0
    %2431 = vperm.xlu0 %2430, %v899
    %v2432 = vpop.permute.xlu0 %2431
    %2433 = vset.pattern.permute.xlu0 0
    %2434 = vperm.xlu0 %2433, %v900
    %v2435 = vpop.permute.xlu0 %2434
    %2436 = vset.pattern.permute.xlu0 0
    %2437 = vperm.xlu0 %2436, %v901
    %v2438 = vpop.permute.xlu0 %2437
    %2439 = vset.pattern.permute.xlu0 0
    %2440 = vperm.xlu0 %2439, %v902
    %v2441 = vpop.permute.xlu0 %2440
    %2442 = vset.pattern.permute.xlu0 0
    %2443 = vperm.xlu0 %2442, %v903
    %v2444 = vpop.permute.xlu0 %2443
    %2445 = vset.pattern.permute.xlu0 0
    %2446 = vperm.xlu0 %2445, %v904
    %v2447 = vpop.permute.xlu0 %2446
    %2448 = vset.pattern.permute.xlu0 0
    %2449 = vperm.xlu0 %2448, %v905
    %v2450 = vpop.permute.xlu0 %2449
    %2451 = vset.pattern.permute.xlu0 0
    %2452 = vperm.xlu0 %2451, %v906
    %v2453 = vpop.permute.xlu0 %2452
    %2454 = vset.pattern.permute.xlu0 0
    %2455 = vperm.xlu0 %2454, %v907
    %v2456 = vpop.permute.xlu0 %2455
    %2457 = vset.pattern.permute.xlu0 0
    %2458 = vperm.xlu0 %2457, %v908
    %v2459 = vpop.permute.xlu0 %2458
    %2460 = vset.pattern.permute.xlu0 0
    %2461 = vperm.xlu0 %2460, %v909
    %v2462 = vpop.permute.xlu0 %2461
    %2463 = vset.pattern.permute.xlu0 0
    %2464 = vperm.xlu0 %2463, %v910
    %v2465 = vpop.permute.xlu0 %2464
    %2466 = vset.pattern.permute.xlu0 0
    %2467 = vperm.xlu0 %2466, %v911
    %v2468 = vpop.permute.xlu0 %2467
    %2469 = vset.pattern.permute.xlu0 0
    %2470 = vperm.xlu0 %2469, %v912
    %v2471 = vpop.permute.xlu0 %2470
    %2472 = vset.pattern.permute.xlu0 0
    %2473 = vperm.xlu0 %2472, %v913
    %v2474 = vpop.permute.xlu0 %2473
    %2475 = vset.pattern.permute.xlu0 0
    %2476 = vperm.xlu0 %2475, %v914
    %v2477 = vpop.permute.xlu0 %2476
    %2478 = vset.pattern.permute.xlu0 0
    %2479 = vperm.xlu0 %2478, %v915
    %v2480 = vpop.permute.xlu0 %2479
    %2481 = vset.pattern.permute.xlu0 0
    %2482 = vperm.xlu0 %2481, %v916
    %v2483 = vpop.permute.xlu0 %2482
    %2484 = vset.pattern.permute.xlu0 0
    %2485 = vperm.xlu0 %2484, %v917
    %v2486 = vpop.permute.xlu0 %2485
    %2487 = vset.pattern.permute.xlu0 0
    %2488 = vperm.xlu0 %2487, %v918
    %v2489 = vpop.permute.xlu0 %2488
    %2490 = vset.pattern.permute.xlu0 0
    %2491 = vperm.xlu0 %2490, %v919
    %v2492 = vpop.permute.xlu0 %2491
    %2493 = vset.pattern.permute.xlu0 0
    %2494 = vperm.xlu0 %2493, %v920
    %v2495 = vpop.permute.xlu0 %2494
    %2496 = vset.pattern.permute.xlu0 0
    %2497 = vperm.xlu0 %2496, %v921
    %v2498 = vpop.permute.xlu0 %2497
    %2499 = vset.pattern.permute.xlu0 0
    %2500 = vperm.xlu0 %2499, %v922
    %v2501 = vpop.permute.xlu0 %2500
    %2502 = vset.pattern.permute.xlu0 0
    %2503 = vperm.xlu0 %2502, %v923
    %v2504 = vpop.permute.xlu0 %2503
    %vm2505 = vcmp.ne.s32.totalorder %v2117, %v2411
    %vm2506 = vcmp.ne.s32.totalorder %v2118, %v2411
    %vm2507 = vcmp.ne.s32.totalorder %v2119, %v2411
    %vm2508 = vcmp.ne.s32.totalorder %v2120, %v2411
    %vm2509 = vcmp.ne.s32.totalorder %v2117, %v2414
    %vm2510 = vcmp.ne.s32.totalorder %v2118, %v2414
    %vm2511 = vcmp.ne.s32.totalorder %v2119, %v2414
    %vm2512 = vcmp.ne.s32.totalorder %v2120, %v2414
    %vm2513 = vcmp.ne.s32.totalorder %v2117, %v2417
    %vm2514 = vcmp.ne.s32.totalorder %v2118, %v2417
    %vm2515 = vcmp.ne.s32.totalorder %v2119, %v2417
    %vm2516 = vcmp.ne.s32.totalorder %v2120, %v2417
    %vm2517 = vcmp.ne.s32.totalorder %v2117, %v2420
    %vm2518 = vcmp.ne.s32.totalorder %v2118, %v2420
    %vm2519 = vcmp.ne.s32.totalorder %v2119, %v2420
    %vm2520 = vcmp.ne.s32.totalorder %v2120, %v2420
    %vm2521 = vcmp.ne.s32.totalorder %v2117, %v2423
    %vm2522 = vcmp.ne.s32.totalorder %v2118, %v2423
    %vm2523 = vcmp.ne.s32.totalorder %v2119, %v2423
    %vm2524 = vcmp.ne.s32.totalorder %v2120, %v2423
    %vm2525 = vcmp.ne.s32.totalorder %v2117, %v2426
    %vm2526 = vcmp.ne.s32.totalorder %v2118, %v2426
    %vm2527 = vcmp.ne.s32.totalorder %v2119, %v2426
    %vm2528 = vcmp.ne.s32.totalorder %v2120, %v2426
    %vm2529 = vcmp.ne.s32.totalorder %v2117, %v2429
    %vm2530 = vcmp.ne.s32.totalorder %v2118, %v2429
    %vm2531 = vcmp.ne.s32.totalorder %v2119, %v2429
    %vm2532 = vcmp.ne.s32.totalorder %v2120, %v2429
    %vm2533 = vcmp.ne.s32.totalorder %v2117, %v2432
    %vm2534 = vcmp.ne.s32.totalorder %v2118, %v2432
    %vm2535 = vcmp.ne.s32.totalorder %v2119, %v2432
    %vm2536 = vcmp.ne.s32.totalorder %v2120, %v2432
    %vm2537 = vcmp.ne.s32.totalorder %v2117, %v2435
    %vm2538 = vcmp.ne.s32.totalorder %v2118, %v2435
    %vm2539 = vcmp.ne.s32.totalorder %v2119, %v2435
    %vm2540 = vcmp.ne.s32.totalorder %v2120, %v2435
    %vm2541 = vcmp.ne.s32.totalorder %v2117, %v2438
    %vm2542 = vcmp.ne.s32.totalorder %v2118, %v2438
    %vm2543 = vcmp.ne.s32.totalorder %v2119, %v2438
    %vm2544 = vcmp.ne.s32.totalorder %v2120, %v2438
    %vm2545 = vcmp.ne.s32.totalorder %v2117, %v2441
    %vm2546 = vcmp.ne.s32.totalorder %v2118, %v2441
    %vm2547 = vcmp.ne.s32.totalorder %v2119, %v2441
    %vm2548 = vcmp.ne.s32.totalorder %v2120, %v2441
    %vm2549 = vcmp.ne.s32.totalorder %v2117, %v2444
    %vm2550 = vcmp.ne.s32.totalorder %v2118, %v2444
    %vm2551 = vcmp.ne.s32.totalorder %v2119, %v2444
    %vm2552 = vcmp.ne.s32.totalorder %v2120, %v2444
    %vm2553 = vcmp.ne.s32.totalorder %v2117, %v2447
    %vm2554 = vcmp.ne.s32.totalorder %v2118, %v2447
    %vm2555 = vcmp.ne.s32.totalorder %v2119, %v2447
    %vm2556 = vcmp.ne.s32.totalorder %v2120, %v2447
    %vm2557 = vcmp.ne.s32.totalorder %v2117, %v2450
    %vm2558 = vcmp.ne.s32.totalorder %v2118, %v2450
    %vm2559 = vcmp.ne.s32.totalorder %v2119, %v2450
    %vm2560 = vcmp.ne.s32.totalorder %v2120, %v2450
    %vm2561 = vcmp.ne.s32.totalorder %v2117, %v2453
    %vm2562 = vcmp.ne.s32.totalorder %v2118, %v2453
    %vm2563 = vcmp.ne.s32.totalorder %v2119, %v2453
    %vm2564 = vcmp.ne.s32.totalorder %v2120, %v2453
    %vm2565 = vcmp.ne.s32.totalorder %v2117, %v2456
    %vm2566 = vcmp.ne.s32.totalorder %v2118, %v2456
    %vm2567 = vcmp.ne.s32.totalorder %v2119, %v2456
    %vm2568 = vcmp.ne.s32.totalorder %v2120, %v2456
    %vm2569 = vcmp.ne.s32.totalorder %v2117, %v2459
    %vm2570 = vcmp.ne.s32.totalorder %v2118, %v2459
    %vm2571 = vcmp.ne.s32.totalorder %v2119, %v2459
    %vm2572 = vcmp.ne.s32.totalorder %v2120, %v2459
    %vm2573 = vcmp.ne.s32.totalorder %v2117, %v2462
    %vm2574 = vcmp.ne.s32.totalorder %v2118, %v2462
    %vm2575 = vcmp.ne.s32.totalorder %v2119, %v2462
    %vm2576 = vcmp.ne.s32.totalorder %v2120, %v2462
    %vm2577 = vcmp.ne.s32.totalorder %v2117, %v2465
    %vm2578 = vcmp.ne.s32.totalorder %v2118, %v2465
    %vm2579 = vcmp.ne.s32.totalorder %v2119, %v2465
    %vm2580 = vcmp.ne.s32.totalorder %v2120, %v2465
    %vm2581 = vcmp.ne.s32.totalorder %v2117, %v2468
    %vm2582 = vcmp.ne.s32.totalorder %v2118, %v2468
    %vm2583 = vcmp.ne.s32.totalorder %v2119, %v2468
    %vm2584 = vcmp.ne.s32.totalorder %v2120, %v2468
    %vm2585 = vcmp.ne.s32.totalorder %v2117, %v2471
    %vm2586 = vcmp.ne.s32.totalorder %v2118, %v2471
    %vm2587 = vcmp.ne.s32.totalorder %v2119, %v2471
    %vm2588 = vcmp.ne.s32.totalorder %v2120, %v2471
    %vm2589 = vcmp.ne.s32.totalorder %v2117, %v2474
    %vm2590 = vcmp.ne.s32.totalorder %v2118, %v2474
    %vm2591 = vcmp.ne.s32.totalorder %v2119, %v2474
    %vm2592 = vcmp.ne.s32.totalorder %v2120, %v2474
    %vm2593 = vcmp.ne.s32.totalorder %v2117, %v2477
    %vm2594 = vcmp.ne.s32.totalorder %v2118, %v2477
    %vm2595 = vcmp.ne.s32.totalorder %v2119, %v2477
    %vm2596 = vcmp.ne.s32.totalorder %v2120, %v2477
    %vm2597 = vcmp.ne.s32.totalorder %v2117, %v2480
    %vm2598 = vcmp.ne.s32.totalorder %v2118, %v2480
    %vm2599 = vcmp.ne.s32.totalorder %v2119, %v2480
    %vm2600 = vcmp.ne.s32.totalorder %v2120, %v2480
    %vm2601 = vcmp.ne.s32.totalorder %v2117, %v2483
    %vm2602 = vcmp.ne.s32.totalorder %v2118, %v2483
    %vm2603 = vcmp.ne.s32.totalorder %v2119, %v2483
    %vm2604 = vcmp.ne.s32.totalorder %v2120, %v2483
    %vm2605 = vcmp.ne.s32.totalorder %v2117, %v2486
    %vm2606 = vcmp.ne.s32.totalorder %v2118, %v2486
    %vm2607 = vcmp.ne.s32.totalorder %v2119, %v2486
    %vm2608 = vcmp.ne.s32.totalorder %v2120, %v2486
    %vm2609 = vcmp.ne.s32.totalorder %v2117, %v2489
    %vm2610 = vcmp.ne.s32.totalorder %v2118, %v2489
    %vm2611 = vcmp.ne.s32.totalorder %v2119, %v2489
    %vm2612 = vcmp.ne.s32.totalorder %v2120, %v2489
    %vm2613 = vcmp.ne.s32.totalorder %v2117, %v2492
    %vm2614 = vcmp.ne.s32.totalorder %v2118, %v2492
    %vm2615 = vcmp.ne.s32.totalorder %v2119, %v2492
    %vm2616 = vcmp.ne.s32.totalorder %v2120, %v2492
    %vm2617 = vcmp.ne.s32.totalorder %v2117, %v2495
    %vm2618 = vcmp.ne.s32.totalorder %v2118, %v2495
    %vm2619 = vcmp.ne.s32.totalorder %v2119, %v2495
    %vm2620 = vcmp.ne.s32.totalorder %v2120, %v2495
    %vm2621 = vcmp.ne.s32.totalorder %v2117, %v2498
    %vm2622 = vcmp.ne.s32.totalorder %v2118, %v2498
    %vm2623 = vcmp.ne.s32.totalorder %v2119, %v2498
    %vm2624 = vcmp.ne.s32.totalorder %v2120, %v2498
    %vm2625 = vcmp.ne.s32.totalorder %v2117, %v2501
    %vm2626 = vcmp.ne.s32.totalorder %v2118, %v2501
    %vm2627 = vcmp.ne.s32.totalorder %v2119, %v2501
    %vm2628 = vcmp.ne.s32.totalorder %v2120, %v2501
    %vm2629 = vcmp.ne.s32.totalorder %v2117, %v2504
    %vm2630 = vcmp.ne.s32.totalorder %v2118, %v2504
    %vm2631 = vcmp.ne.s32.totalorder %v2119, %v2504
    %vm2632 = vcmp.ne.s32.totalorder %v2120, %v2504
    %vm2633 = vmand %vm2281, %vm2505
    %vm2634 = vmand %vm2282, %vm2506
    %vm2635 = vmand %vm2283, %vm2507
    %vm2636 = vmand %vm2284, %vm2508
    %vm2637 = vmand %vm2285, %vm2509
    %vm2638 = vmand %vm2286, %vm2510
    %vm2639 = vmand %vm2287, %vm2511
    %vm2640 = vmand %vm2288, %vm2512
    %vm2641 = vmand %vm2289, %vm2513
    %vm2642 = vmand %vm2290, %vm2514
    %vm2643 = vmand %vm2291, %vm2515
    %vm2644 = vmand %vm2292, %vm2516
    %vm2645 = vmand %vm2293, %vm2517
    %vm2646 = vmand %vm2294, %vm2518
    %vm2647 = vmand %vm2295, %vm2519
    %vm2648 = vmand %vm2296, %vm2520
    %vm2649 = vmand %vm2297, %vm2521
    %vm2650 = vmand %vm2298, %vm2522
    %vm2651 = vmand %vm2299, %vm2523
    %vm2652 = vmand %vm2300, %vm2524
    %vm2653 = vmand %vm2301, %vm2525
    %vm2654 = vmand %vm2302, %vm2526
    %vm2655 = vmand %vm2303, %vm2527
    %vm2656 = vmand %vm2304, %vm2528
    %vm2657 = vmand %vm2305, %vm2529
    %vm2658 = vmand %vm2306, %vm2530
    %vm2659 = vmand %vm2307, %vm2531
    %vm2660 = vmand %vm2308, %vm2532
    %vm2661 = vmand %vm2309, %vm2533
    %vm2662 = vmand %vm2310, %vm2534
    %vm2663 = vmand %vm2311, %vm2535
    %vm2664 = vmand %vm2312, %vm2536
    %vm2665 = vmand %vm2313, %vm2537
    %vm2666 = vmand %vm2314, %vm2538
    %vm2667 = vmand %vm2315, %vm2539
    %vm2668 = vmand %vm2316, %vm2540
    %vm2669 = vmand %vm2317, %vm2541
    %vm2670 = vmand %vm2318, %vm2542
    %vm2671 = vmand %vm2319, %vm2543
    %vm2672 = vmand %vm2320, %vm2544
    %vm2673 = vmand %vm2321, %vm2545
    %vm2674 = vmand %vm2322, %vm2546
    %vm2675 = vmand %vm2323, %vm2547
    %vm2676 = vmand %vm2324, %vm2548
    %vm2677 = vmand %vm2325, %vm2549
    %vm2678 = vmand %vm2326, %vm2550
    %vm2679 = vmand %vm2327, %vm2551
    %vm2680 = vmand %vm2328, %vm2552
    %vm2681 = vmand %vm2329, %vm2553
    %vm2682 = vmand %vm2330, %vm2554
    %vm2683 = vmand %vm2331, %vm2555
    %vm2684 = vmand %vm2332, %vm2556
    %vm2685 = vmand %vm2333, %vm2557
    %vm2686 = vmand %vm2334, %vm2558
    %vm2687 = vmand %vm2335, %vm2559
    %vm2688 = vmand %vm2336, %vm2560
    %vm2689 = vmand %vm2337, %vm2561
    %vm2690 = vmand %vm2338, %vm2562
    %vm2691 = vmand %vm2339, %vm2563
    %vm2692 = vmand %vm2340, %vm2564
    %vm2693 = vmand %vm2341, %vm2565
    %vm2694 = vmand %vm2342, %vm2566
    %vm2695 = vmand %vm2343, %vm2567
    %vm2696 = vmand %vm2344, %vm2568
    %vm2697 = vmand %vm2345, %vm2569
    %vm2698 = vmand %vm2346, %vm2570
    %vm2699 = vmand %vm2347, %vm2571
    %vm2700 = vmand %vm2348, %vm2572
    %vm2701 = vmand %vm2349, %vm2573
    %vm2702 = vmand %vm2350, %vm2574
    %vm2703 = vmand %vm2351, %vm2575
    %vm2704 = vmand %vm2352, %vm2576
    %vm2705 = vmand %vm2353, %vm2577
    %vm2706 = vmand %vm2354, %vm2578
    %vm2707 = vmand %vm2355, %vm2579
    %vm2708 = vmand %vm2356, %vm2580
    %vm2709 = vmand %vm2357, %vm2581
    %vm2710 = vmand %vm2358, %vm2582
    %vm2711 = vmand %vm2359, %vm2583
    %vm2712 = vmand %vm2360, %vm2584
    %vm2713 = vmand %vm2361, %vm2585
    %vm2714 = vmand %vm2362, %vm2586
    %vm2715 = vmand %vm2363, %vm2587
    %vm2716 = vmand %vm2364, %vm2588
    %vm2717 = vmand %vm2365, %vm2589
    %vm2718 = vmand %vm2366, %vm2590
    %vm2719 = vmand %vm2367, %vm2591
    %vm2720 = vmand %vm2368, %vm2592
    %vm2721 = vmand %vm2369, %vm2593
    %vm2722 = vmand %vm2370, %vm2594
    %vm2723 = vmand %vm2371, %vm2595
    %vm2724 = vmand %vm2372, %vm2596
    %vm2725 = vmand %vm2373, %vm2597
    %vm2726 = vmand %vm2374, %vm2598
    %vm2727 = vmand %vm2375, %vm2599
    %vm2728 = vmand %vm2376, %vm2600
    %vm2729 = vmand %vm2377, %vm2601
    %vm2730 = vmand %vm2378, %vm2602
    %vm2731 = vmand %vm2379, %vm2603
    %vm2732 = vmand %vm2380, %vm2604
    %vm2733 = vmand %vm2381, %vm2605
    %vm2734 = vmand %vm2382, %vm2606
    %vm2735 = vmand %vm2383, %vm2607
    %vm2736 = vmand %vm2384, %vm2608
    %vm2737 = vmand %vm2385, %vm2609
    %vm2738 = vmand %vm2386, %vm2610
    %vm2739 = vmand %vm2387, %vm2611
    %vm2740 = vmand %vm2388, %vm2612
    %vm2741 = vmand %vm2389, %vm2613
    %vm2742 = vmand %vm2390, %vm2614
    %vm2743 = vmand %vm2391, %vm2615
    %vm2744 = vmand %vm2392, %vm2616
    %vm2745 = vmand %vm2393, %vm2617
    %vm2746 = vmand %vm2394, %vm2618
    %vm2747 = vmand %vm2395, %vm2619
    %vm2748 = vmand %vm2396, %vm2620
    %vm2749 = vmand %vm2397, %vm2621
    %vm2750 = vmand %vm2398, %vm2622
    %vm2751 = vmand %vm2399, %vm2623
    %vm2752 = vmand %vm2400, %vm2624
    %vm2753 = vmand %vm2401, %vm2625
    %vm2754 = vmand %vm2402, %vm2626
    %vm2755 = vmand %vm2403, %vm2627
    %vm2756 = vmand %vm2404, %vm2628
    %vm2757 = vmand %vm2405, %vm2629
    %vm2758 = vmand %vm2406, %vm2630
    %vm2759 = vmand %vm2407, %vm2631
    %vm2760 = vmand %vm2408, %vm2632
    %v2761 = vld [vmem:[#allocation4] sm:$0xff]
    %v2762 = vld [vmem:[#allocation4 + $0x8] sm:$0xff]
    %v2763 = vld [vmem:[#allocation4 + $0x10] sm:$0xff]
    %v2764 = vld [vmem:[#allocation4 + $0x18] sm:$0xff]
    %v2765 = vld [vmem:[#allocation4 + $0x20] sm:$0xff]
    %v2766 = vld [vmem:[#allocation4 + $0x28] sm:$0xff]
    %v2767 = vld [vmem:[#allocation4 + $0x30] sm:$0xff]
    %v2768 = vld [vmem:[#allocation4 + $0x38] sm:$0xff]
    %v2769 = vld [vmem:[#allocation4 + $0x40] sm:$0xff]
    %v2770 = vld [vmem:[#allocation4 + $0x48] sm:$0xff]
    %v2771 = vld [vmem:[#allocation4 + $0x50] sm:$0xff]
    %v2772 = vld [vmem:[#allocation4 + $0x58] sm:$0xff]
    %v2773 = vld [vmem:[#allocation4 + $0x60] sm:$0xff]
    %v2774 = vld [vmem:[#allocation4 + $0x68] sm:$0xff]
    %v2775 = vld [vmem:[#allocation4 + $0x70] sm:$0xff]
    %v2776 = vld [vmem:[#allocation4 + $0x78] sm:$0xff]
    %v2777 = vld [vmem:[#allocation4 + $0x80] sm:$0xff]
    %v2778 = vld [vmem:[#allocation4 + $0x88] sm:$0xff]
    %v2779 = vld [vmem:[#allocation4 + $0x90] sm:$0xff]
    %v2780 = vld [vmem:[#allocation4 + $0x98] sm:$0xff]
    %v2781 = vld [vmem:[#allocation4 + $0xa0] sm:$0xff]
    %v2782 = vld [vmem:[#allocation4 + $0xa8] sm:$0xff]
    %v2783 = vld [vmem:[#allocation4 + $0xb0] sm:$0xff]
    %v2784 = vld [vmem:[#allocation4 + $0xb8] sm:$0xff]
    %v2785 = vld [vmem:[#allocation4 + $0xc0] sm:$0xff]
    %v2786 = vld [vmem:[#allocation4 + $0xc8] sm:$0xff]
    %v2787 = vld [vmem:[#allocation4 + $0xd0] sm:$0xff]
    %v2788 = vld [vmem:[#allocation4 + $0xd8] sm:$0xff]
    %v2789 = vld [vmem:[#allocation4 + $0xe0] sm:$0xff]
    %v2790 = vld [vmem:[#allocation4 + $0xe8] sm:$0xff]
    %v2791 = vld [vmem:[#allocation4 + $0xf0] sm:$0xff]
    %v2792 = vld [vmem:[#allocation4 + $0xf8] sm:$0xff]
    %v2793 = vsel %vm2633, 1, 0
    %v2794 = vsel %vm2634, 1, 0
    %v2795 = vsel %vm2635, 1, 0
    %v2796 = vsel %vm2636, 1, 0
    %v2797 = vsel %vm2637, 1, 0
    %v2798 = vsel %vm2638, 1, 0
    %v2799 = vsel %vm2639, 1, 0
    %v2800 = vsel %vm2640, 1, 0
    %v2801 = vsel %vm2641, 1, 0
    %v2802 = vsel %vm2642, 1, 0
    %v2803 = vsel %vm2643, 1, 0
    %v2804 = vsel %vm2644, 1, 0
    %v2805 = vsel %vm2645, 1, 0
    %v2806 = vsel %vm2646, 1, 0
    %v2807 = vsel %vm2647, 1, 0
    %v2808 = vsel %vm2648, 1, 0
    %v2809 = vsel %vm2649, 1, 0
    %v2810 = vsel %vm2650, 1, 0
    %v2811 = vsel %vm2651, 1, 0
    %v2812 = vsel %vm2652, 1, 0
    %v2813 = vsel %vm2653, 1, 0
    %v2814 = vsel %vm2654, 1, 0
    %v2815 = vsel %vm2655, 1, 0
    %v2816 = vsel %vm2656, 1, 0
    %v2817 = vsel %vm2657, 1, 0
    %v2818 = vsel %vm2658, 1, 0
    %v2819 = vsel %vm2659, 1, 0
    %v2820 = vsel %vm2660, 1, 0
    %v2821 = vsel %vm2661, 1, 0
    %v2822 = vsel %vm2662, 1, 0
    %v2823 = vsel %vm2663, 1, 0
    %v2824 = vsel %vm2664, 1, 0
    %v2825 = vsel %vm2665, 1, 0
    %v2826 = vsel %vm2666, 1, 0
    %v2827 = vsel %vm2667, 1, 0
    %v2828 = vsel %vm2668, 1, 0
    %v2829 = vsel %vm2669, 1, 0
    %v2830 = vsel %vm2670, 1, 0
    %v2831 = vsel %vm2671, 1, 0
    %v2832 = vsel %vm2672, 1, 0
    %v2833 = vsel %vm2673, 1, 0
    %v2834 = vsel %vm2674, 1, 0
    %v2835 = vsel %vm2675, 1, 0
    %v2836 = vsel %vm2676, 1, 0
    %v2837 = vsel %vm2677, 1, 0
    %v2838 = vsel %vm2678, 1, 0
    %v2839 = vsel %vm2679, 1, 0
    %v2840 = vsel %vm2680, 1, 0
    %v2841 = vsel %vm2681, 1, 0
    %v2842 = vsel %vm2682, 1, 0
    %v2843 = vsel %vm2683, 1, 0
    %v2844 = vsel %vm2684, 1, 0
    %v2845 = vsel %vm2685, 1, 0
    %v2846 = vsel %vm2686, 1, 0
    %v2847 = vsel %vm2687, 1, 0
    %v2848 = vsel %vm2688, 1, 0
    %v2849 = vsel %vm2689, 1, 0
    %v2850 = vsel %vm2690, 1, 0
    %v2851 = vsel %vm2691, 1, 0
    %v2852 = vsel %vm2692, 1, 0
    %v2853 = vsel %vm2693, 1, 0
    %v2854 = vsel %vm2694, 1, 0
    %v2855 = vsel %vm2695, 1, 0
    %v2856 = vsel %vm2696, 1, 0
    %v2857 = vsel %vm2697, 1, 0
    %v2858 = vsel %vm2698, 1, 0
    %v2859 = vsel %vm2699, 1, 0
    %v2860 = vsel %vm2700, 1, 0
    %v2861 = vsel %vm2701, 1, 0
    %v2862 = vsel %vm2702, 1, 0
    %v2863 = vsel %vm2703, 1, 0
    %v2864 = vsel %vm2704, 1, 0
    %v2865 = vsel %vm2705, 1, 0
    %v2866 = vsel %vm2706, 1, 0
    %v2867 = vsel %vm2707, 1, 0
    %v2868 = vsel %vm2708, 1, 0
    %v2869 = vsel %vm2709, 1, 0
    %v2870 = vsel %vm2710, 1, 0
    %v2871 = vsel %vm2711, 1, 0
    %v2872 = vsel %vm2712, 1, 0
    %v2873 = vsel %vm2713, 1, 0
    %v2874 = vsel %vm2714, 1, 0
    %v2875 = vsel %vm2715, 1, 0
    %v2876 = vsel %vm2716, 1, 0
    %v2877 = vsel %vm2717, 1, 0
    %v2878 = vsel %vm2718, 1, 0
    %v2879 = vsel %vm2719, 1, 0
    %v2880 = vsel %vm2720, 1, 0
    %v2881 = vsel %vm2721, 1, 0
    %v2882 = vsel %vm2722, 1, 0
    %v2883 = vsel %vm2723, 1, 0
    %v2884 = vsel %vm2724, 1, 0
    %v2885 = vsel %vm2725, 1, 0
    %v2886 = vsel %vm2726, 1, 0
    %v2887 = vsel %vm2727, 1, 0
    %v2888 = vsel %vm2728, 1, 0
    %v2889 = vsel %vm2729, 1, 0
    %v2890 = vsel %vm2730, 1, 0
    %v2891 = vsel %vm2731, 1, 0
    %v2892 = vsel %vm2732, 1, 0
    %v2893 = vsel %vm2733, 1, 0
    %v2894 = vsel %vm2734, 1, 0
    %v2895 = vsel %vm2735, 1, 0
    %v2896 = vsel %vm2736, 1, 0
    %v2897 = vsel %vm2737, 1, 0
    %v2898 = vsel %vm2738, 1, 0
    %v2899 = vsel %vm2739, 1, 0
    %v2900 = vsel %vm2740, 1, 0
    %v2901 = vsel %vm2741, 1, 0
    %v2902 = vsel %vm2742, 1, 0
    %v2903 = vsel %vm2743, 1, 0
    %v2904 = vsel %vm2744, 1, 0
    %v2905 = vsel %vm2745, 1, 0
    %v2906 = vsel %vm2746, 1, 0
    %v2907 = vsel %vm2747, 1, 0
    %v2908 = vsel %vm2748, 1, 0
    %v2909 = vsel %vm2749, 1, 0
    %v2910 = vsel %vm2750, 1, 0
    %v2911 = vsel %vm2751, 1, 0
    %v2912 = vsel %vm2752, 1, 0
    %v2913 = vsel %vm2753, 1, 0
    %v2914 = vsel %vm2754, 1, 0
    %v2915 = vsel %vm2755, 1, 0
    %v2916 = vsel %vm2756, 1, 0
    %v2917 = vsel %vm2757, 1, 0
    %v2918 = vsel %vm2758, 1, 0
    %v2919 = vsel %vm2759, 1, 0
    %v2920 = vsel %vm2760, 1, 0
    %v2921 = vcvt.s32.f32 %v2793
    %v2922 = vcvt.s32.f32 %v2794
    %v2923 = vcvt.s32.f32 %v2795
    %v2924 = vcvt.s32.f32 %v2796
    %v2925 = vcvt.s32.f32 %v2797
    %v2926 = vcvt.s32.f32 %v2798
    %v2927 = vcvt.s32.f32 %v2799
    %v2928 = vcvt.s32.f32 %v2800
    %v2929 = vcvt.s32.f32 %v2801
    %v2930 = vcvt.s32.f32 %v2802
    %v2931 = vcvt.s32.f32 %v2803
    %v2932 = vcvt.s32.f32 %v2804
    %v2933 = vcvt.s32.f32 %v2805
    %v2934 = vcvt.s32.f32 %v2806
    %v2935 = vcvt.s32.f32 %v2807
    %v2936 = vcvt.s32.f32 %v2808
    %v2937 = vcvt.s32.f32 %v2809
    %v2938 = vcvt.s32.f32 %v2810
    %v2939 = vcvt.s32.f32 %v2811
    %v2940 = vcvt.s32.f32 %v2812
    %v2941 = vcvt.s32.f32 %v2813
    %v2942 = vcvt.s32.f32 %v2814
    %v2943 = vcvt.s32.f32 %v2815
    %v2944 = vcvt.s32.f32 %v2816
    %v2945 = vcvt.s32.f32 %v2817
    %v2946 = vcvt.s32.f32 %v2818
    %v2947 = vcvt.s32.f32 %v2819
    %v2948 = vcvt.s32.f32 %v2820
    %v2949 = vcvt.s32.f32 %v2821
    %v2950 = vcvt.s32.f32 %v2822
    %v2951 = vcvt.s32.f32 %v2823
    %v2952 = vcvt.s32.f32 %v2824
    %v2953 = vcvt.s32.f32 %v2825
    %v2954 = vcvt.s32.f32 %v2826
    %v2955 = vcvt.s32.f32 %v2827
    %v2956 = vcvt.s32.f32 %v2828
    %v2957 = vcvt.s32.f32 %v2829
    %v2958 = vcvt.s32.f32 %v2830
    %v2959 = vcvt.s32.f32 %v2831
    %v2960 = vcvt.s32.f32 %v2832
    %v2961 = vcvt.s32.f32 %v2833
    %v2962 = vcvt.s32.f32 %v2834
    %v2963 = vcvt.s32.f32 %v2835
    %v2964 = vcvt.s32.f32 %v2836
    %v2965 = vcvt.s32.f32 %v2837
    %v2966 = vcvt.s32.f32 %v2838
    %v2967 = vcvt.s32.f32 %v2839
    %v2968 = vcvt.s32.f32 %v2840
    %v2969 = vcvt.s32.f32 %v2841
    %v2970 = vcvt.s32.f32 %v2842
    %v2971 = vcvt.s32.f32 %v2843
    %v2972 = vcvt.s32.f32 %v2844
    %v2973 = vcvt.s32.f32 %v2845
    %v2974 = vcvt.s32.f32 %v2846
    %v2975 = vcvt.s32.f32 %v2847
    %v2976 = vcvt.s32.f32 %v2848
    %v2977 = vcvt.s32.f32 %v2849
    %v2978 = vcvt.s32.f32 %v2850
    %v2979 = vcvt.s32.f32 %v2851
    %v2980 = vcvt.s32.f32 %v2852
    %v2981 = vcvt.s32.f32 %v2853
    %v2982 = vcvt.s32.f32 %v2854
    %v2983 = vcvt.s32.f32 %v2855
    %v2984 = vcvt.s32.f32 %v2856
    %v2985 = vcvt.s32.f32 %v2857
    %v2986 = vcvt.s32.f32 %v2858
    %v2987 = vcvt.s32.f32 %v2859
    %v2988 = vcvt.s32.f32 %v2860
    %v2989 = vcvt.s32.f32 %v2861
    %v2990 = vcvt.s32.f32 %v2862
    %v2991 = vcvt.s32.f32 %v2863
    %v2992 = vcvt.s32.f32 %v2864
    %v2993 = vcvt.s32.f32 %v2865
    %v2994 = vcvt.s32.f32 %v2866
    %v2995 = vcvt.s32.f32 %v2867
    %v2996 = vcvt.s32.f32 %v2868
    %v2997 = vcvt.s32.f32 %v2869
    %v2998 = vcvt.s32.f32 %v2870
    %v2999 = vcvt.s32.f32 %v2871
    %v3000 = vcvt.s32.f32 %v2872
    %v3001 = vcvt.s32.f32 %v2873
    %v3002 = vcvt.s32.f32 %v2874
    %v3003 = vcvt.s32.f32 %v2875
    %v3004 = vcvt.s32.f32 %v2876
    %v3005 = vcvt.s32.f32 %v2877
    %v3006 = vcvt.s32.f32 %v2878
    %v3007 = vcvt.s32.f32 %v2879
    %v3008 = vcvt.s32.f32 %v2880
    %v3009 = vcvt.s32.f32 %v2881
    %v3010 = vcvt.s32.f32 %v2882
    %v3011 = vcvt.s32.f32 %v2883
    %v3012 = vcvt.s32.f32 %v2884
    %v3013 = vcvt.s32.f32 %v2885
    %v3014 = vcvt.s32.f32 %v2886
    %v3015 = vcvt.s32.f32 %v2887
    %v3016 = vcvt.s32.f32 %v2888
    %v3017 = vcvt.s32.f32 %v2889
    %v3018 = vcvt.s32.f32 %v2890
    %v3019 = vcvt.s32.f32 %v2891
    %v3020 = vcvt.s32.f32 %v2892
    %v3021 = vcvt.s32.f32 %v2893
    %v3022 = vcvt.s32.f32 %v2894
    %v3023 = vcvt.s32.f32 %v2895
    %v3024 = vcvt.s32.f32 %v2896
    %v3025 = vcvt.s32.f32 %v2897
    %v3026 = vcvt.s32.f32 %v2898
    %v3027 = vcvt.s32.f32 %v2899
    %v3028 = vcvt.s32.f32 %v2900
    %v3029 = vcvt.s32.f32 %v2901
    %v3030 = vcvt.s32.f32 %v2902
    %v3031 = vcvt.s32.f32 %v2903
    %v3032 = vcvt.s32.f32 %v2904
    %v3033 = vcvt.s32.f32 %v2905
    %v3034 = vcvt.s32.f32 %v2906
    %v3035 = vcvt.s32.f32 %v2907
    %v3036 = vcvt.s32.f32 %v2908
    %v3037 = vcvt.s32.f32 %v2909
    %v3038 = vcvt.s32.f32 %v2910
    %v3039 = vcvt.s32.f32 %v2911
    %v3040 = vcvt.s32.f32 %v2912
    %v3041 = vcvt.s32.f32 %v2913
    %v3042 = vcvt.s32.f32 %v2914
    %v3043 = vcvt.s32.f32 %v2915
    %v3044 = vcvt.s32.f32 %v2916
    %v3045 = vcvt.s32.f32 %v2917
    %v3046 = vcvt.s32.f32 %v2918
    %v3047 = vcvt.s32.f32 %v2919
    %v3048 = vcvt.s32.f32 %v2920
    %v3049 = vadd.f32 %v2921, %v2922
    %v3050 = vadd.f32 %v3049, %v2923
    %v3051 = vadd.f32 %v3050, %v2924
    %3052 = vadd.xlane.f32.xlu0 %v3051
    %v3053 = vpop.xlane.xlu0 %3052
    %v3054 = vadd.f32 %v2925, %v2926
    %v3055 = vadd.f32 %v3054, %v2927
    %v3056 = vadd.f32 %v3055, %v2928
    %3057 = vadd.xlane.f32.xlu0 %v3056
    %v3058 = vpop.xlane.xlu0 %3057
    %v3059 = vadd.f32 %v2929, %v2930
    %v3060 = vadd.f32 %v3059, %v2931
    %v3061 = vadd.f32 %v3060, %v2932
    %3062 = vadd.xlane.f32.xlu0 %v3061
    %v3063 = vpop.xlane.xlu0 %3062
    %v3064 = vadd.f32 %v2933, %v2934
    %v3065 = vadd.f32 %v3064, %v2935
    %v3066 = vadd.f32 %v3065, %v2936
    %3067 = vadd.xlane.f32.xlu0 %v3066
    %v3068 = vpop.xlane.xlu0 %3067
    %v3069 = vadd.f32 %v2937, %v2938
    %v3070 = vadd.f32 %v3069, %v2939
    %v3071 = vadd.f32 %v3070, %v2940
    %3072 = vadd.xlane.f32.xlu0 %v3071
    %v3073 = vpop.xlane.xlu0 %3072
    %v3074 = vadd.f32 %v2941, %v2942
    %v3075 = vadd.f32 %v3074, %v2943
    %v3076 = vadd.f32 %v3075, %v2944
    %3077 = vadd.xlane.f32.xlu0 %v3076
    %v3078 = vpop.xlane.xlu0 %3077
    %v3079 = vadd.f32 %v2945, %v2946
    %v3080 = vadd.f32 %v3079, %v2947
    %v3081 = vadd.f32 %v3080, %v2948
    %3082 = vadd.xlane.f32.xlu0 %v3081
    %v3083 = vpop.xlane.xlu0 %3082
    %v3084 = vadd.f32 %v2949, %v2950
    %v3085 = vadd.f32 %v3084, %v2951
    %v3086 = vadd.f32 %v3085, %v2952
    %3087 = vadd.xlane.f32.xlu0 %v3086
    %v3088 = vpop.xlane.xlu0 %3087
    %v3089 = vadd.f32 %v2953, %v2954
    %v3090 = vadd.f32 %v3089, %v2955
    %v3091 = vadd.f32 %v3090, %v2956
    %3092 = vadd.xlane.f32.xlu0 %v3091
    %v3093 = vpop.xlane.xlu0 %3092
    %v3094 = vadd.f32 %v2957, %v2958
    %v3095 = vadd.f32 %v3094, %v2959
    %v3096 = vadd.f32 %v3095, %v2960
    %3097 = vadd.xlane.f32.xlu0 %v3096
    %v3098 = vpop.xlane.xlu0 %3097
    %v3099 = vadd.f32 %v2961, %v2962
    %v3100 = vadd.f32 %v3099, %v2963
    %v3101 = vadd.f32 %v3100, %v2964
    %3102 = vadd.xlane.f32.xlu0 %v3101
    %v3103 = vpop.xlane.xlu0 %3102
    %v3104 = vadd.f32 %v2965, %v2966
    %v3105 = vadd.f32 %v3104, %v2967
    %v3106 = vadd.f32 %v3105, %v2968
    %3107 = vadd.xlane.f32.xlu0 %v3106
    %v3108 = vpop.xlane.xlu0 %3107
    %v3109 = vadd.f32 %v2969, %v2970
    %v3110 = vadd.f32 %v3109, %v2971
    %v3111 = vadd.f32 %v3110, %v2972
    %3112 = vadd.xlane.f32.xlu0 %v3111
    %v3113 = vpop.xlane.xlu0 %3112
    %v3114 = vadd.f32 %v2973, %v2974
    %v3115 = vadd.f32 %v3114, %v2975
    %v3116 = vadd.f32 %v3115, %v2976
    %3117 = vadd.xlane.f32.xlu0 %v3116
    %v3118 = vpop.xlane.xlu0 %3117
    %v3119 = vadd.f32 %v2977, %v2978
    %v3120 = vadd.f32 %v3119, %v2979
    %v3121 = vadd.f32 %v3120, %v2980
    %3122 = vadd.xlane.f32.xlu0 %v3121
    %v3123 = vpop.xlane.xlu0 %3122
    %v3124 = vadd.f32 %v2981, %v2982
    %v3125 = vadd.f32 %v3124, %v2983
    %v3126 = vadd.f32 %v3125, %v2984
    %3127 = vadd.xlane.f32.xlu0 %v3126
    %v3128 = vpop.xlane.xlu0 %3127
    %v3129 = vadd.f32 %v2985, %v2986
    %v3130 = vadd.f32 %v3129, %v2987
    %v3131 = vadd.f32 %v3130, %v2988
    %3132 = vadd.xlane.f32.xlu0 %v3131
    %v3133 = vpop.xlane.xlu0 %3132
    %v3134 = vadd.f32 %v2989, %v2990
    %v3135 = vadd.f32 %v3134, %v2991
    %v3136 = vadd.f32 %v3135, %v2992
    %3137 = vadd.xlane.f32.xlu0 %v3136
    %v3138 = vpop.xlane.xlu0 %3137
    %v3139 = vadd.f32 %v2993, %v2994
    %v3140 = vadd.f32 %v3139, %v2995
    %v3141 = vadd.f32 %v3140, %v2996
    %3142 = vadd.xlane.f32.xlu0 %v3141
    %v3143 = vpop.xlane.xlu0 %3142
    %v3144 = vadd.f32 %v2997, %v2998
    %v3145 = vadd.f32 %v3144, %v2999
    %v3146 = vadd.f32 %v3145, %v3000
    %3147 = vadd.xlane.f32.xlu0 %v3146
    %v3148 = vpop.xlane.xlu0 %3147
    %v3149 = vadd.f32 %v3001, %v3002
    %v3150 = vadd.f32 %v3149, %v3003
    %v3151 = vadd.f32 %v3150, %v3004
    %3152 = vadd.xlane.f32.xlu0 %v3151
    %v3153 = vpop.xlane.xlu0 %3152
    %v3154 = vadd.f32 %v3005, %v3006
    %v3155 = vadd.f32 %v3154, %v3007
    %v3156 = vadd.f32 %v3155, %v3008
    %3157 = vadd.xlane.f32.xlu0 %v3156
    %v3158 = vpop.xlane.xlu0 %3157
    %v3159 = vadd.f32 %v3009, %v3010
    %v3160 = vadd.f32 %v3159, %v3011
    %v3161 = vadd.f32 %v3160, %v3012
    %3162 = vadd.xlane.f32.xlu0 %v3161
    %v3163 = vpop.xlane.xlu0 %3162
    %v3164 = vadd.f32 %v3013, %v3014
    %v3165 = vadd.f32 %v3164, %v3015
    %v3166 = vadd.f32 %v3165, %v3016
    %3167 = vadd.xlane.f32.xlu0 %v3166
    %v3168 = vpop.xlane.xlu0 %3167
    %v3169 = vadd.f32 %v3017, %v3018
    %v3170 = vadd.f32 %v3169, %v3019
    %v3171 = vadd.f32 %v3170, %v3020
    %3172 = vadd.xlane.f32.xlu0 %v3171
    %v3173 = vpop.xlane.xlu0 %3172
    %v3174 = vadd.f32 %v3021, %v3022
    %v3175 = vadd.f32 %v3174, %v3023
    %v3176 = vadd.f32 %v3175, %v3024
    %3177 = vadd.xlane.f32.xlu0 %v3176
    %v3178 = vpop.xlane.xlu0 %3177
    %v3179 = vadd.f32 %v3025, %v3026
    %v3180 = vadd.f32 %v3179, %v3027
    %v3181 = vadd.f32 %v3180, %v3028
    %3182 = vadd.xlane.f32.xlu0 %v3181
    %v3183 = vpop.xlane.xlu0 %3182
    %v3184 = vadd.f32 %v3029, %v3030
    %v3185 = vadd.f32 %v3184, %v3031
    %v3186 = vadd.f32 %v3185, %v3032
    %3187 = vadd.xlane.f32.xlu0 %v3186
    %v3188 = vpop.xlane.xlu0 %3187
    %v3189 = vadd.f32 %v3033, %v3034
    %v3190 = vadd.f32 %v3189, %v3035
    %v3191 = vadd.f32 %v3190, %v3036
    %3192 = vadd.xlane.f32.xlu0 %v3191
    %v3193 = vpop.xlane.xlu0 %3192
    %v3194 = vadd.f32 %v3037, %v3038
    %v3195 = vadd.f32 %v3194, %v3039
    %v3196 = vadd.f32 %v3195, %v3040
    %3197 = vadd.xlane.f32.xlu0 %v3196
    %v3198 = vpop.xlane.xlu0 %3197
    %v3199 = vadd.f32 %v3041, %v3042
    %v3200 = vadd.f32 %v3199, %v3043
    %v3201 = vadd.f32 %v3200, %v3044
    %3202 = vadd.xlane.f32.xlu0 %v3201
    %v3203 = vpop.xlane.xlu0 %3202
    %v3204 = vadd.f32 %v3045, %v3046
    %v3205 = vadd.f32 %v3204, %v3047
    %v3206 = vadd.f32 %v3205, %v3048
    %3207 = vadd.xlane.f32.xlu0 %v3206
    %v3208 = vpop.xlane.xlu0 %3207
    %v3209 = vadd.f32 %v2761, %v3053
    %v3210 = vadd.f32 %v2762, %v3058
    %v3211 = vadd.f32 %v2763, %v3063
    %v3212 = vadd.f32 %v2764, %v3068
    %v3213 = vadd.f32 %v2765, %v3073
    %v3214 = vadd.f32 %v2766, %v3078
    %v3215 = vadd.f32 %v2767, %v3083
    %v3216 = vadd.f32 %v2768, %v3088
    %v3217 = vadd.f32 %v2769, %v3093
    %v3218 = vadd.f32 %v2770, %v3098
    %v3219 = vadd.f32 %v2771, %v3103
    %v3220 = vadd.f32 %v2772, %v3108
    %v3221 = vadd.f32 %v2773, %v3113
    %v3222 = vadd.f32 %v2774, %v3118
    %v3223 = vadd.f32 %v2775, %v3123
    %v3224 = vadd.f32 %v2776, %v3128
    %v3225 = vadd.f32 %v2777, %v3133
    %v3226 = vadd.f32 %v2778, %v3138
    %v3227 = vadd.f32 %v2779, %v3143
    %v3228 = vadd.f32 %v2780, %v3148
    %v3229 = vadd.f32 %v2781, %v3153
    %v3230 = vadd.f32 %v2782, %v3158
    %v3231 = vadd.f32 %v2783, %v3163
    %v3232 = vadd.f32 %v2784, %v3168
    %v3233 = vadd.f32 %v2785, %v3173
    %v3234 = vadd.f32 %v2786, %v3178
    %v3235 = vadd.f32 %v2787, %v3183
    %v3236 = vadd.f32 %v2788, %v3188
    %v3237 = vadd.f32 %v2789, %v3193
    %v3238 = vadd.f32 %v2790, %v3198
    %v3239 = vadd.f32 %v2791, %v3203
    %v3240 = vadd.f32 %v2792, %v3208
    %3241 = vst.msk [vmem:[#allocation4] sm:$0xff] %vm2044, %v3209
    %3242 = vst.msk [vmem:[#allocation4 + $0x8] sm:$0xff] %vm2044, %v3210
    %3243 = vst.msk [vmem:[#allocation4 + $0x10] sm:$0xff] %vm2044, %v3211
    %3244 = vst.msk [vmem:[#allocation4 + $0x18] sm:$0xff] %vm2044, %v3212
    %3245 = vst.msk [vmem:[#allocation4 + $0x20] sm:$0xff] %vm2044, %v3213
    %3246 = vst.msk [vmem:[#allocation4 + $0x28] sm:$0xff] %vm2044, %v3214
    %3247 = vst.msk [vmem:[#allocation4 + $0x30] sm:$0xff] %vm2044, %v3215
    %3248 = vst.msk [vmem:[#allocation4 + $0x38] sm:$0xff] %vm2044, %v3216
    %3249 = vst.msk [vmem:[#allocation4 + $0x40] sm:$0xff] %vm2044, %v3217
    %3250 = vst.msk [vmem:[#allocation4 + $0x48] sm:$0xff] %vm2044, %v3218
    %3251 = vst.msk [vmem:[#allocation4 + $0x50] sm:$0xff] %vm2044, %v3219
    %3252 = vst.msk [vmem:[#allocation4 + $0x58] sm:$0xff] %vm2044, %v3220
    %3253 = vst.msk [vmem:[#allocation4 + $0x60] sm:$0xff] %vm2044, %v3221
    %3254 = vst.msk [vmem:[#allocation4 + $0x68] sm:$0xff] %vm2044, %v3222
    %3255 = vst.msk [vmem:[#allocation4 + $0x70] sm:$0xff] %vm2044, %v3223
    %3256 = vst.msk [vmem:[#allocation4 + $0x78] sm:$0xff] %vm2044, %v3224
    %3257 = vst.msk [vmem:[#allocation4 + $0x80] sm:$0xff] %vm2044, %v3225
    %3258 = vst.msk [vmem:[#allocation4 + $0x88] sm:$0xff] %vm2044, %v3226
    %3259 = vst.msk [vmem:[#allocation4 + $0x90] sm:$0xff] %vm2044, %v3227
    %3260 = vst.msk [vmem:[#allocation4 + $0x98] sm:$0xff] %vm2044, %v3228
    %3261 = vst.msk [vmem:[#allocation4 + $0xa0] sm:$0xff] %vm2044, %v3229
    %3262 = vst.msk [vmem:[#allocation4 + $0xa8] sm:$0xff] %vm2044, %v3230
    %3263 = vst.msk [vmem:[#allocation4 + $0xb0] sm:$0xff] %vm2044, %v3231
    %3264 = vst.msk [vmem:[#allocation4 + $0xb8] sm:$0xff] %vm2044, %v3232
    %3265 = vst.msk [vmem:[#allocation4 + $0xc0] sm:$0xff] %vm2044, %v3233
    %3266 = vst.msk [vmem:[#allocation4 + $0xc8] sm:$0xff] %vm2044, %v3234
    %3267 = vst.msk [vmem:[#allocation4 + $0xd0] sm:$0xff] %vm2044, %v3235
    %3268 = vst.msk [vmem:[#allocation4 + $0xd8] sm:$0xff] %vm2044, %v3236
    %3269 = vst.msk [vmem:[#allocation4 + $0xe0] sm:$0xff] %vm2044, %v3237
    %3270 = vst.msk [vmem:[#allocation4 + $0xe8] sm:$0xff] %vm2044, %v3238
    %3271 = vst.msk [vmem:[#allocation4 + $0xf0] sm:$0xff] %vm2044, %v3239
    %3272 = vst.msk [vmem:[#allocation4 + $0xf8] sm:$0xff] %vm2044, %v3240
    // Predicated region
    $region26: #{tpu_custom_call.1} parent=1 // pred_check
      %p3273 = pneg %p62
    $region27: #{tpu_custom_call.1} parent=1 // pred_check_branch
      %3275 = sbr.rel (%p3273) target = $region29
    $region28: #{tpu_custom_call.1} parent=1 // pred_region
      %vm3276 = vcmp.eq.s32.totalorder %v2112, 0
      %v3277 = vld [vmem:[#allocation2] sm:$0xff]
      %v3278 = vld [vmem:[#allocation2 + $0x8] sm:$0xff]
      %v3279 = vld [vmem:[#allocation2 + $0x10] sm:$0xff]
      %v3280 = vld [vmem:[#allocation2 + $0x18] sm:$0xff]
      %v3281 = vld [vmem:[#allocation2 + $0x20] sm:$0xff]
      %v3282 = vld [vmem:[#allocation2 + $0x28] sm:$0xff]
      %v3283 = vld [vmem:[#allocation2 + $0x30] sm:$0xff]
      %v3284 = vld [vmem:[#allocation2 + $0x38] sm:$0xff]
      %v3285 = vld [vmem:[#allocation2 + $0x40] sm:$0xff]
      %v3286 = vld [vmem:[#allocation2 + $0x48] sm:$0xff]
      %v3287 = vld [vmem:[#allocation2 + $0x50] sm:$0xff]
      %v3288 = vld [vmem:[#allocation2 + $0x58] sm:$0xff]
      %v3289 = vld [vmem:[#allocation2 + $0x60] sm:$0xff]
      %v3290 = vld [vmem:[#allocation2 + $0x68] sm:$0xff]
      %v3291 = vld [vmem:[#allocation2 + $0x70] sm:$0xff]
      %v3292 = vld [vmem:[#allocation2 + $0x78] sm:$0xff]
      %v3293 = vld [vmem:[#allocation2 + $0x80] sm:$0xff]
      %v3294 = vld [vmem:[#allocation2 + $0x88] sm:$0xff]
      %v3295 = vld [vmem:[#allocation2 + $0x90] sm:$0xff]
      %v3296 = vld [vmem:[#allocation2 + $0x98] sm:$0xff]
      %v3297 = vld [vmem:[#allocation2 + $0xa0] sm:$0xff]
      %v3298 = vld [vmem:[#allocation2 + $0xa8] sm:$0xff]
      %v3299 = vld [vmem:[#allocation2 + $0xb0] sm:$0xff]
      %v3300 = vld [vmem:[#allocation2 + $0xb8] sm:$0xff]
      %v3301 = vld [vmem:[#allocation2 + $0xc0] sm:$0xff]
      %v3302 = vld [vmem:[#allocation2 + $0xc8] sm:$0xff]
      %v3303 = vld [vmem:[#allocation2 + $0xd0] sm:$0xff]
      %v3304 = vld [vmem:[#allocation2 + $0xd8] sm:$0xff]
      %v3305 = vld [vmem:[#allocation2 + $0xe0] sm:$0xff]
      %v3306 = vld [vmem:[#allocation2 + $0xe8] sm:$0xff]
      %v3307 = vld [vmem:[#allocation2 + $0xf0] sm:$0xff]
      %v3308 = vld [vmem:[#allocation2 + $0xf8] sm:$0xff]
      %vm3309 = vcmp.eq.s32.totalorder %v2112, 1
      %v3310 = vld [vmem:[#allocation3] sm:$0xff]
      %v3311 = vld [vmem:[#allocation3 + $0x8] sm:$0xff]
      %v3312 = vld [vmem:[#allocation3 + $0x10] sm:$0xff]
      %v3313 = vld [vmem:[#allocation3 + $0x18] sm:$0xff]
      %v3314 = vld [vmem:[#allocation3 + $0x20] sm:$0xff]
      %v3315 = vld [vmem:[#allocation3 + $0x28] sm:$0xff]
      %v3316 = vld [vmem:[#allocation3 + $0x30] sm:$0xff]
      %v3317 = vld [vmem:[#allocation3 + $0x38] sm:$0xff]
      %v3318 = vld [vmem:[#allocation3 + $0x40] sm:$0xff]
      %v3319 = vld [vmem:[#allocation3 + $0x48] sm:$0xff]
      %v3320 = vld [vmem:[#allocation3 + $0x50] sm:$0xff]
      %v3321 = vld [vmem:[#allocation3 + $0x58] sm:$0xff]
      %v3322 = vld [vmem:[#allocation3 + $0x60] sm:$0xff]
      %v3323 = vld [vmem:[#allocation3 + $0x68] sm:$0xff]
      %v3324 = vld [vmem:[#allocation3 + $0x70] sm:$0xff]
      %v3325 = vld [vmem:[#allocation3 + $0x78] sm:$0xff]
      %v3326 = vld [vmem:[#allocation3 + $0x80] sm:$0xff]
      %v3327 = vld [vmem:[#allocation3 + $0x88] sm:$0xff]
      %v3328 = vld [vmem:[#allocation3 + $0x90] sm:$0xff]
      %v3329 = vld [vmem:[#allocation3 + $0x98] sm:$0xff]
      %v3330 = vld [vmem:[#allocation3 + $0xa0] sm:$0xff]
      %v3331 = vld [vmem:[#allocation3 + $0xa8] sm:$0xff]
      %v3332 = vld [vmem:[#allocation3 + $0xb0] sm:$0xff]
      %v3333 = vld [vmem:[#allocation3 + $0xb8] sm:$0xff]
      %v3334 = vld [vmem:[#allocation3 + $0xc0] sm:$0xff]
      %v3335 = vld [vmem:[#allocation3 + $0xc8] sm:$0xff]
      %v3336 = vld [vmem:[#allocation3 + $0xd0] sm:$0xff]
      %v3337 = vld [vmem:[#allocation3 + $0xd8] sm:$0xff]
      %v3338 = vld [vmem:[#allocation3 + $0xe0] sm:$0xff]
      %v3339 = vld [vmem:[#allocation3 + $0xe8] sm:$0xff]
      %v3340 = vld [vmem:[#allocation3 + $0xf0] sm:$0xff]
      %v3341 = vld [vmem:[#allocation3 + $0xf8] sm:$0xff]
      %vm3342 = vcmp.eq.s32.totalorder %v2112, 2
      %v3343 = vld [vmem:[#allocation4] sm:$0xff]
      %v3344 = vld [vmem:[#allocation4 + $0x8] sm:$0xff]
      %v3345 = vld [vmem:[#allocation4 + $0x10] sm:$0xff]
      %v3346 = vld [vmem:[#allocation4 + $0x18] sm:$0xff]
      %v3347 = vld [vmem:[#allocation4 + $0x20] sm:$0xff]
      %v3348 = vld [vmem:[#allocation4 + $0x28] sm:$0xff]
      %v3349 = vld [vmem:[#allocation4 + $0x30] sm:$0xff]
      %v3350 = vld [vmem:[#allocation4 + $0x38] sm:$0xff]
      %v3351 = vld [vmem:[#allocation4 + $0x40] sm:$0xff]
      %v3352 = vld [vmem:[#allocation4 + $0x48] sm:$0xff]
      %v3353 = vld [vmem:[#allocation4 + $0x50] sm:$0xff]
      %v3354 = vld [vmem:[#allocation4 + $0x58] sm:$0xff]
      %v3355 = vld [vmem:[#allocation4 + $0x60] sm:$0xff]
      %v3356 = vld [vmem:[#allocation4 + $0x68] sm:$0xff]
      %v3357 = vld [vmem:[#allocation4 + $0x70] sm:$0xff]
      %v3358 = vld [vmem:[#allocation4 + $0x78] sm:$0xff]
      %v3359 = vld [vmem:[#allocation4 + $0x80] sm:$0xff]
      %v3360 = vld [vmem:[#allocation4 + $0x88] sm:$0xff]
      %v3361 = vld [vmem:[#allocation4 + $0x90] sm:$0xff]
      %v3362 = vld [vmem:[#allocation4 + $0x98] sm:$0xff]
      %v3363 = vld [vmem:[#allocation4 + $0xa0] sm:$0xff]
      %v3364 = vld [vmem:[#allocation4 + $0xa8] sm:$0xff]
      %v3365 = vld [vmem:[#allocation4 + $0xb0] sm:$0xff]
      %v3366 = vld [vmem:[#allocation4 + $0xb8] sm:$0xff]
      %v3367 = vld [vmem:[#allocation4 + $0xc0] sm:$0xff]
      %v3368 = vld [vmem:[#allocation4 + $0xc8] sm:$0xff]
      %v3369 = vld [vmem:[#allocation4 + $0xd0] sm:$0xff]
      %v3370 = vld [vmem:[#allocation4 + $0xd8] sm:$0xff]
      %v3371 = vld [vmem:[#allocation4 + $0xe0] sm:$0xff]
      %v3372 = vld [vmem:[#allocation4 + $0xe8] sm:$0xff]
      %v3373 = vld [vmem:[#allocation4 + $0xf0] sm:$0xff]
      %v3374 = vld [vmem:[#allocation4 + $0xf8] sm:$0xff]
      %3376 = vset.pattern.permute.xlu0 0
      %3377 = vperm.xlu0 %3376, %v3343
      %v3378 = vpop.permute.xlu0 %3377
      %3381 = vset.pattern.permute.xlu0 0
      %3382 = vperm.xlu0 %3381, %v3344
      %v3383 = vpop.permute.xlu0 %3382
      %3386 = vset.pattern.permute.xlu0 0
      %3387 = vperm.xlu0 %3386, %v3345
      %v3388 = vpop.permute.xlu0 %3387
      %3391 = vset.pattern.permute.xlu0 0
      %3392 = vperm.xlu0 %3391, %v3346
      %v3393 = vpop.permute.xlu0 %3392
      %3396 = vset.pattern.permute.xlu0 0
      %3397 = vperm.xlu0 %3396, %v3347
      %v3398 = vpop.permute.xlu0 %3397
      %3401 = vset.pattern.permute.xlu0 0
      %3402 = vperm.xlu0 %3401, %v3348
      %v3403 = vpop.permute.xlu0 %3402
      %3406 = vset.pattern.permute.xlu0 0
      %3407 = vperm.xlu0 %3406, %v3349
      %v3408 = vpop.permute.xlu0 %3407
      %3411 = vset.pattern.permute.xlu0 0
      %3412 = vperm.xlu0 %3411, %v3350
      %v3413 = vpop.permute.xlu0 %3412
      %3416 = vset.pattern.permute.xlu0 0
      %3417 = vperm.xlu0 %3416, %v3351
      %v3418 = vpop.permute.xlu0 %3417
      %3421 = vset.pattern.permute.xlu0 0
      %3422 = vperm.xlu0 %3421, %v3352
      %v3423 = vpop.permute.xlu0 %3422
      %3426 = vset.pattern.permute.xlu0 0
      %3427 = vperm.xlu0 %3426, %v3353
      %v3428 = vpop.permute.xlu0 %3427
      %3431 = vset.pattern.permute.xlu0 0
      %3432 = vperm.xlu0 %3431, %v3354
      %v3433 = vpop.permute.xlu0 %3432
      %3436 = vset.pattern.permute.xlu0 0
      %3437 = vperm.xlu0 %3436, %v3355
      %v3438 = vpop.permute.xlu0 %3437
      %3441 = vset.pattern.permute.xlu0 0
      %3442 = vperm.xlu0 %3441, %v3356
      %v3443 = vpop.permute.xlu0 %3442
      %3446 = vset.pattern.permute.xlu0 0
      %3447 = vperm.xlu0 %3446, %v3357
      %v3448 = vpop.permute.xlu0 %3447
      %3451 = vset.pattern.permute.xlu0 0
      %3452 = vperm.xlu0 %3451, %v3358
      %v3453 = vpop.permute.xlu0 %3452
      %3456 = vset.pattern.permute.xlu0 0
      %3457 = vperm.xlu0 %3456, %v3359
      %v3458 = vpop.permute.xlu0 %3457
      %3461 = vset.pattern.permute.xlu0 0
      %3462 = vperm.xlu0 %3461, %v3360
      %v3463 = vpop.permute.xlu0 %3462
      %3466 = vset.pattern.permute.xlu0 0
      %3467 = vperm.xlu0 %3466, %v3361
      %v3468 = vpop.permute.xlu0 %3467
      %3471 = vset.pattern.permute.xlu0 0
      %3472 = vperm.xlu0 %3471, %v3362
      %v3473 = vpop.permute.xlu0 %3472
      %3476 = vset.pattern.permute.xlu0 0
      %3477 = vperm.xlu0 %3476, %v3363
      %v3478 = vpop.permute.xlu0 %3477
      %3481 = vset.pattern.permute.xlu0 0
      %3482 = vperm.xlu0 %3481, %v3364
      %v3483 = vpop.permute.xlu0 %3482
      %3486 = vset.pattern.permute.xlu0 0
      %3487 = vperm.xlu0 %3486, %v3365
      %v3488 = vpop.permute.xlu0 %3487
      %3491 = vset.pattern.permute.xlu0 0
      %3492 = vperm.xlu0 %3491, %v3366
      %v3493 = vpop.permute.xlu0 %3492
      %3496 = vset.pattern.permute.xlu0 0
      %3497 = vperm.xlu0 %3496, %v3367
      %v3498 = vpop.permute.xlu0 %3497
      %3501 = vset.pattern.permute.xlu0 0
      %3502 = vperm.xlu0 %3501, %v3368
      %v3503 = vpop.permute.xlu0 %3502
      %3506 = vset.pattern.permute.xlu0 0
      %3507 = vperm.xlu0 %3506, %v3369
      %v3508 = vpop.permute.xlu0 %3507
      %3511 = vset.pattern.permute.xlu0 0
      %3512 = vperm.xlu0 %3511, %v3370
      %v3513 = vpop.permute.xlu0 %3512
      %3516 = vset.pattern.permute.xlu0 0
      %3517 = vperm.xlu0 %3516, %v3371
      %v3518 = vpop.permute.xlu0 %3517
      %3521 = vset.pattern.permute.xlu0 0
      %3522 = vperm.xlu0 %3521, %v3372
      %v3523 = vpop.permute.xlu0 %3522
      %3526 = vset.pattern.permute.xlu0 0
      %3527 = vperm.xlu0 %3526, %v3373
      %v3528 = vpop.permute.xlu0 %3527
      %3531 = vset.pattern.permute.xlu0 0
      %3532 = vperm.xlu0 %3531, %v3374
      %v3533 = vpop.permute.xlu0 %3532
      %v3535 = vsel %vm3342, %v3378, 0.0
      %v3536 = vsel %vm3342, %v3383, 0.0
      %v3537 = vsel %vm3342, %v3388, 0.0
      %v3538 = vsel %vm3342, %v3393, 0.0
      %v3539 = vsel %vm3342, %v3398, 0.0
      %v3540 = vsel %vm3342, %v3403, 0.0
      %v3541 = vsel %vm3342, %v3408, 0.0
      %v3542 = vsel %vm3342, %v3413, 0.0
      %v3543 = vsel %vm3342, %v3418, 0.0
      %v3544 = vsel %vm3342, %v3423, 0.0
      %v3545 = vsel %vm3342, %v3428, 0.0
      %v3546 = vsel %vm3342, %v3433, 0.0
      %v3547 = vsel %vm3342, %v3438, 0.0
      %v3548 = vsel %vm3342, %v3443, 0.0
      %v3549 = vsel %vm3342, %v3448, 0.0
      %v3550 = vsel %vm3342, %v3453, 0.0
      %v3551 = vsel %vm3342, %v3458, 0.0
      %v3552 = vsel %vm3342, %v3463, 0.0
      %v3553 = vsel %vm3342, %v3468, 0.0
      %v3554 = vsel %vm3342, %v3473, 0.0
      %v3555 = vsel %vm3342, %v3478, 0.0
      %v3556 = vsel %vm3342, %v3483, 0.0
      %v3557 = vsel %vm3342, %v3488, 0.0
      %v3558 = vsel %vm3342, %v3493, 0.0
      %v3559 = vsel %vm3342, %v3498, 0.0
      %v3560 = vsel %vm3342, %v3503, 0.0
      %v3561 = vsel %vm3342, %v3508, 0.0
      %v3562 = vsel %vm3342, %v3513, 0.0
      %v3563 = vsel %vm3342, %v3518, 0.0
      %v3564 = vsel %vm3342, %v3523, 0.0
      %v3565 = vsel %vm3342, %v3528, 0.0
      %v3566 = vsel %vm3342, %v3533, 0.0
      %3568 = vset.pattern.permute.xlu0 0
      %3569 = vperm.xlu0 %3568, %v3310
      %v3570 = vpop.permute.xlu0 %3569
      %3573 = vset.pattern.permute.xlu0 0
      %3574 = vperm.xlu0 %3573, %v3311
      %v3575 = vpop.permute.xlu0 %3574
      %3578 = vset.pattern.permute.xlu0 0
      %3579 = vperm.xlu0 %3578, %v3312
      %v3580 = vpop.permute.xlu0 %3579
      %3583 = vset.pattern.permute.xlu0 0
      %3584 = vperm.xlu0 %3583, %v3313
      %v3585 = vpop.permute.xlu0 %3584
      %3588 = vset.pattern.permute.xlu0 0
      %3589 = vperm.xlu0 %3588, %v3314
      %v3590 = vpop.permute.xlu0 %3589
      %3593 = vset.pattern.permute.xlu0 0
      %3594 = vperm.xlu0 %3593, %v3315
      %v3595 = vpop.permute.xlu0 %3594
      %3598 = vset.pattern.permute.xlu0 0
      %3599 = vperm.xlu0 %3598, %v3316
      %v3600 = vpop.permute.xlu0 %3599
      %3603 = vset.pattern.permute.xlu0 0
      %3604 = vperm.xlu0 %3603, %v3317
      %v3605 = vpop.permute.xlu0 %3604
      %3608 = vset.pattern.permute.xlu0 0
      %3609 = vperm.xlu0 %3608, %v3318
      %v3610 = vpop.permute.xlu0 %3609
      %3613 = vset.pattern.permute.xlu0 0
      %3614 = vperm.xlu0 %3613, %v3319
      %v3615 = vpop.permute.xlu0 %3614
      %3618 = vset.pattern.permute.xlu0 0
      %3619 = vperm.xlu0 %3618, %v3320
      %v3620 = vpop.permute.xlu0 %3619
      %3623 = vset.pattern.permute.xlu0 0
      %3624 = vperm.xlu0 %3623, %v3321
      %v3625 = vpop.permute.xlu0 %3624
      %3628 = vset.pattern.permute.xlu0 0
      %3629 = vperm.xlu0 %3628, %v3322
      %v3630 = vpop.permute.xlu0 %3629
      %3633 = vset.pattern.permute.xlu0 0
      %3634 = vperm.xlu0 %3633, %v3323
      %v3635 = vpop.permute.xlu0 %3634
      %3638 = vset.pattern.permute.xlu0 0
      %3639 = vperm.xlu0 %3638, %v3324
      %v3640 = vpop.permute.xlu0 %3639
      %3643 = vset.pattern.permute.xlu0 0
      %3644 = vperm.xlu0 %3643, %v3325
      %v3645 = vpop.permute.xlu0 %3644
      %3648 = vset.pattern.permute.xlu0 0
      %3649 = vperm.xlu0 %3648, %v3326
      %v3650 = vpop.permute.xlu0 %3649
      %3653 = vset.pattern.permute.xlu0 0
      %3654 = vperm.xlu0 %3653, %v3327
      %v3655 = vpop.permute.xlu0 %3654
      %3658 = vset.pattern.permute.xlu0 0
      %3659 = vperm.xlu0 %3658, %v3328
      %v3660 = vpop.permute.xlu0 %3659
      %3663 = vset.pattern.permute.xlu0 0
      %3664 = vperm.xlu0 %3663, %v3329
      %v3665 = vpop.permute.xlu0 %3664
      %3668 = vset.pattern.permute.xlu0 0
      %3669 = vperm.xlu0 %3668, %v3330
      %v3670 = vpop.permute.xlu0 %3669
      %3673 = vset.pattern.permute.xlu0 0
      %3674 = vperm.xlu0 %3673, %v3331
      %v3675 = vpop.permute.xlu0 %3674
      %3678 = vset.pattern.permute.xlu0 0
      %3679 = vperm.xlu0 %3678, %v3332
      %v3680 = vpop.permute.xlu0 %3679
      %3683 = vset.pattern.permute.xlu0 0
      %3684 = vperm.xlu0 %3683, %v3333
      %v3685 = vpop.permute.xlu0 %3684
      %3688 = vset.pattern.permute.xlu0 0
      %3689 = vperm.xlu0 %3688, %v3334
      %v3690 = vpop.permute.xlu0 %3689
      %3693 = vset.pattern.permute.xlu0 0
      %3694 = vperm.xlu0 %3693, %v3335
      %v3695 = vpop.permute.xlu0 %3694
      %3698 = vset.pattern.permute.xlu0 0
      %3699 = vperm.xlu0 %3698, %v3336
      %v3700 = vpop.permute.xlu0 %3699
      %3703 = vset.pattern.permute.xlu0 0
      %3704 = vperm.xlu0 %3703, %v3337
      %v3705 = vpop.permute.xlu0 %3704
      %3708 = vset.pattern.permute.xlu0 0
      %3709 = vperm.xlu0 %3708, %v3338
      %v3710 = vpop.permute.xlu0 %3709
      %3713 = vset.pattern.permute.xlu0 0
      %3714 = vperm.xlu0 %3713, %v3339
      %v3715 = vpop.permute.xlu0 %3714
      %3718 = vset.pattern.permute.xlu0 0
      %3719 = vperm.xlu0 %3718, %v3340
      %v3720 = vpop.permute.xlu0 %3719
      %3723 = vset.pattern.permute.xlu0 0
      %3724 = vperm.xlu0 %3723, %v3341
      %v3725 = vpop.permute.xlu0 %3724
      %v3727 = vsel %vm3309, %v3570, %v3535
      %v3728 = vsel %vm3309, %v3575, %v3536
      %v3729 = vsel %vm3309, %v3580, %v3537
      %v3730 = vsel %vm3309, %v3585, %v3538
      %v3731 = vsel %vm3309, %v3590, %v3539
      %v3732 = vsel %vm3309, %v3595, %v3540
      %v3733 = vsel %vm3309, %v3600, %v3541
      %v3734 = vsel %vm3309, %v3605, %v3542
      %v3735 = vsel %vm3309, %v3610, %v3543
      %v3736 = vsel %vm3309, %v3615, %v3544
      %v3737 = vsel %vm3309, %v3620, %v3545
      %v3738 = vsel %vm3309, %v3625, %v3546
      %v3739 = vsel %vm3309, %v3630, %v3547
      %v3740 = vsel %vm3309, %v3635, %v3548
      %v3741 = vsel %vm3309, %v3640, %v3549
      %v3742 = vsel %vm3309, %v3645, %v3550
      %v3743 = vsel %vm3309, %v3650, %v3551
      %v3744 = vsel %vm3309, %v3655, %v3552
      %v3745 = vsel %vm3309, %v3660, %v3553
      %v3746 = vsel %vm3309, %v3665, %v3554
      %v3747 = vsel %vm3309, %v3670, %v3555
      %v3748 = vsel %vm3309, %v3675, %v3556
      %v3749 = vsel %vm3309, %v3680, %v3557
      %v3750 = vsel %vm3309, %v3685, %v3558
      %v3751 = vsel %vm3309, %v3690, %v3559
      %v3752 = vsel %vm3309, %v3695, %v3560
      %v3753 = vsel %vm3309, %v3700, %v3561
      %v3754 = vsel %vm3309, %v3705, %v3562
      %v3755 = vsel %vm3309, %v3710, %v3563
      %v3756 = vsel %vm3309, %v3715, %v3564
      %v3757 = vsel %vm3309, %v3720, %v3565
      %v3758 = vsel %vm3309, %v3725, %v3566
      %3760 = vset.pattern.permute.xlu0 0
      %3761 = vperm.xlu0 %3760, %v3277
      %v3762 = vpop.permute.xlu0 %3761
      %3765 = vset.pattern.permute.xlu0 0
      %3766 = vperm.xlu0 %3765, %v3278
      %v3767 = vpop.permute.xlu0 %3766
      %3770 = vset.pattern.permute.xlu0 0
      %3771 = vperm.xlu0 %3770, %v3279
      %v3772 = vpop.permute.xlu0 %3771
      %3775 = vset.pattern.permute.xlu0 0
      %3776 = vperm.xlu0 %3775, %v3280
      %v3777 = vpop.permute.xlu0 %3776
      %3780 = vset.pattern.permute.xlu0 0
      %3781 = vperm.xlu0 %3780, %v3281
      %v3782 = vpop.permute.xlu0 %3781
      %3785 = vset.pattern.permute.xlu0 0
      %3786 = vperm.xlu0 %3785, %v3282
      %v3787 = vpop.permute.xlu0 %3786
      %3790 = vset.pattern.permute.xlu0 0
      %3791 = vperm.xlu0 %3790, %v3283
      %v3792 = vpop.permute.xlu0 %3791
      %3795 = vset.pattern.permute.xlu0 0
      %3796 = vperm.xlu0 %3795, %v3284
      %v3797 = vpop.permute.xlu0 %3796
      %3800 = vset.pattern.permute.xlu0 0
      %3801 = vperm.xlu0 %3800, %v3285
      %v3802 = vpop.permute.xlu0 %3801
      %3805 = vset.pattern.permute.xlu0 0
      %3806 = vperm.xlu0 %3805, %v3286
      %v3807 = vpop.permute.xlu0 %3806
      %3810 = vset.pattern.permute.xlu0 0
      %3811 = vperm.xlu0 %3810, %v3287
      %v3812 = vpop.permute.xlu0 %3811
      %3815 = vset.pattern.permute.xlu0 0
      %3816 = vperm.xlu0 %3815, %v3288
      %v3817 = vpop.permute.xlu0 %3816
      %3820 = vset.pattern.permute.xlu0 0
      %3821 = vperm.xlu0 %3820, %v3289
      %v3822 = vpop.permute.xlu0 %3821
      %3825 = vset.pattern.permute.xlu0 0
      %3826 = vperm.xlu0 %3825, %v3290
      %v3827 = vpop.permute.xlu0 %3826
      %3830 = vset.pattern.permute.xlu0 0
      %3831 = vperm.xlu0 %3830, %v3291
      %v3832 = vpop.permute.xlu0 %3831
      %3835 = vset.pattern.permute.xlu0 0
      %3836 = vperm.xlu0 %3835, %v3292
      %v3837 = vpop.permute.xlu0 %3836
      %3840 = vset.pattern.permute.xlu0 0
      %3841 = vperm.xlu0 %3840, %v3293
      %v3842 = vpop.permute.xlu0 %3841
      %3845 = vset.pattern.permute.xlu0 0
      %3846 = vperm.xlu0 %3845, %v3294
      %v3847 = vpop.permute.xlu0 %3846
      %3850 = vset.pattern.permute.xlu0 0
      %3851 = vperm.xlu0 %3850, %v3295
      %v3852 = vpop.permute.xlu0 %3851
      %3855 = vset.pattern.permute.xlu0 0
      %3856 = vperm.xlu0 %3855, %v3296
      %v3857 = vpop.permute.xlu0 %3856
      %3860 = vset.pattern.permute.xlu0 0
      %3861 = vperm.xlu0 %3860, %v3297
      %v3862 = vpop.permute.xlu0 %3861
      %3865 = vset.pattern.permute.xlu0 0
      %3866 = vperm.xlu0 %3865, %v3298
      %v3867 = vpop.permute.xlu0 %3866
      %3870 = vset.pattern.permute.xlu0 0
      %3871 = vperm.xlu0 %3870, %v3299
      %v3872 = vpop.permute.xlu0 %3871
      %3875 = vset.pattern.permute.xlu0 0
      %3876 = vperm.xlu0 %3875, %v3300
      %v3877 = vpop.permute.xlu0 %3876
      %3880 = vset.pattern.permute.xlu0 0
      %3881 = vperm.xlu0 %3880, %v3301
      %v3882 = vpop.permute.xlu0 %3881
      %3885 = vset.pattern.permute.xlu0 0
      %3886 = vperm.xlu0 %3885, %v3302
      %v3887 = vpop.permute.xlu0 %3886
      %3890 = vset.pattern.permute.xlu0 0
      %3891 = vperm.xlu0 %3890, %v3303
      %v3892 = vpop.permute.xlu0 %3891
      %3895 = vset.pattern.permute.xlu0 0
      %3896 = vperm.xlu0 %3895, %v3304
      %v3897 = vpop.permute.xlu0 %3896
      %3900 = vset.pattern.permute.xlu0 0
      %3901 = vperm.xlu0 %3900, %v3305
      %v3902 = vpop.permute.xlu0 %3901
      %3905 = vset.pattern.permute.xlu0 0
      %3906 = vperm.xlu0 %3905, %v3306
      %v3907 = vpop.permute.xlu0 %3906
      %3910 = vset.pattern.permute.xlu0 0
      %3911 = vperm.xlu0 %3910, %v3307
      %v3912 = vpop.permute.xlu0 %3911
      %3915 = vset.pattern.permute.xlu0 0
      %3916 = vperm.xlu0 %3915, %v3308
      %v3917 = vpop.permute.xlu0 %3916
      %v3919 = vsel %vm3276, %v3762, %v3727
      %v3920 = vsel %vm3276, %v3767, %v3728
      %v3921 = vsel %vm3276, %v3772, %v3729
      %v3922 = vsel %vm3276, %v3777, %v3730
      %v3923 = vsel %vm3276, %v3782, %v3731
      %v3924 = vsel %vm3276, %v3787, %v3732
      %v3925 = vsel %vm3276, %v3792, %v3733
      %v3926 = vsel %vm3276, %v3797, %v3734
      %v3927 = vsel %vm3276, %v3802, %v3735
      %v3928 = vsel %vm3276, %v3807, %v3736
      %v3929 = vsel %vm3276, %v3812, %v3737
      %v3930 = vsel %vm3276, %v3817, %v3738
      %v3931 = vsel %vm3276, %v3822, %v3739
      %v3932 = vsel %vm3276, %v3827, %v3740
      %v3933 = vsel %vm3276, %v3832, %v3741
      %v3934 = vsel %vm3276, %v3837, %v3742
      %v3935 = vsel %vm3276, %v3842, %v3743
      %v3936 = vsel %vm3276, %v3847, %v3744
      %v3937 = vsel %vm3276, %v3852, %v3745
      %v3938 = vsel %vm3276, %v3857, %v3746
      %v3939 = vsel %vm3276, %v3862, %v3747
      %v3940 = vsel %vm3276, %v3867, %v3748
      %v3941 = vsel %vm3276, %v3872, %v3749
      %v3942 = vsel %vm3276, %v3877, %v3750
      %v3943 = vsel %vm3276, %v3882, %v3751
      %v3944 = vsel %vm3276, %v3887, %v3752
      %v3945 = vsel %vm3276, %v3892, %v3753
      %v3946 = vsel %vm3276, %v3897, %v3754
      %v3947 = vsel %vm3276, %v3902, %v3755
      %v3948 = vsel %vm3276, %v3907, %v3756
      %v3949 = vsel %vm3276, %v3912, %v3757
      %v3950 = vsel %vm3276, %v3917, %v3758
      %3951 = vst [vmem:[#allocation5] sm:$0xff] %v3919
      %3952 = vst [vmem:[#allocation5 + $0x8] sm:$0xff] %v3920
      %3953 = vst [vmem:[#allocation5 + $0x10] sm:$0xff] %v3921
      %3954 = vst [vmem:[#allocation5 + $0x18] sm:$0xff] %v3922
      %3955 = vst [vmem:[#allocation5 + $0x20] sm:$0xff] %v3923
      %3956 = vst [vmem:[#allocation5 + $0x28] sm:$0xff] %v3924
      %3957 = vst [vmem:[#allocation5 + $0x30] sm:$0xff] %v3925
      %3958 = vst [vmem:[#allocation5 + $0x38] sm:$0xff] %v3926
      %3959 = vst [vmem:[#allocation5 + $0x40] sm:$0xff] %v3927
      %3960 = vst [vmem:[#allocation5 + $0x48] sm:$0xff] %v3928
      %3961 = vst [vmem:[#allocation5 + $0x50] sm:$0xff] %v3929
      %3962 = vst [vmem:[#allocation5 + $0x58] sm:$0xff] %v3930
      %3963 = vst [vmem:[#allocation5 + $0x60] sm:$0xff] %v3931
      %3964 = vst [vmem:[#allocation5 + $0x68] sm:$0xff] %v3932
      %3965 = vst [vmem:[#allocation5 + $0x70] sm:$0xff] %v3933
      %3966 = vst [vmem:[#allocation5 + $0x78] sm:$0xff] %v3934
      %3967 = vst [vmem:[#allocation5 + $0x80] sm:$0xff] %v3935
      %3968 = vst [vmem:[#allocation5 + $0x88] sm:$0xff] %v3936
      %3969 = vst [vmem:[#allocation5 + $0x90] sm:$0xff] %v3937
      %3970 = vst [vmem:[#allocation5 + $0x98] sm:$0xff] %v3938
      %3971 = vst [vmem:[#allocation5 + $0xa0] sm:$0xff] %v3939
      %3972 = vst [vmem:[#allocation5 + $0xa8] sm:$0xff] %v3940
      %3973 = vst [vmem:[#allocation5 + $0xb0] sm:$0xff] %v3941
      %3974 = vst [vmem:[#allocation5 + $0xb8] sm:$0xff] %v3942
      %3975 = vst [vmem:[#allocation5 + $0xc0] sm:$0xff] %v3943
      %3976 = vst [vmem:[#allocation5 + $0xc8] sm:$0xff] %v3944
      %3977 = vst [vmem:[#allocation5 + $0xd0] sm:$0xff] %v3945
      %3978 = vst [vmem:[#allocation5 + $0xd8] sm:$0xff] %v3946
      %3979 = vst [vmem:[#allocation5 + $0xe0] sm:$0xff] %v3947
      %3980 = vst [vmem:[#allocation5 + $0xe8] sm:$0xff] %v3948
      %3981 = vst [vmem:[#allocation5 + $0xf0] sm:$0xff] %v3949
      %3982 = vst [vmem:[#allocation5 + $0xf8] sm:$0xff] %v3950
    $region29: #{tpu_custom_call.1} parent=1 // pred_fallthru
      _
    // Predicated region
    $region30: #{tpu_custom_call.1} parent=1 // pred_check
      _
    $region31: #{tpu_custom_call.1} parent=1 // pred_check_branch
      %3984 = sbr.rel (0) target = $region33
    $region32: #{tpu_custom_call.1} parent=1 // pred_region
      %s3986 = ssub.s32 4096, 4096
      %3987 = vsyncadd [#allocation6], %s3986
      %s3988 = sshll.u32 [#allocation5], 4
      %s3989 = int_to_ptr.vmem [resolvable:$true] %s3988
      %3994 = dma.vmem_to_hbm [thread:$0]  %s3989, 4096, %s5, [#allocation6], 128, 128, 8
    $region33: #{tpu_custom_call.1} parent=1 // pred_fallthru
      _
    // Predicated region
    $region34: #{tpu_custom_call.1} parent=1 // pred_check
      _
    $region35: #{tpu_custom_call.1} parent=1 // pred_check_branch
      %3996 = sbr.rel (0) target = $region37
    $region36: #{tpu_custom_call.1} parent=1 // pred_region
      %3997 = dma.done [#allocation6], 4096
    $region37: #{tpu_custom_call.1} parent=1 // pred_fallthru
      _
    %3998 = vsyncpa [#allocation6], 1

</llo_original>
